<compile_context>
chip_gen: v7x
topology: tpu7x:2x2x1
jax: 0.10.0
libtpu: 0.0.40
codegen_flags: <defaults>
</compile_context>

<pallas_src>
import functools

import jax
import jax.numpy as jnp
from jax.experimental import pallas as pl
from jax.experimental.pallas import tpu as pltpu

EPS = 1e-5                       # nn.BatchNorm2d default
LANES = 128                      # keep channel (last) dims lane-dense
_VMEM_LIMIT = 32 * 1024 * 1024   # explicit scoped-VMEM budget, safe on v5e/v6e/v7x


def _round_up(x, m):
    return ((x + m - 1) // m) * m


# ----------------------------- Pallas kernels ------------------------------ #

def _conv3x3_kernel(*refs, stride, Wq, Wo, Mo, mxu_dtype):
    """3x3 conv of one image as 9 shifted GEMMs accumulated in VMEM.

    Inputs : stride*stride flattened padded phase slabs [1, L, Cin] and the
             tap-major weights [9, Cin, Cp].
    Outputs: conv result in "over" layout [1, Mo, Cp] (Mo = Ho*Wq, columns
             >= Wo per row are junk and cropped by the consumer) plus per-image
             partial BatchNorm stats [1, 2, Cp] = (sum, sum of squares) over
             the VALID output positions only (junk columns masked).
    """
    nph = stride * stride
    x_refs = refs[:nph]
    w_ref = refs[nph]
    y_ref = refs[nph + 1]
    s_ref = refs[nph + 2]
    cp = w_ref.shape[-1]

    acc = jnp.zeros((Mo, cp), jnp.float32)
    for kh in range(3):
        for kw in range(3):
            phase = (kh % stride) * stride + (kw % stride)
            off = (kh // stride) * Wq + (kw // stride)        # static
            lhs = x_refs[phase][0, off:off + Mo, :]           # [Mo, Cin]
            rhs = w_ref[kh * 3 + kw]                          # [Cin, Cp]
            acc = acc + jnp.dot(lhs.astype(mxu_dtype), rhs.astype(mxu_dtype),
                                preferred_element_type=jnp.float32)
    y_ref[0] = acc

    # partial BN stats over valid columns only (single pass: sum & sum-of-sq)
    col = jax.lax.broadcasted_iota(jnp.int32, (Mo, 1), 0) % Wq
    av = jnp.where(col < Wo, acc, 0.0)
    s_ref[0, 0:1, :] = jnp.sum(av, axis=0, keepdims=True)
    s_ref[0, 1:2, :] = jnp.sum(av * av, axis=0, keepdims=True)


def _matmul_stats_kernel(x_ref, w_ref, y_ref, s_ref, *, mxu_dtype):
    """One M-tile of the downsample 1x1 conv + partial BN stats (lane-dense)."""
    y = jnp.dot(x_ref[...].astype(mxu_dtype), w_ref[...].astype(mxu_dtype),
                preferred_element_type=jnp.float32)
    y_ref[...] = y
    s_ref[0, 0:1, :] = jnp.sum(y, axis=0, keepdims=True)
    s_ref[0, 1:2, :] = jnp.sum(y * y, axis=0, keepdims=True)


def _bn_add_relu_kernel(y_ref, i_ref, coef_ref, o_ref, *, Wo):
    """out = relu(y2 * a2 + idn * a_i + c): BN2 + (BN_d of) skip + add + ReLU."""
    y = y_ref[0, :, :Wo, :]            # crop junk columns of the "over" layout
    idn = i_ref[0]
    a_y = coef_ref[0]                  # [1, 1, Cp]
    a_i = coef_ref[1]
    c = coef_ref[2]
    o_ref[0] = jnp.maximum(y * a_y + idn * a_i + c, 0.0)


# --------------------------- pallas_call wrappers --------------------------- #

def conv3x3(flats, w9, *, stride, Ho, Wo, Wq, mxu_dtype):
    n = flats[0].shape[0]
    rows, cin = flats[0].shape[1], flats[0].shape[2]
    cp = w9.shape[-1]
    mo = Ho * Wq
    nph = stride * stride

    kernel = functools.partial(_conv3x3_kernel, stride=stride, Wq=Wq, Wo=Wo,
                               Mo=mo, mxu_dtype=mxu_dtype)
    in_specs = [pl.BlockSpec((1, rows, cin), lambda i: (i, 0, 0))
                for _ in range(nph)]
    in_specs.append(pl.BlockSpec((9, cin, cp), lambda i: (0, 0, 0)))  # resident

    y_over, stats = pl.pallas_call(
        kernel,
        out_shape=(jax.ShapeDtypeStruct((n, mo, cp), jnp.float32),
                   jax.ShapeDtypeStruct((n, 2, cp), jnp.float32)),
        grid=(n,),
        in_specs=in_specs,
        out_specs=(pl.BlockSpec((1, mo, cp), lambda i: (i, 0, 0)),
                   pl.BlockSpec((1, 2, cp), lambda i: (i, 0, 0))),
        compiler_params=pltpu.CompilerParams(
            dimension_semantics=("parallel",),
            vmem_limit_bytes=_VMEM_LIMIT),
    )(*flats, w9)
    return y_over, stats


def matmul_stats(x, w, *, mxu_dtype, tm=512):
    m, k = x.shape
    cp = w.shape[-1]
    tm = min(tm, _round_up(m, 8))
    mp = _round_up(m, tm)
    x = jnp.pad(x, ((0, mp - m), (0, 0)))    # zero rows: no effect on stats
    nt = mp // tm
    y, stats = pl.pallas_call(
        functools.partial(_matmul_stats_kernel, mxu_dtype=mxu_dtype),
        out_shape=(jax.ShapeDtypeStruct((mp, cp), jnp.float32),
                   jax.ShapeDtypeStruct((nt, 2, cp), jnp.float32)),
        grid=(nt,),
        in_specs=[pl.BlockSpec((tm, k), lambda i: (i, 0)),
                  pl.BlockSpec((k, cp), lambda i: (0, 0))],
        out_specs=(pl.BlockSpec((tm, cp), lambda i: (i, 0)),
                   pl.BlockSpec((1, 2, cp), lambda i: (i, 0, 0))),
        compiler_params=pltpu.CompilerParams(
            dimension_semantics=("parallel",),
            vmem_limit_bytes=_VMEM_LIMIT),
    )(x, w)
    return y[:m], stats


def bn_add_relu(y_over, idn, a_y, a_i, c, *, Wo):
    n, ho, wq, cp = y_over.shape
    th = min(ho, 32)                 # row tile; keep it an exact divisor of Ho
    while ho % th:
        th -= 1
    coef = jnp.stack([a_y, a_i, c]).reshape(3, 1, 1, cp)
    return pl.pallas_call(
        functools.partial(_bn_add_relu_kernel, Wo=Wo),
        out_shape=jax.ShapeDtypeStruct((n, ho, Wo, cp), jnp.float32),
        grid=(n, ho // th),
        in_specs=[pl.BlockSpec((1, th, wq, cp), lambda i, j: (i, j, 0, 0)),
                  pl.BlockSpec((1, th, Wo, cp), lambda i, j: (i, j, 0, 0)),
                  pl.BlockSpec((3, 1, 1, cp), lambda i, j: (0, 0, 0, 0))],
        out_specs=pl.BlockSpec((1, th, Wo, cp), lambda i, j: (i, j, 0, 0)),
        compiler_params=pltpu.CompilerParams(
            dimension_semantics=("parallel", "parallel"),
            vmem_limit_bytes=_VMEM_LIMIT),
    )(y_over, idn, coef)


# ------------------------------- JAX glue ----------------------------------- #

def _prep_conv_input(x, stride):
    """Zero-pad spatially (pad=1), phase-split for stride 2, flatten each phase
    to [N, L, C] so every 3x3 tap is a contiguous row slice (shifted GEMM)
    inside the Pallas kernel.  ~1x copy instead of a 9x im2col in HBM."""
    n, h, w, c = x.shape
    ho = (h - 1) // stride + 1
    wo = (w - 1) // stride + 1
    xp = jnp.pad(x, ((0, 0), (1, 1), (1, 1), (0, 0)))
    hp, wp = h + 2, w + 2
    if stride == 1:
        wq = wp
        need = ho * wq + 2 * wq + 2
        flat = xp.reshape(n, hp * wp, c)
        flats = [jnp.pad(flat, ((0, 0), (0, max(0, need - hp * wp)), (0, 0)))]
    elif stride == 2:
        hpe, wpe = hp + hp % 2, wp + wp % 2
        xp = jnp.pad(xp, ((0, 0), (0, hpe - hp), (0, wpe - wp), (0, 0)))
        hq, wq = hpe // 2, wpe // 2
        need = ho * wq + wq + 1
        flats = []
        for ph in range(2):
            for pw in range(2):
                f = xp[:, ph::2, pw::2, :].reshape(n, hq * wq, c)
                flats.append(
                    jnp.pad(f, ((0, 0), (0, max(0, need - hq * wq)), (0, 0))))
    else:
        raise ValueError("Block supports stride 1 or 2 only")
    return flats, ho, wo, wq


def _w3x3(w, cin_p, cout_p):
    """PyTorch (O, I, 3, 3) -> [9, cin_p, cout_p], tap-major, zero-padded."""
    o, i, _, _ = w.shape
    wt = jnp.transpose(w, (2, 3, 1, 0)).reshape(9, i, o)
    return jnp.pad(wt, ((0, 0), (0, cin_p - i), (0, cout_p - o)))


def _pad_vec(v, cp):
    return jnp.pad(v.astype(jnp.float32), (0, cp - v.shape[0]))


def _bn_coeffs(stats, count, gamma_p, beta_p):
    """Fold training-mode BatchNorm into per-channel y = x*a + c (tiny reduce)."""
    s = jnp.sum(stats, axis=0)                 # [2, Cp]
    mean = s[0] / count
    var = s[1] / count - mean * mean           # biased variance (PyTorch BN)
    a = gamma_p * jax.lax.rsqrt(var + EPS)
    return a, beta_p - mean * a


@functools.partial(jax.jit, static_argnames=("stride", "mxu_dtype"))
def block_forward(x_nchw, p, *, stride, mxu_dtype=jnp.float32):
    x = jnp.transpose(x_nchw, (0, 2, 3, 1)).astype(jnp.float32)   # NHWC
    n, h, w, cin = x.shape
    cout = p["w1"].shape[0]
    cp = _round_up(max(cout, LANES), LANES)     # lane-dense output channels

    # conv1 (3x3, stride, pad=1); partial BN1 stats fused into the kernel
    flats1, ho, wo, wq1 = _prep_conv_input(x, stride)
    y1_over, st1 = conv3x3(flats1, _w3x3(p["w1"], cin, cp), stride=stride,
                           Ho=ho, Wo=wo, Wq=wq1, mxu_dtype=mxu_dtype)
    a1, c1 = _bn_coeffs(st1, n * ho * wo,
                        _pad_vec(p["g1"], cp), _pad_vec(p["b1"], cp))

    # BN1 apply + ReLU fused (by XLA) with conv2's crop / pad / flatten prep
    y1 = jnp.maximum(
        y1_over.reshape(n, ho, wq1, cp)[:, :, :wo, :] * a1 + c1, 0.0)
    flats2, ho2, wo2, wq2 = _prep_conv_input(y1, 1)

    # conv2 (3x3, stride 1, pad=1); partial BN2 stats fused into the kernel
    y2_over, st2 = conv3x3(flats2, _w3x3(p["w2"], cp, cp), stride=1,
                           Ho=ho2, Wo=wo2, Wq=wq2, mxu_dtype=mxu_dtype)
    a2, c2 = _bn_coeffs(st2, n * ho2 * wo2,
                        _pad_vec(p["g2"], cp), _pad_vec(p["b2"], cp))

    # skip branch
    if stride == 2 or cin != cout:
        # 1x1 strided conv. Its bias cancels exactly under the training-mode
        # BatchNorm that follows (batch-mean subtraction) -> dropped (dead work).
        xs = x[:, ::stride, ::stride, :].reshape(n * ho * wo, cin)
        wd = jnp.pad(p["wd"].reshape(cout, cin).T, ((0, 0), (0, cp - cout)))
        idn_raw, std = matmul_stats(xs, wd, mxu_dtype=mxu_dtype)
        a_i, c_i = _bn_coeffs(std, n * ho * wo,
                              _pad_vec(p["gd"], cp), _pad_vec(p["betad"], cp))
        idn = idn_raw.reshape(n, ho, wo, cp)
    else:
        idn = jnp.pad(x, ((0, 0), (0, 0), (0, 0), (0, cp - cin)))
        a_i = jnp.ones((cp,), jnp.float32)
        c_i = jnp.zeros((cp,), jnp.float32)

    # BN2 + residual add + ReLU: one row-tiled, lane-dense Pallas pass
    out = bn_add_relu(y2_over.reshape(n, ho2, wq2, cp), idn,
                      a2, a_i, c2 + c_i, Wo=wo2)
    out = out[..., :cout]                       # drop channel padding
    return jnp.transpose(out, (0, 3, 1, 2))     # back to NCHW


# ----------------------------- pure-JAX reference --------------------------- #

def _ref_conv(x, w, stride, pad):
    return jax.lax.conv_general_dilated(
        x, jnp.transpose(w, (2, 3, 1, 0)), (stride, stride),
        [(pad, pad), (pad, pad)], dimension_numbers=("NHWC", "HWIO", "NHWC"))


def _ref_bn(x, g, b):
    m = x.mean(axis=(0, 1, 2), keepdims=True)
    v = ((x - m) ** 2).mean(axis=(0, 1, 2), keepdims=True)
    return (x - m) * jax.lax.rsqrt(v + EPS) * g + b


def reference_block(x_nchw, p, stride):
    x = jnp.transpose(x_nchw, (0, 2, 3, 1))
    cin, cout = x.shape[-1], p["w1"].shape[0]
    y = jax.nn.relu(_ref_bn(_ref_conv(x, p["w1"], stride, 1), p["g1"], p["b1"]))
    y = _ref_bn(_ref_conv(y, p["w2"], 1, 1), p["g2"], p["b2"])
    if stride == 2 or cin != cout:
        idn = _ref_conv(x, p["wd"], stride, 0) + p["bd"]   # bias kept here
        idn = _ref_bn(idn, p["gd"], p["betad"])
    else:
        idn = x
    return jnp.transpose(jax.nn.relu(y + idn), (0, 3, 1, 2))


# --------------------------------- params ----------------------------------- #

def make_params(key, in_dim, out_dim):
    ks = jax.random.split(key, 10)
    return {
        "w1": 0.1 * jax.random.normal(ks[0], (out_dim, in_dim, 3, 3), jnp.float32),
        "g1": 1.0 + 0.1 * jax.random.normal(ks[1], (out_dim,), jnp.float32),
        "b1": 0.1 * jax.random.normal(ks[2], (out_dim,), jnp.float32),
        "w2": 0.1 * jax.random.normal(ks[3], (out_dim, out_dim, 3, 3), jnp.float32),
        "g2": 1.0 + 0.1 * jax.random.normal(ks[4], (out_dim,), jnp.float32),
        "b2": 0.1 * jax.random.normal(ks[5], (out_dim,), jnp.float32),
        # downsample: 1x1 conv (bias=True, PyTorch default) + BN
        "wd": 0.1 * jax.random.normal(ks[6], (out_dim, in_dim, 1, 1), jnp.float32),
        "bd": 0.1 * jax.random.normal(ks[7], (out_dim,), jnp.float32),
        "gd": 1.0 + 0.1 * jax.random.normal(ks[8], (out_dim,), jnp.float32),
        "betad": 0.1 * jax.random.normal(ks[9], (out_dim,), jnp.float32),
    }


# ----------------------------------- main ------------------------------------ #

if __name__ == "__main__":
    key = jax.random.PRNGKey(0)
    kx, kp1, kp2 = jax.random.split(key, 3)

    # Case 1: downsample path (stride=2, in_dim != out_dim), f32 MXU operands
    N, Cin, H, W, Cout, stride = 2, 4, 16, 16, 8, 2
    x = jax.random.normal(kx, (N, Cin, H, W), jnp.float32)
    p = make_params(kp1, Cin, Cout)
    out = jax.block_until_ready(block_forward(x, p, stride=stride))
    ref = reference_block(x, p, stride)
    assert out.shape == (N, Cout, H // stride, W // stride)
    assert jnp.allclose(out, ref, atol=1e-3, rtol=1e-3)

    # Case 2: identity path (stride=1, in_dim == out_dim), f32 MXU operands
    p2 = make_params(kp2, Cout, Cout)
    x2 = jax.random.normal(kx, (N, Cout, H, W), jnp.float32)
    out2 = jax.block_until_ready(block_forward(x2, p2, stride=1))
    ref2 = reference_block(x2, p2, 1)
    assert out2.shape == (N, Cout, H, W)
    assert jnp.allclose(out2, ref2, atol=1e-3, rtol=1e-3)

    # Case 3: bf16 MXU operands (v6e/v7x fast path), f32 accumulation.
    # Tolerance is loose because bf16 rounding passes through two convs and two
    # batch-normalizations of the f32 reference.
    out3 = jax.block_until_ready(
        block_forward(x, p, stride=stride, mxu_dtype=jnp.bfloat16))
    assert jnp.allclose(out3, ref, atol=1e-1, rtol=1e-1)

    print("KERNEL_OK")
</pallas_src>

<mosaic_0001>
module attributes {stable_mosaic.version = 11 : i64} {
  func.func @_conv3x3_kernel(%arg0: i32, %arg1: memref<1x82x4xf32, #tpu.memory_space<vmem>>, %arg2: memref<1x82x4xf32, #tpu.memory_space<vmem>>, %arg3: memref<1x82x4xf32, #tpu.memory_space<vmem>>, %arg4: memref<1x82x4xf32, #tpu.memory_space<vmem>>, %arg5: memref<9x4x128xf32, #tpu.memory_space<vmem>>, %arg6: memref<1x72x128xf32, #tpu.memory_space<vmem>>, %arg7: memref<1x2x128xf32, #tpu.memory_space<vmem>>) attributes {dimension_semantics = [#tpu.dimension_semantics<parallel>], iteration_bounds = array<i64: 2>, scalar_prefetch = 0 : i64, scratch_operands = 0 : i64, tpu.core_type = #tpu.core_type<tc>, window_params = [{transform_indices = @transform_0, window_bounds = array<i64: 1, 82, 4>}, {transform_indices = @transform_1, window_bounds = array<i64: 1, 82, 4>}, {transform_indices = @transform_2, window_bounds = array<i64: 1, 82, 4>}, {transform_indices = @transform_3, window_bounds = array<i64: 1, 82, 4>}, {pipeline_mode = #tpu.pipeline_mode<synchronous>, transform_indices = @transform_4, window_bounds = array<i64: 9, 4, 128>}, {transform_indices = @transform_5, window_bounds = array<i64: 1, 72, 128>}, {transform_indices = @transform_6, window_bounds = array<i64: 1, 2, 128>}]} {
    %cst = arith.constant 0.000000e+00 : f32
    %0 = vector.broadcast %cst : f32 to vector<72x128xf32>
    %c0 = arith.constant 0 : index
    %c0_0 = arith.constant 0 : index
    %c0_1 = arith.constant 0 : index
    %1 = vector.load %arg1[%c0, %c0_0, %c0_1] : memref<1x82x4xf32, #tpu.memory_space<vmem>>, vector<1x72x4xf32>
    %2 = vector.shape_cast %1 : vector<1x72x4xf32> to vector<72x4xf32>
    %c0_2 = arith.constant 0 : index
    %c0_3 = arith.constant 0 : index
    %c0_4 = arith.constant 0 : index
    %3 = vector.load %arg5[%c0_2, %c0_3, %c0_4] : memref<9x4x128xf32, #tpu.memory_space<vmem>>, vector<1x4x128xf32>
    %4 = vector.shape_cast %3 : vector<1x4x128xf32> to vector<4x128xf32>
    %cst_5 = arith.constant dense<0.000000e+00> : vector<72x128xf32>
    %5 = tpu.matmul %2, %4, %cst_5 {dimension_numbers = #tpu.dot_dimension_numbers<[1], [0], [0], [1], [0, 0, 1, 1], [], []>} : vector<72x4xf32>, vector<4x128xf32>, vector<72x128xf32> -> vector<72x128xf32>
    %6 = arith.addf %0, %5 : vector<72x128xf32>
    %c0_6 = arith.constant 0 : index
    %c0_7 = arith.constant 0 : index
    %c0_8 = arith.constant 0 : index
    %7 = vector.load %arg2[%c0_6, %c0_7, %c0_8] : memref<1x82x4xf32, #tpu.memory_space<vmem>>, vector<1x72x4xf32>
    %8 = vector.shape_cast %7 : vector<1x72x4xf32> to vector<72x4xf32>
    %c1 = arith.constant 1 : index
    %c0_9 = arith.constant 0 : index
    %c0_10 = arith.constant 0 : index
    %9 = vector.load %arg5[%c1, %c0_9, %c0_10] : memref<9x4x128xf32, #tpu.memory_space<vmem>>, vector<1x4x128xf32>
    %10 = vector.shape_cast %9 : vector<1x4x128xf32> to vector<4x128xf32>
    %cst_11 = arith.constant dense<0.000000e+00> : vector<72x128xf32>
    %11 = tpu.matmul %8, %10, %cst_11 {dimension_numbers = #tpu.dot_dimension_numbers<[1], [0], [0], [1], [0, 0, 1, 1], [], []>} : vector<72x4xf32>, vector<4x128xf32>, vector<72x128xf32> -> vector<72x128xf32>
    %12 = arith.addf %6, %11 : vector<72x128xf32>
    %c0_12 = arith.constant 0 : index
    %c1_13 = arith.constant 1 : index
    %c0_14 = arith.constant 0 : index
    %13 = vector.load %arg1[%c0_12, %c1_13, %c0_14] : memref<1x82x4xf32, #tpu.memory_space<vmem>>, vector<1x72x4xf32>
    %14 = vector.shape_cast %13 : vector<1x72x4xf32> to vector<72x4xf32>
    %c2 = arith.constant 2 : index
    %c0_15 = arith.constant 0 : index
    %c0_16 = arith.constant 0 : index
    %15 = vector.load %arg5[%c2, %c0_15, %c0_16] : memref<9x4x128xf32, #tpu.memory_space<vmem>>, vector<1x4x128xf32>
    %16 = vector.shape_cast %15 : vector<1x4x128xf32> to vector<4x128xf32>
    %cst_17 = arith.constant dense<0.000000e+00> : vector<72x128xf32>
    %17 = tpu.matmul %14, %16, %cst_17 {dimension_numbers = #tpu.dot_dimension_numbers<[1], [0], [0], [1], [0, 0, 1, 1], [], []>} : vector<72x4xf32>, vector<4x128xf32>, vector<72x128xf32> -> vector<72x128xf32>
    %18 = arith.addf %12, %17 : vector<72x128xf32>
    %c0_18 = arith.constant 0 : index
    %c0_19 = arith.constant 0 : index
    %c0_20 = arith.constant 0 : index
    %19 = vector.load %arg3[%c0_18, %c0_19, %c0_20] : memref<1x82x4xf32, #tpu.memory_space<vmem>>, vector<1x72x4xf32>
    %20 = vector.shape_cast %19 : vector<1x72x4xf32> to vector<72x4xf32>
    %c3 = arith.constant 3 : index
    %c0_21 = arith.constant 0 : index
    %c0_22 = arith.constant 0 : index
    %21 = vector.load %arg5[%c3, %c0_21, %c0_22] : memref<9x4x128xf32, #tpu.memory_space<vmem>>, vector<1x4x128xf32>
    %22 = vector.shape_cast %21 : vector<1x4x128xf32> to vector<4x128xf32>
    %cst_23 = arith.constant dense<0.000000e+00> : vector<72x128xf32>
    %23 = tpu.matmul %20, %22, %cst_23 {dimension_numbers = #tpu.dot_dimension_numbers<[1], [0], [0], [1], [0, 0, 1, 1], [], []>} : vector<72x4xf32>, vector<4x128xf32>, vector<72x128xf32> -> vector<72x128xf32>
    %24 = arith.addf %18, %23 : vector<72x128xf32>
    %c0_24 = arith.constant 0 : index
    %c0_25 = arith.constant 0 : index
    %c0_26 = arith.constant 0 : index
    %25 = vector.load %arg4[%c0_24, %c0_25, %c0_26] : memref<1x82x4xf32, #tpu.memory_space<vmem>>, vector<1x72x4xf32>
    %26 = vector.shape_cast %25 : vector<1x72x4xf32> to vector<72x4xf32>
    %c4 = arith.constant 4 : index
    %c0_27 = arith.constant 0 : index
    %c0_28 = arith.constant 0 : index
    %27 = vector.load %arg5[%c4, %c0_27, %c0_28] : memref<9x4x128xf32, #tpu.memory_space<vmem>>, vector<1x4x128xf32>
    %28 = vector.shape_cast %27 : vector<1x4x128xf32> to vector<4x128xf32>
    %cst_29 = arith.constant dense<0.000000e+00> : vector<72x128xf32>
    %29 = tpu.matmul %26, %28, %cst_29 {dimension_numbers = #tpu.dot_dimension_numbers<[1], [0], [0], [1], [0, 0, 1, 1], [], []>} : vector<72x4xf32>, vector<4x128xf32>, vector<72x128xf32> -> vector<72x128xf32>
    %30 = arith.addf %24, %29 : vector<72x128xf32>
    %c0_30 = arith.constant 0 : index
    %c1_31 = arith.constant 1 : index
    %c0_32 = arith.constant 0 : index
    %31 = vector.load %arg3[%c0_30, %c1_31, %c0_32] : memref<1x82x4xf32, #tpu.memory_space<vmem>>, vector<1x72x4xf32>
    %32 = vector.shape_cast %31 : vector<1x72x4xf32> to vector<72x4xf32>
    %c5 = arith.constant 5 : index
    %c0_33 = arith.constant 0 : index
    %c0_34 = arith.constant 0 : index
    %33 = vector.load %arg5[%c5, %c0_33, %c0_34] : memref<9x4x128xf32, #tpu.memory_space<vmem>>, vector<1x4x128xf32>
    %34 = vector.shape_cast %33 : vector<1x4x128xf32> to vector<4x128xf32>
    %cst_35 = arith.constant dense<0.000000e+00> : vector<72x128xf32>
    %35 = tpu.matmul %32, %34, %cst_35 {dimension_numbers = #tpu.dot_dimension_numbers<[1], [0], [0], [1], [0, 0, 1, 1], [], []>} : vector<72x4xf32>, vector<4x128xf32>, vector<72x128xf32> -> vector<72x128xf32>
    %36 = arith.addf %30, %35 : vector<72x128xf32>
    %c0_36 = arith.constant 0 : index
    %c9 = arith.constant 9 : index
    %c0_37 = arith.constant 0 : index
    %37 = vector.load %arg1[%c0_36, %c9, %c0_37] : memref<1x82x4xf32, #tpu.memory_space<vmem>>, vector<1x72x4xf32>
    %38 = vector.shape_cast %37 : vector<1x72x4xf32> to vector<72x4xf32>
    %c6 = arith.constant 6 : index
    %c0_38 = arith.constant 0 : index
    %c0_39 = arith.constant 0 : index
    %39 = vector.load %arg5[%c6, %c0_38, %c0_39] : memref<9x4x128xf32, #tpu.memory_space<vmem>>, vector<1x4x128xf32>
    %40 = vector.shape_cast %39 : vector<1x4x128xf32> to vector<4x128xf32>
    %cst_40 = arith.constant dense<0.000000e+00> : vector<72x128xf32>
    %41 = tpu.matmul %38, %40, %cst_40 {dimension_numbers = #tpu.dot_dimension_numbers<[1], [0], [0], [1], [0, 0, 1, 1], [], []>} : vector<72x4xf32>, vector<4x128xf32>, vector<72x128xf32> -> vector<72x128xf32>
    %42 = arith.addf %36, %41 : vector<72x128xf32>
    %c0_41 = arith.constant 0 : index
    %c9_42 = arith.constant 9 : index
    %c0_43 = arith.constant 0 : index
    %43 = vector.load %arg2[%c0_41, %c9_42, %c0_43] : memref<1x82x4xf32, #tpu.memory_space<vmem>>, vector<1x72x4xf32>
    %44 = vector.shape_cast %43 : vector<1x72x4xf32> to vector<72x4xf32>
    %c7 = arith.constant 7 : index
    %c0_44 = arith.constant 0 : index
    %c0_45 = arith.constant 0 : index
    %45 = vector.load %arg5[%c7, %c0_44, %c0_45] : memref<9x4x128xf32, #tpu.memory_space<vmem>>, vector<1x4x128xf32>
    %46 = vector.shape_cast %45 : vector<1x4x128xf32> to vector<4x128xf32>
    %cst_46 = arith.constant dense<0.000000e+00> : vector<72x128xf32>
    %47 = tpu.matmul %44, %46, %cst_46 {dimension_numbers = #tpu.dot_dimension_numbers<[1], [0], [0], [1], [0, 0, 1, 1], [], []>} : vector<72x4xf32>, vector<4x128xf32>, vector<72x128xf32> -> vector<72x128xf32>
    %48 = arith.addf %42, %47 : vector<72x128xf32>
    %c0_47 = arith.constant 0 : index
    %c10 = arith.constant 10 : index
    %c0_48 = arith.constant 0 : index
    %49 = vector.load %arg1[%c0_47, %c10, %c0_48] : memref<1x82x4xf32, #tpu.memory_space<vmem>>, vector<1x72x4xf32>
    %50 = vector.shape_cast %49 : vector<1x72x4xf32> to vector<72x4xf32>
    %c8 = arith.constant 8 : index
    %c0_49 = arith.constant 0 : index
    %c0_50 = arith.constant 0 : index
    %51 = vector.load %arg5[%c8, %c0_49, %c0_50] : memref<9x4x128xf32, #tpu.memory_space<vmem>>, vector<1x4x128xf32>
    %52 = vector.shape_cast %51 : vector<1x4x128xf32> to vector<4x128xf32>
    %cst_51 = arith.constant dense<0.000000e+00> : vector<72x128xf32>
    %53 = tpu.matmul %50, %52, %cst_51 {dimension_numbers = #tpu.dot_dimension_numbers<[1], [0], [0], [1], [0, 0, 1, 1], [], []>} : vector<72x4xf32>, vector<4x128xf32>, vector<72x128xf32> -> vector<72x128xf32>
    %54 = arith.addf %48, %53 : vector<72x128xf32>
    %c0_52 = arith.constant 0 : index
    %c0_53 = arith.constant 0 : index
    %c0_54 = arith.constant 0 : index
    %55 = vector.load %arg6[%c0_52, %c0_53, %c0_54] : memref<1x72x128xf32, #tpu.memory_space<vmem>>, vector<1x72x128xf32>
    %56 = vector.shape_cast %55 : vector<1x72x128xf32> to vector<72x128xf32>
    %57 = vector.shape_cast %54 : vector<72x128xf32> to vector<1x72x128xf32>
    tpu.vector_store %arg6[%c0_52, %c0_53, %c0_54], %57 {strides = array<i32>} : memref<1x72x128xf32, #tpu.memory_space<vmem>>, vector<1x72x128xf32>,
    %58 = tpu.iota {dimensions = array<i32: 0>} : vector<72x1xi32>
    %c9_i32 = arith.constant 9 : i32
    %c0_i32 = arith.constant 0 : i32
    %59 = arith.cmpi eq, %c9_i32, %c0_i32 : i32
    %c1_i32 = arith.constant 1 : i32
    %60 = arith.select %59, %c1_i32, %c9_i32 : i32
    %61 = vector.broadcast %60 : i32 to vector<72x1xi32>
    %62 = arith.remsi %58, %61 : vector<72x1xi32>
    %c0_i32_55 = arith.constant 0 : i32
    %63 = vector.broadcast %c0_i32_55 : i32 to vector<72x1xi32>
    %64 = arith.cmpi ne, %62, %63 : vector<72x1xi32>
    %c0_i32_56 = arith.constant 0 : i32
    %65 = vector.broadcast %c0_i32_56 : i32 to vector<72x1xi32>
    %66 = arith.cmpi slt, %62, %65 : vector<72x1xi32>
    %c0_i32_57 = arith.constant 0 : i32
    %67 = arith.cmpi slt, %60, %c0_i32_57 : i32
    %68 = vector.broadcast %67 : i1 to vector<72x1xi1>
    %69 = vector.broadcast %68 : vector<72x1xi1> to vector<72x1xi1>
    %70 = arith.xori %66, %69 : vector<72x1xi1>
    %71 = arith.andi %70, %64 : vector<72x1xi1>
    %72 = vector.broadcast %60 : i32 to vector<72x1xi32>
    %73 = arith.addi %62, %72 : vector<72x1xi32>
    %74 = arith.select %71, %73, %62 : vector<72x1xi1>, vector<72x1xi32>
    %c8_i32 = arith.constant 8 : i32
    %75 = vector.broadcast %c8_i32 : i32 to vector<72x1xi32>
    %76 = arith.cmpi slt, %74, %75 : vector<72x1xi32>
    %cst_58 = arith.constant 0.000000e+00 : f32
    %77 = vector.shape_cast %76 : vector<72x1xi1> to vector<72x1xi1>
    %78 = vector.broadcast %77 : vector<72x1xi1> to vector<72x128xi1>
    %79 = vector.broadcast %cst_58 : f32 to vector<72x128xf32>
    %80 = arith.select %78, %54, %79 : vector<72x128xi1>, vector<72x128xf32>
    %cst_59 = arith.constant dense<0.000000e+00> : vector<128xf32>
    %81 = vector.multi_reduction <add>, %80, %cst_59 [0] : vector<72x128xf32> to vector<128xf32>
    %82 = vector.shape_cast %81 : vector<128xf32> to vector<1x128xf32>
    %c0_60 = arith.constant 0 : index
    %c0_61 = arith.constant 0 : index
    %c0_62 = arith.constant 0 : index
    %83 = vector.load %arg7[%c0_60, %c0_61, %c0_62] : memref<1x2x128xf32, #tpu.memory_space<vmem>>, vector<1x1x128xf32>
    %84 = vector.shape_cast %83 : vector<1x1x128xf32> to vector<1x128xf32>
    %85 = vector.shape_cast %82 : vector<1x128xf32> to vector<1x1x128xf32>
    tpu.vector_store %arg7[%c0_60, %c0_61, %c0_62], %85 {strides = array<i32>} : memref<1x2x128xf32, #tpu.memory_space<vmem>>, vector<1x1x128xf32>,
    %86 = arith.mulf %80, %80 : vector<72x128xf32>
    %cst_63 = arith.constant dense<0.000000e+00> : vector<128xf32>
    %87 = vector.multi_reduction <add>, %86, %cst_63 [0] : vector<72x128xf32> to vector<128xf32>
    %88 = vector.shape_cast %87 : vector<128xf32> to vector<1x128xf32>
    %c0_64 = arith.constant 0 : index
    %c1_65 = arith.constant 1 : index
    %c0_66 = arith.constant 0 : index
    %89 = vector.load %arg7[%c0_64, %c1_65, %c0_66] : memref<1x2x128xf32, #tpu.memory_space<vmem>>, vector<1x1x128xf32>
    %90 = vector.shape_cast %89 : vector<1x1x128xf32> to vector<1x128xf32>
    %91 = vector.shape_cast %88 : vector<1x128xf32> to vector<1x1x128xf32>
    tpu.vector_store %arg7[%c0_64, %c1_65, %c0_66], %91 {strides = array<i32>} : memref<1x2x128xf32, #tpu.memory_space<vmem>>, vector<1x1x128xf32>,
    return
  }
  func.func @transform_0(%arg0: i32) -> (i32, i32, i32) {
    %c0_i32 = arith.constant 0 : i32
    %c0_i32_0 = arith.constant 0 : i32
    %c0_i32_1 = arith.constant 0 : i32
    return %arg0, %c0_i32, %c0_i32_0 : i32, i32, i32
  }
  func.func @transform_1(%arg0: i32) -> (i32, i32, i32) {
    %c0_i32 = arith.constant 0 : i32
    %c0_i32_0 = arith.constant 0 : i32
    %c0_i32_1 = arith.constant 0 : i32
    return %arg0, %c0_i32, %c0_i32_0 : i32, i32, i32
  }
  func.func @transform_2(%arg0: i32) -> (i32, i32, i32) {
    %c0_i32 = arith.constant 0 : i32
    %c0_i32_0 = arith.constant 0 : i32
    %c0_i32_1 = arith.constant 0 : i32
    return %arg0, %c0_i32, %c0_i32_0 : i32, i32, i32
  }
  func.func @transform_3(%arg0: i32) -> (i32, i32, i32) {
    %c0_i32 = arith.constant 0 : i32
    %c0_i32_0 = arith.constant 0 : i32
    %c0_i32_1 = arith.constant 0 : i32
    return %arg0, %c0_i32, %c0_i32_0 : i32, i32, i32
  }
  func.func @transform_4(%arg0: i32) -> (i32, i32, i32) {
    %c0_i32 = arith.constant 0 : i32
    %c0_i32_0 = arith.constant 0 : i32
    %c0_i32_1 = arith.constant 0 : i32
    %c0_i32_2 = arith.constant 0 : i32
    return %c0_i32, %c0_i32_0, %c0_i32_1 : i32, i32, i32
  }
  func.func @transform_5(%arg0: i32) -> (i32, i32, i32) {
    %c0_i32 = arith.constant 0 : i32
    %c0_i32_0 = arith.constant 0 : i32
    %c0_i32_1 = arith.constant 0 : i32
    return %arg0, %c0_i32, %c0_i32_0 : i32, i32, i32
  }
  func.func @transform_6(%arg0: i32) -> (i32, i32, i32) {
    %c0_i32 = arith.constant 0 : i32
    %c0_i32_0 = arith.constant 0 : i32
    %c0_i32_1 = arith.constant 0 : i32
    return %arg0, %c0_i32, %c0_i32_0 : i32, i32, i32
  }
}

module attributes {stable_mosaic.version = 11 : i64} {
  func.func @_conv3x3_kernel(%arg0: i32, %arg1: memref<1x102x128xf32, #tpu.memory_space<vmem>>, %arg2: memref<9x128x128xf32, #tpu.memory_space<vmem>>, %arg3: memref<1x80x128xf32, #tpu.memory_space<vmem>>, %arg4: memref<1x2x128xf32, #tpu.memory_space<vmem>>) attributes {dimension_semantics = [#tpu.dimension_semantics<parallel>], iteration_bounds = array<i64: 2>, scalar_prefetch = 0 : i64, scratch_operands = 0 : i64, tpu.core_type = #tpu.core_type<tc>, window_params = [{transform_indices = @transform_0, window_bounds = array<i64: 1, 102, 128>}, {pipeline_mode = #tpu.pipeline_mode<synchronous>, transform_indices = @transform_1, window_bounds = array<i64: 9, 128, 128>}, {transform_indices = @transform_2, window_bounds = array<i64: 1, 80, 128>}, {transform_indices = @transform_3, window_bounds = array<i64: 1, 2, 128>}]} {
    %cst = arith.constant 0.000000e+00 : f32
    %0 = vector.broadcast %cst : f32 to vector<80x128xf32>
    %c0 = arith.constant 0 : index
    %c0_0 = arith.constant 0 : index
    %c0_1 = arith.constant 0 : index
    %1 = vector.load %arg1[%c0, %c0_0, %c0_1] : memref<1x102x128xf32, #tpu.memory_space<vmem>>, vector<1x80x128xf32>
    %2 = vector.shape_cast %1 : vector<1x80x128xf32> to vector<80x128xf32>
    %c0_2 = arith.constant 0 : index
    %c0_3 = arith.constant 0 : index
    %c0_4 = arith.constant 0 : index
    %3 = vector.load %arg2[%c0_2, %c0_3, %c0_4] : memref<9x128x128xf32, #tpu.memory_space<vmem>>, vector<1x128x128xf32>
    %4 = vector.shape_cast %3 : vector<1x128x128xf32> to vector<128x128xf32>
    %cst_5 = arith.constant dense<0.000000e+00> : vector<80x128xf32>
    %5 = tpu.matmul %2, %4, %cst_5 {dimension_numbers = #tpu.dot_dimension_numbers<[1], [0], [0], [1], [0, 0, 1, 1], [], []>} : vector<80x128xf32>, vector<128x128xf32>, vector<80x128xf32> -> vector<80x128xf32>
    %6 = arith.addf %0, %5 : vector<80x128xf32>
    %c0_6 = arith.constant 0 : index
    %c1 = arith.constant 1 : index
    %c0_7 = arith.constant 0 : index
    %7 = vector.load %arg1[%c0_6, %c1, %c0_7] : memref<1x102x128xf32, #tpu.memory_space<vmem>>, vector<1x80x128xf32>
    %8 = vector.shape_cast %7 : vector<1x80x128xf32> to vector<80x128xf32>
    %c1_8 = arith.constant 1 : index
    %c0_9 = arith.constant 0 : index
    %c0_10 = arith.constant 0 : index
    %9 = vector.load %arg2[%c1_8, %c0_9, %c0_10] : memref<9x128x128xf32, #tpu.memory_space<vmem>>, vector<1x128x128xf32>
    %10 = vector.shape_cast %9 : vector<1x128x128xf32> to vector<128x128xf32>
    %cst_11 = arith.constant dense<0.000000e+00> : vector<80x128xf32>
    %11 = tpu.matmul %8, %10, %cst_11 {dimension_numbers = #tpu.dot_dimension_numbers<[1], [0], [0], [1], [0, 0, 1, 1], [], []>} : vector<80x128xf32>, vector<128x128xf32>, vector<80x128xf32> -> vector<80x128xf32>
    %12 = arith.addf %6, %11 : vector<80x128xf32>
    %c0_12 = arith.constant 0 : index
    %c2 = arith.constant 2 : index
    %c0_13 = arith.constant 0 : index
    %13 = vector.load %arg1[%c0_12, %c2, %c0_13] : memref<1x102x128xf32, #tpu.memory_space<vmem>>, vector<1x80x128xf32>
    %14 = vector.shape_cast %13 : vector<1x80x128xf32> to vector<80x128xf32>
    %c2_14 = arith.constant 2 : index
    %c0_15 = arith.constant 0 : index
    %c0_16 = arith.constant 0 : index
    %15 = vector.load %arg2[%c2_14, %c0_15, %c0_16] : memref<9x128x128xf32, #tpu.memory_space<vmem>>, vector<1x128x128xf32>
    %16 = vector.shape_cast %15 : vector<1x128x128xf32> to vector<128x128xf32>
    %cst_17 = arith.constant dense<0.000000e+00> : vector<80x128xf32>
    %17 = tpu.matmul %14, %16, %cst_17 {dimension_numbers = #tpu.dot_dimension_numbers<[1], [0], [0], [1], [0, 0, 1, 1], [], []>} : vector<80x128xf32>, vector<128x128xf32>, vector<80x128xf32> -> vector<80x128xf32>
    %18 = arith.addf %12, %17 : vector<80x128xf32>
    %c0_18 = arith.constant 0 : index
    %c10 = arith.constant 10 : index
    %c0_19 = arith.constant 0 : index
    %19 = vector.load %arg1[%c0_18, %c10, %c0_19] : memref<1x102x128xf32, #tpu.memory_space<vmem>>, vector<1x80x128xf32>
    %20 = vector.shape_cast %19 : vector<1x80x128xf32> to vector<80x128xf32>
    %c3 = arith.constant 3 : index
    %c0_20 = arith.constant 0 : index
    %c0_21 = arith.constant 0 : index
    %21 = vector.load %arg2[%c3, %c0_20, %c0_21] : memref<9x128x128xf32, #tpu.memory_space<vmem>>, vector<1x128x128xf32>
    %22 = vector.shape_cast %21 : vector<1x128x128xf32> to vector<128x128xf32>
    %cst_22 = arith.constant dense<0.000000e+00> : vector<80x128xf32>
    %23 = tpu.matmul %20, %22, %cst_22 {dimension_numbers = #tpu.dot_dimension_numbers<[1], [0], [0], [1], [0, 0, 1, 1], [], []>} : vector<80x128xf32>, vector<128x128xf32>, vector<80x128xf32> -> vector<80x128xf32>
    %24 = arith.addf %18, %23 : vector<80x128xf32>
    %c0_23 = arith.constant 0 : index
    %c11 = arith.constant 11 : index
    %c0_24 = arith.constant 0 : index
    %25 = vector.load %arg1[%c0_23, %c11, %c0_24] : memref<1x102x128xf32, #tpu.memory_space<vmem>>, vector<1x80x128xf32>
    %26 = vector.shape_cast %25 : vector<1x80x128xf32> to vector<80x128xf32>
    %c4 = arith.constant 4 : index
    %c0_25 = arith.constant 0 : index
    %c0_26 = arith.constant 0 : index
    %27 = vector.load %arg2[%c4, %c0_25, %c0_26] : memref<9x128x128xf32, #tpu.memory_space<vmem>>, vector<1x128x128xf32>
    %28 = vector.shape_cast %27 : vector<1x128x128xf32> to vector<128x128xf32>
    %cst_27 = arith.constant dense<0.000000e+00> : vector<80x128xf32>
    %29 = tpu.matmul %26, %28, %cst_27 {dimension_numbers = #tpu.dot_dimension_numbers<[1], [0], [0], [1], [0, 0, 1, 1], [], []>} : vector<80x128xf32>, vector<128x128xf32>, vector<80x128xf32> -> vector<80x128xf32>
    %30 = arith.addf %24, %29 : vector<80x128xf32>
    %c0_28 = arith.constant 0 : index
    %c12 = arith.constant 12 : index
    %c0_29 = arith.constant 0 : index
    %31 = vector.load %arg1[%c0_28, %c12, %c0_29] : memref<1x102x128xf32, #tpu.memory_space<vmem>>, vector<1x80x128xf32>
    %32 = vector.shape_cast %31 : vector<1x80x128xf32> to vector<80x128xf32>
    %c5 = arith.constant 5 : index
    %c0_30 = arith.constant 0 : index
    %c0_31 = arith.constant 0 : index
    %33 = vector.load %arg2[%c5, %c0_30, %c0_31] : memref<9x128x128xf32, #tpu.memory_space<vmem>>, vector<1x128x128xf32>
    %34 = vector.shape_cast %33 : vector<1x128x128xf32> to vector<128x128xf32>
    %cst_32 = arith.constant dense<0.000000e+00> : vector<80x128xf32>
    %35 = tpu.matmul %32, %34, %cst_32 {dimension_numbers = #tpu.dot_dimension_numbers<[1], [0], [0], [1], [0, 0, 1, 1], [], []>} : vector<80x128xf32>, vector<128x128xf32>, vector<80x128xf32> -> vector<80x128xf32>
    %36 = arith.addf %30, %35 : vector<80x128xf32>
    %c0_33 = arith.constant 0 : index
    %c20 = arith.constant 20 : index
    %c0_34 = arith.constant 0 : index
    %37 = vector.load %arg1[%c0_33, %c20, %c0_34] : memref<1x102x128xf32, #tpu.memory_space<vmem>>, vector<1x80x128xf32>
    %38 = vector.shape_cast %37 : vector<1x80x128xf32> to vector<80x128xf32>
    %c6 = arith.constant 6 : index
    %c0_35 = arith.constant 0 : index
    %c0_36 = arith.constant 0 : index
    %39 = vector.load %arg2[%c6, %c0_35, %c0_36] : memref<9x128x128xf32, #tpu.memory_space<vmem>>, vector<1x128x128xf32>
    %40 = vector.shape_cast %39 : vector<1x128x128xf32> to vector<128x128xf32>
    %cst_37 = arith.constant dense<0.000000e+00> : vector<80x128xf32>
    %41 = tpu.matmul %38, %40, %cst_37 {dimension_numbers = #tpu.dot_dimension_numbers<[1], [0], [0], [1], [0, 0, 1, 1], [], []>} : vector<80x128xf32>, vector<128x128xf32>, vector<80x128xf32> -> vector<80x128xf32>
    %42 = arith.addf %36, %41 : vector<80x128xf32>
    %c0_38 = arith.constant 0 : index
    %c21 = arith.constant 21 : index
    %c0_39 = arith.constant 0 : index
    %43 = vector.load %arg1[%c0_38, %c21, %c0_39] : memref<1x102x128xf32, #tpu.memory_space<vmem>>, vector<1x80x128xf32>
    %44 = vector.shape_cast %43 : vector<1x80x128xf32> to vector<80x128xf32>
    %c7 = arith.constant 7 : index
    %c0_40 = arith.constant 0 : index
    %c0_41 = arith.constant 0 : index
    %45 = vector.load %arg2[%c7, %c0_40, %c0_41] : memref<9x128x128xf32, #tpu.memory_space<vmem>>, vector<1x128x128xf32>
    %46 = vector.shape_cast %45 : vector<1x128x128xf32> to vector<128x128xf32>
    %cst_42 = arith.constant dense<0.000000e+00> : vector<80x128xf32>
    %47 = tpu.matmul %44, %46, %cst_42 {dimension_numbers = #tpu.dot_dimension_numbers<[1], [0], [0], [1], [0, 0, 1, 1], [], []>} : vector<80x128xf32>, vector<128x128xf32>, vector<80x128xf32> -> vector<80x128xf32>
    %48 = arith.addf %42, %47 : vector<80x128xf32>
    %c0_43 = arith.constant 0 : index
    %c22 = arith.constant 22 : index
    %c0_44 = arith.constant 0 : index
    %49 = vector.load %arg1[%c0_43, %c22, %c0_44] : memref<1x102x128xf32, #tpu.memory_space<vmem>>, vector<1x80x128xf32>
    %50 = vector.shape_cast %49 : vector<1x80x128xf32> to vector<80x128xf32>
    %c8 = arith.constant 8 : index
    %c0_45 = arith.constant 0 : index
    %c0_46 = arith.constant 0 : index
    %51 = vector.load %arg2[%c8, %c0_45, %c0_46] : memref<9x128x128xf32, #tpu.memory_space<vmem>>, vector<1x128x128xf32>
    %52 = vector.shape_cast %51 : vector<1x128x128xf32> to vector<128x128xf32>
    %cst_47 = arith.constant dense<0.000000e+00> : vector<80x128xf32>
    %53 = tpu.matmul %50, %52, %cst_47 {dimension_numbers = #tpu.dot_dimension_numbers<[1], [0], [0], [1], [0, 0, 1, 1], [], []>} : vector<80x128xf32>, vector<128x128xf32>, vector<80x128xf32> -> vector<80x128xf32>
    %54 = arith.addf %48, %53 : vector<80x128xf32>
    %c0_48 = arith.constant 0 : index
    %c0_49 = arith.constant 0 : index
    %c0_50 = arith.constant 0 : index
    %55 = vector.load %arg3[%c0_48, %c0_49, %c0_50] : memref<1x80x128xf32, #tpu.memory_space<vmem>>, vector<1x80x128xf32>
    %56 = vector.shape_cast %55 : vector<1x80x128xf32> to vector<80x128xf32>
    %57 = vector.shape_cast %54 : vector<80x128xf32> to vector<1x80x128xf32>
    tpu.vector_store %arg3[%c0_48, %c0_49, %c0_50], %57 {strides = array<i32>} : memref<1x80x128xf32, #tpu.memory_space<vmem>>, vector<1x80x128xf32>,
    %58 = tpu.iota {dimensions = array<i32: 0>} : vector<80x1xi32>
    %c10_i32 = arith.constant 10 : i32
    %c0_i32 = arith.constant 0 : i32
    %59 = arith.cmpi eq, %c10_i32, %c0_i32 : i32
    %c1_i32 = arith.constant 1 : i32
    %60 = arith.select %59, %c1_i32, %c10_i32 : i32
    %61 = vector.broadcast %60 : i32 to vector<80x1xi32>
    %62 = arith.remsi %58, %61 : vector<80x1xi32>
    %c0_i32_51 = arith.constant 0 : i32
    %63 = vector.broadcast %c0_i32_51 : i32 to vector<80x1xi32>
    %64 = arith.cmpi ne, %62, %63 : vector<80x1xi32>
    %c0_i32_52 = arith.constant 0 : i32
    %65 = vector.broadcast %c0_i32_52 : i32 to vector<80x1xi32>
    %66 = arith.cmpi slt, %62, %65 : vector<80x1xi32>
    %c0_i32_53 = arith.constant 0 : i32
    %67 = arith.cmpi slt, %60, %c0_i32_53 : i32
    %68 = vector.broadcast %67 : i1 to vector<80x1xi1>
    %69 = vector.broadcast %68 : vector<80x1xi1> to vector<80x1xi1>
    %70 = arith.xori %66, %69 : vector<80x1xi1>
    %71 = arith.andi %70, %64 : vector<80x1xi1>
    %72 = vector.broadcast %60 : i32 to vector<80x1xi32>
    %73 = arith.addi %62, %72 : vector<80x1xi32>
    %74 = arith.select %71, %73, %62 : vector<80x1xi1>, vector<80x1xi32>
    %c8_i32 = arith.constant 8 : i32
    %75 = vector.broadcast %c8_i32 : i32 to vector<80x1xi32>
    %76 = arith.cmpi slt, %74, %75 : vector<80x1xi32>
    %cst_54 = arith.constant 0.000000e+00 : f32
    %77 = vector.shape_cast %76 : vector<80x1xi1> to vector<80x1xi1>
    %78 = vector.broadcast %77 : vector<80x1xi1> to vector<80x128xi1>
    %79 = vector.broadcast %cst_54 : f32 to vector<80x128xf32>
    %80 = arith.select %78, %54, %79 : vector<80x128xi1>, vector<80x128xf32>
    %cst_55 = arith.constant dense<0.000000e+00> : vector<128xf32>
    %81 = vector.multi_reduction <add>, %80, %cst_55 [0] : vector<80x128xf32> to vector<128xf32>
    %82 = vector.shape_cast %81 : vector<128xf32> to vector<1x128xf32>
    %c0_56 = arith.constant 0 : index
    %c0_57 = arith.constant 0 : index
    %c0_58 = arith.constant 0 : index
    %83 = vector.load %arg4[%c0_56, %c0_57, %c0_58] : memref<1x2x128xf32, #tpu.memory_space<vmem>>, vector<1x1x128xf32>
    %84 = vector.shape_cast %83 : vector<1x1x128xf32> to vector<1x128xf32>
    %85 = vector.shape_cast %82 : vector<1x128xf32> to vector<1x1x128xf32>
    tpu.vector_store %arg4[%c0_56, %c0_57, %c0_58], %85 {strides = array<i32>} : memref<1x2x128xf32, #tpu.memory_space<vmem>>, vector<1x1x128xf32>,
    %86 = arith.mulf %80, %80 : vector<80x128xf32>
    %cst_59 = arith.constant dense<0.000000e+00> : vector<128xf32>
    %87 = vector.multi_reduction <add>, %86, %cst_59 [0] : vector<80x128xf32> to vector<128xf32>
    %88 = vector.shape_cast %87 : vector<128xf32> to vector<1x128xf32>
    %c0_60 = arith.constant 0 : index
    %c1_61 = arith.constant 1 : index
    %c0_62 = arith.constant 0 : index
    %89 = vector.load %arg4[%c0_60, %c1_61, %c0_62] : memref<1x2x128xf32, #tpu.memory_space<vmem>>, vector<1x1x128xf32>
    %90 = vector.shape_cast %89 : vector<1x1x128xf32> to vector<1x128xf32>
    %91 = vector.shape_cast %88 : vector<1x128xf32> to vector<1x1x128xf32>
    tpu.vector_store %arg4[%c0_60, %c1_61, %c0_62], %91 {strides = array<i32>} : memref<1x2x128xf32, #tpu.memory_space<vmem>>, vector<1x1x128xf32>,
    return
  }
  func.func @transform_0(%arg0: i32) -> (i32, i32, i32) {
    %c0_i32 = arith.constant 0 : i32
    %c0_i32_0 = arith.constant 0 : i32
    %c0_i32_1 = arith.constant 0 : i32
    return %arg0, %c0_i32, %c0_i32_0 : i32, i32, i32
  }
  func.func @transform_1(%arg0: i32) -> (i32, i32, i32) {
    %c0_i32 = arith.constant 0 : i32
    %c0_i32_0 = arith.constant 0 : i32
    %c0_i32_1 = arith.constant 0 : i32
    %c0_i32_2 = arith.constant 0 : i32
    return %c0_i32, %c0_i32_0, %c0_i32_1 : i32, i32, i32
  }
  func.func @transform_2(%arg0: i32) -> (i32, i32, i32) {
    %c0_i32 = arith.constant 0 : i32
    %c0_i32_0 = arith.constant 0 : i32
    %c0_i32_1 = arith.constant 0 : i32
    return %arg0, %c0_i32, %c0_i32_0 : i32, i32, i32
  }
  func.func @transform_3(%arg0: i32) -> (i32, i32, i32) {
    %c0_i32 = arith.constant 0 : i32
    %c0_i32_0 = arith.constant 0 : i32
    %c0_i32_1 = arith.constant 0 : i32
    return %arg0, %c0_i32, %c0_i32_0 : i32, i32, i32
  }
}

module attributes {stable_mosaic.version = 11 : i64} {
  func.func @_matmul_stats_kernel(%arg0: i32, %arg1: memref<128x4xf32, #tpu.memory_space<vmem>>, %arg2: memref<4x128xf32, #tpu.memory_space<vmem>>, %arg3: memref<128x128xf32, #tpu.memory_space<vmem>>, %arg4: memref<1x2x128xf32, #tpu.memory_space<vmem>>) attributes {dimension_semantics = [#tpu.dimension_semantics<parallel>], iteration_bounds = array<i64: 1>, scalar_prefetch = 0 : i64, scratch_operands = 0 : i64, tpu.core_type = #tpu.core_type<tc>, window_params = [{transform_indices = @transform_0, window_bounds = array<i64: 128, 4>}, {pipeline_mode = #tpu.pipeline_mode<synchronous>, transform_indices = @transform_1, window_bounds = array<i64: 4, 128>}, {transform_indices = @transform_2, window_bounds = array<i64: 128, 128>}, {transform_indices = @transform_3, window_bounds = array<i64: 1, 2, 128>}]} {
    %c0 = arith.constant 0 : index
    %c0_0 = arith.constant 0 : index
    %0 = vector.load %arg1[%c0, %c0_0] : memref<128x4xf32, #tpu.memory_space<vmem>>, vector<128x4xf32>
    %c0_1 = arith.constant 0 : index
    %c0_2 = arith.constant 0 : index
    %1 = vector.load %arg2[%c0_1, %c0_2] : memref<4x128xf32, #tpu.memory_space<vmem>>, vector<4x128xf32>
    %cst = arith.constant dense<0.000000e+00> : vector<128x128xf32>
    %2 = tpu.matmul %0, %1, %cst {dimension_numbers = #tpu.dot_dimension_numbers<[1], [0], [0], [1], [0, 0, 1, 1], [], []>} : vector<128x4xf32>, vector<4x128xf32>, vector<128x128xf32> -> vector<128x128xf32>
    %c0_3 = arith.constant 0 : index
    %c0_4 = arith.constant 0 : index
    %3 = vector.load %arg3[%c0_3, %c0_4] : memref<128x128xf32, #tpu.memory_space<vmem>>, vector<128x128xf32>
    tpu.vector_store %arg3[%c0_3, %c0_4], %2 {strides = array<i32>} : memref<128x128xf32, #tpu.memory_space<vmem>>, vector<128x128xf32>,
    %cst_5 = arith.constant dense<0.000000e+00> : vector<128xf32>
    %4 = vector.multi_reduction <add>, %2, %cst_5 [0] : vector<128x128xf32> to vector<128xf32>
    %5 = vector.shape_cast %4 : vector<128xf32> to vector<1x128xf32>
    %c0_6 = arith.constant 0 : index
    %c0_7 = arith.constant 0 : index
    %c0_8 = arith.constant 0 : index
    %6 = vector.load %arg4[%c0_6, %c0_7, %c0_8] : memref<1x2x128xf32, #tpu.memory_space<vmem>>, vector<1x1x128xf32>
    %7 = vector.shape_cast %6 : vector<1x1x128xf32> to vector<1x128xf32>
    %8 = vector.shape_cast %5 : vector<1x128xf32> to vector<1x1x128xf32>
    tpu.vector_store %arg4[%c0_6, %c0_7, %c0_8], %8 {strides = array<i32>} : memref<1x2x128xf32, #tpu.memory_space<vmem>>, vector<1x1x128xf32>,
    %9 = arith.mulf %2, %2 : vector<128x128xf32>
    %cst_9 = arith.constant dense<0.000000e+00> : vector<128xf32>
    %10 = vector.multi_reduction <add>, %9, %cst_9 [0] : vector<128x128xf32> to vector<128xf32>
    %11 = vector.shape_cast %10 : vector<128xf32> to vector<1x128xf32>
    %c0_10 = arith.constant 0 : index
    %c1 = arith.constant 1 : index
    %c0_11 = arith.constant 0 : index
    %12 = vector.load %arg4[%c0_10, %c1, %c0_11] : memref<1x2x128xf32, #tpu.memory_space<vmem>>, vector<1x1x128xf32>
    %13 = vector.shape_cast %12 : vector<1x1x128xf32> to vector<1x128xf32>
    %14 = vector.shape_cast %11 : vector<1x128xf32> to vector<1x1x128xf32>
    tpu.vector_store %arg4[%c0_10, %c1, %c0_11], %14 {strides = array<i32>} : memref<1x2x128xf32, #tpu.memory_space<vmem>>, vector<1x1x128xf32>,
    return
  }
  func.func @transform_0(%arg0: i32) -> (i32, i32) {
    %c0_i32 = arith.constant 0 : i32
    %c0_i32_0 = arith.constant 0 : i32
    return %arg0, %c0_i32 : i32, i32
  }
  func.func @transform_1(%arg0: i32) -> (i32, i32) {
    %c0_i32 = arith.constant 0 : i32
    %c0_i32_0 = arith.constant 0 : i32
    %c0_i32_1 = arith.constant 0 : i32
    return %c0_i32, %c0_i32_0 : i32, i32
  }
  func.func @transform_2(%arg0: i32) -> (i32, i32) {
    %c0_i32 = arith.constant 0 : i32
    %c0_i32_0 = arith.constant 0 : i32
    return %arg0, %c0_i32 : i32, i32
  }
  func.func @transform_3(%arg0: i32) -> (i32, i32, i32) {
    %c0_i32 = arith.constant 0 : i32
    %c0_i32_0 = arith.constant 0 : i32
    %c0_i32_1 = arith.constant 0 : i32
    return %arg0, %c0_i32, %c0_i32_0 : i32, i32, i32
  }
}

module attributes {stable_mosaic.version = 11 : i64} {
  func.func @_bn_add_relu_kernel(%arg0: i32, %arg1: i32, %arg2: memref<1x8x10x128xf32, #tpu.memory_space<vmem>>, %arg3: memref<1x8x8x128xf32, #tpu.memory_space<vmem>>, %arg4: memref<3x1x1x128xf32, #tpu.memory_space<vmem>>, %arg5: memref<1x8x8x128xf32, #tpu.memory_space<vmem>>) attributes {dimension_semantics = [#tpu.dimension_semantics<parallel>, #tpu.dimension_semantics<parallel>], iteration_bounds = array<i64: 2, 1>, scalar_prefetch = 0 : i64, scratch_operands = 0 : i64, tpu.core_type = #tpu.core_type<tc>, window_params = [{transform_indices = @transform_0, window_bounds = array<i64: 1, 8, 10, 128>}, {transform_indices = @transform_1, window_bounds = array<i64: 1, 8, 8, 128>}, {pipeline_mode = #tpu.pipeline_mode<synchronous>, transform_indices = @transform_2, window_bounds = array<i64: 3, 1, 1, 128>}, {transform_indices = @transform_3, window_bounds = array<i64: 1, 8, 8, 128>}]} {
    %c0 = arith.constant 0 : index
    %c0_0 = arith.constant 0 : index
    %c0_1 = arith.constant 0 : index
    %c0_2 = arith.constant 0 : index
    %0 = vector.load %arg2[%c0, %c0_0, %c0_1, %c0_2] : memref<1x8x10x128xf32, #tpu.memory_space<vmem>>, vector<1x8x8x128xf32>
    %1 = vector.shape_cast %0 : vector<1x8x8x128xf32> to vector<8x8x128xf32>
    %c0_3 = arith.constant 0 : index
    %c0_4 = arith.constant 0 : index
    %c0_5 = arith.constant 0 : index
    %c0_6 = arith.constant 0 : index
    %2 = vector.load %arg3[%c0_3, %c0_4, %c0_5, %c0_6] : memref<1x8x8x128xf32, #tpu.memory_space<vmem>>, vector<1x8x8x128xf32>
    %3 = vector.shape_cast %2 : vector<1x8x8x128xf32> to vector<8x8x128xf32>
    %c0_7 = arith.constant 0 : index
    %c0_8 = arith.constant 0 : index
    %c0_9 = arith.constant 0 : index
    %c0_10 = arith.constant 0 : index
    %4 = vector.load %arg4[%c0_7, %c0_8, %c0_9, %c0_10] : memref<3x1x1x128xf32, #tpu.memory_space<vmem>>, vector<1x1x1x128xf32>
    %5 = vector.shape_cast %4 : vector<1x1x1x128xf32> to vector<1x1x128xf32>
    %c1 = arith.constant 1 : index
    %c0_11 = arith.constant 0 : index
    %c0_12 = arith.constant 0 : index
    %c0_13 = arith.constant 0 : index
    %6 = vector.load %arg4[%c1, %c0_11, %c0_12, %c0_13] : memref<3x1x1x128xf32, #tpu.memory_space<vmem>>, vector<1x1x1x128xf32>
    %7 = vector.shape_cast %6 : vector<1x1x1x128xf32> to vector<1x1x128xf32>
    %c2 = arith.constant 2 : index
    %c0_14 = arith.constant 0 : index
    %c0_15 = arith.constant 0 : index
    %c0_16 = arith.constant 0 : index
    %8 = vector.load %arg4[%c2, %c0_14, %c0_15, %c0_16] : memref<3x1x1x128xf32, #tpu.memory_space<vmem>>, vector<1x1x1x128xf32>
    %9 = vector.shape_cast %8 : vector<1x1x1x128xf32> to vector<1x1x128xf32>
    %10 = vector.broadcast %5 : vector<1x1x128xf32> to vector<8x8x128xf32>
    %11 = arith.mulf %1, %10 : vector<8x8x128xf32>
    %12 = vector.broadcast %7 : vector<1x1x128xf32> to vector<8x8x128xf32>
    %13 = arith.mulf %3, %12 : vector<8x8x128xf32>
    %14 = arith.addf %11, %13 : vector<8x8x128xf32>
    %15 = vector.broadcast %9 : vector<1x1x128xf32> to vector<8x8x128xf32>
    %16 = arith.addf %14, %15 : vector<8x8x128xf32>
    %cst = arith.constant 0.000000e+00 : f32
    %17 = vector.broadcast %cst : f32 to vector<8x8x128xf32>
    %18 = arith.maximumf %16, %17 : vector<8x8x128xf32>
    %c0_17 = arith.constant 0 : index
    %c0_18 = arith.constant 0 : index
    %c0_19 = arith.constant 0 : index
    %c0_20 = arith.constant 0 : index
    %19 = vector.load %arg5[%c0_17, %c0_18, %c0_19, %c0_20] : memref<1x8x8x128xf32, #tpu.memory_space<vmem>>, vector<1x8x8x128xf32>
    %20 = vector.shape_cast %19 : vector<1x8x8x128xf32> to vector<8x8x128xf32>
    %21 = vector.shape_cast %18 : vector<8x8x128xf32> to vector<1x8x8x128xf32>
    tpu.vector_store %arg5[%c0_17, %c0_18, %c0_19, %c0_20], %21 {strides = array<i32>} : memref<1x8x8x128xf32, #tpu.memory_space<vmem>>, vector<1x8x8x128xf32>,
    return
  }
  func.func @transform_0(%arg0: i32, %arg1: i32) -> (i32, i32, i32, i32) {
    %c0_i32 = arith.constant 0 : i32
    %c0_i32_0 = arith.constant 0 : i32
    %c0_i32_1 = arith.constant 0 : i32
    return %arg0, %arg1, %c0_i32, %c0_i32_0 : i32, i32, i32, i32
  }
  func.func @transform_1(%arg0: i32, %arg1: i32) -> (i32, i32, i32, i32) {
    %c0_i32 = arith.constant 0 : i32
    %c0_i32_0 = arith.constant 0 : i32
    %c0_i32_1 = arith.constant 0 : i32
    return %arg0, %arg1, %c0_i32, %c0_i32_0 : i32, i32, i32, i32
  }
  func.func @transform_2(%arg0: i32, %arg1: i32) -> (i32, i32, i32, i32) {
    %c0_i32 = arith.constant 0 : i32
    %c0_i32_0 = arith.constant 0 : i32
    %c0_i32_1 = arith.constant 0 : i32
    %c0_i32_2 = arith.constant 0 : i32
    %c0_i32_3 = arith.constant 0 : i32
    return %c0_i32, %c0_i32_0, %c0_i32_1, %c0_i32_2 : i32, i32, i32, i32
  }
  func.func @transform_3(%arg0: i32, %arg1: i32) -> (i32, i32, i32, i32) {
    %c0_i32 = arith.constant 0 : i32
    %c0_i32_0 = arith.constant 0 : i32
    %c0_i32_1 = arith.constant 0 : i32
    return %arg0, %arg1, %c0_i32, %c0_i32_0 : i32, i32, i32, i32
  }
}

</mosaic_0001>

<llo_original>
// kernel: block_forward.6
$region0: #{block_forward.6}
  #allocation0 [shape = 'u32[]', space=smem, size = 0x4, offset = 0x4, fixed_abs, tag = 'smem constant byte address 0x4 - core index']
  #allocation1 [shape = 'u32[144,128]{1,0:T(1,128)}', space=vmem, size = 0x12000, scoped, tag = 'internal scratch']
  %s0 = inlined_call_operand.vmem [shape: f32[128,4], index: 0, kind: input, shape index: {}]
  %s1 = inlined_call_operand.vmem [shape: f32[4,128], index: 1, kind: input, shape index: {}]
  %s2 = inlined_call_operand.vmem [shape: f32[128,128], index: 2, kind: output, shape index: {0}]
  %s3 = inlined_call_operand.vmem [shape: f32[1,2,128], index: 3, kind: output, shape index: {1}]
  %4 = xla_tuple %s2, %s3
  %s5 = sld [smem:[#allocation0]]
  $region26: #{block_forward.6} parent=0
    _
  %s7 = ssub.s32 1, %s5
  %s8 = scalar_select 0, %s7, %s5
  // Predicated region
  $region2: #{block_forward.6} parent=0 // pred_check
    _
  $region3: #{block_forward.6} parent=0 // pred_check_branch
    %10 = sbr.rel (0) target = $region5
  $region4: #{block_forward.6} parent=0 // pred_region
    _
  $region5: #{block_forward.6} parent=0 // pred_fallthru
    _
  // Predicated region
  $region6: #{block_forward.6} parent=0 // pred_check
    _
  $region7: #{block_forward.6} parent=0 // pred_check_branch
    %12 = sbr.rel (0) target = $region9
  $region8: #{block_forward.6} parent=0 // pred_region
    _
  $region9: #{block_forward.6} parent=0 // pred_fallthru
    _
  %v13 = vld [vmem:[%s0] sm:$0xff]
  %v14 = vld [vmem:[%s0 + $0x8] sm:$0xff]
  %v15 = vld [vmem:[%s0 + $0x10] sm:$0xff]
  %v16 = vld [vmem:[%s0 + $0x18] sm:$0xff]
  %v17 = vld [vmem:[%s0 + $0x20] sm:$0xff]
  %v18 = vld [vmem:[%s0 + $0x28] sm:$0xff]
  %v19 = vld [vmem:[%s0 + $0x30] sm:$0xff]
  %v20 = vld [vmem:[%s0 + $0x38] sm:$0xff]
  %v21 = vld [vmem:[%s0 + $0x40] sm:$0xff]
  %v22 = vld [vmem:[%s0 + $0x48] sm:$0xff]
  %v23 = vld [vmem:[%s0 + $0x50] sm:$0xff]
  %v24 = vld [vmem:[%s0 + $0x58] sm:$0xff]
  %v25 = vld [vmem:[%s0 + $0x60] sm:$0xff]
  %v26 = vld [vmem:[%s0 + $0x68] sm:$0xff]
  %v27 = vld [vmem:[%s0 + $0x70] sm:$0xff]
  %v28 = vld [vmem:[%s0 + $0x78] sm:$0xff]
  %v29 = vld [vmem:[%s1] sm:$0xf]
  %vm30 = vcmask 31744
  %v32 = vsel %vm30, %v13, 0
  %v35 = vsel %vm30, %v14, 0
  %v38 = vsel %vm30, %v15, 0
  %v41 = vsel %vm30, %v16, 0
  %v44 = vsel %vm30, %v17, 0
  %v47 = vsel %vm30, %v18, 0
  %v50 = vsel %vm30, %v19, 0
  %v53 = vsel %vm30, %v20, 0
  %v56 = vsel %vm30, %v21, 0
  %v59 = vsel %vm30, %v22, 0
  %v62 = vsel %vm30, %v23, 0
  %v65 = vsel %vm30, %v24, 0
  %v68 = vsel %vm30, %v25, 0
  %v71 = vsel %vm30, %v26, 0
  %v74 = vsel %vm30, %v27, 0
  %v77 = vsel %vm30, %v28, 0
  %vm79 = vcmask 1043456
  %v81 = vsel %vm79, %v29, 0
  %83 = vmatprep.subr.mxu0 0.0
  %84 = vmatpush1.msra.mxu0 %v81
  %85 = vmatprep.subr.mxu0 0.0
  %86 = vmatpush1.msra.mxu0 0.0
  %87 = vmatprep.subr.mxu0 0.0
  %88 = vmatpush1.msra.mxu0 0.0
  %89 = vmatprep.subr.mxu0 0.0
  %90 = vmatpush1.msra.mxu0 0.0
  %91 = vmatprep.subr.mxu0 0.0
  %92 = vmatpush1.msra.mxu0 0.0
  %93 = vmatprep.subr.mxu0 0.0
  %94 = vmatpush1.msra.mxu0 0.0
  %95 = vmatprep.subr.mxu0 0.0
  %96 = vmatpush1.msra.mxu0 0.0
  %97 = vmatprep.subr.mxu0 0.0
  %98 = vmatpush1.msra.mxu0 0.0
  %99 = vmatprep.subr.mxu0 0.0
  %100 = vmatpush1.msra.mxu0 0.0
  %101 = vmatprep.subr.mxu0 0.0
  %102 = vmatpush1.msra.mxu0 0.0
  %103 = vmatprep.subr.mxu0 0.0
  %104 = vmatpush1.msra.mxu0 0.0
  %105 = vmatprep.subr.mxu0 0.0
  %106 = vmatpush1.msra.mxu0 0.0
  %107 = vmatprep.subr.mxu0 0.0
  %108 = vmatpush1.msra.mxu0 0.0
  %109 = vmatprep.subr.mxu0 0.0
  %110 = vmatpush1.msra.mxu0 0.0
  %111 = vmatprep.subr.mxu0 0.0
  %112 = vmatpush1.msra.mxu0 0.0
  %113 = vmatprep.subr.mxu0 0.0
  %114 = vmatpush1.msra.mxu0 0.0
  %115 = vmatprep.subr.mxu0 0.0
  %116 = vmatpush1.msra.mxu0 0.0
  %117 = vmatprep.subr.mxu0 0.0
  %118 = vmatpush1.msra.mxu0 0.0
  %119 = vmatprep.subr.mxu0 0.0
  %120 = vmatpush1.msra.mxu0 0.0
  %121 = vmatprep.subr.mxu0 0.0
  %122 = vmatpush1.msra.mxu0 0.0
  %123 = vmatprep.subr.mxu0 0.0
  %124 = vmatpush1.msra.mxu0 0.0
  %125 = vmatprep.subr.mxu0 0.0
  %126 = vmatpush1.msra.mxu0 0.0
  %127 = vmatprep.subr.mxu0 0.0
  %128 = vmatpush1.msra.mxu0 0.0
  %129 = vmatprep.subr.mxu0 0.0
  %130 = vmatpush1.msra.mxu0 0.0
  %131 = vmatprep.subr.mxu0 0.0
  %132 = vmatpush1.msra.mxu0 0.0
  %133 = vmatprep.subr.mxu0 0.0
  %134 = vmatpush1.msra.mxu0 0.0
  %135 = vmatprep.subr.mxu0 0.0
  %136 = vmatpush1.msra.mxu0 0.0
  %137 = vmatprep.subr.mxu0 0.0
  %138 = vmatpush1.msra.mxu0 0.0
  %139 = vmatprep.subr.mxu0 0.0
  %140 = vmatpush1.msra.mxu0 0.0
  %141 = vmatprep.subr.mxu0 0.0
  %142 = vmatpush1.msra.mxu0 0.0
  %143 = vmatprep.subr.mxu0 0.0
  %144 = vmatpush1.msra.mxu0 0.0
  %145 = vmatprep.subr.mxu0 0.0
  %146 = vmatpush1.msra.mxu0 0.0
  %147 = vmatprep.mubr.f32.mxu0 0.0
  %148 = vmatmul.mubr.f32.gmra.mrb[0].mxu0 %v32
  %v149 = vpop.f32.mrb[0].mxu0
  %v150 = vadd.f32 0.0, %v149
  %v151 = vpop.f32.mrb[0].mxu0
  %152 = vmatprep.mubr.f32.mxu0 0.0
  %153 = vmatmul.mubr.f32.gmra.mrb[0].mxu0 %v35
  %v154 = vpop.f32.mrb[0].mxu0
  %v155 = vadd.f32 0.0, %v154
  %v156 = vpop.f32.mrb[0].mxu0
  %157 = vmatprep.mubr.f32.mxu0 0.0
  %158 = vmatmul.mubr.f32.gmra.mrb[0].mxu0 %v38
  %v159 = vpop.f32.mrb[0].mxu0
  %v160 = vadd.f32 0.0, %v159
  %v161 = vpop.f32.mrb[0].mxu0
  %162 = vmatprep.mubr.f32.mxu0 0.0
  %163 = vmatmul.mubr.f32.gmra.mrb[0].mxu0 %v41
  %v164 = vpop.f32.mrb[0].mxu0
  %v165 = vadd.f32 0.0, %v164
  %v166 = vpop.f32.mrb[0].mxu0
  %167 = vmatprep.mubr.f32.mxu0 0.0
  %168 = vmatmul.mubr.f32.gmra.mrb[0].mxu0 %v44
  %v169 = vpop.f32.mrb[0].mxu0
  %v170 = vadd.f32 0.0, %v169
  %v171 = vpop.f32.mrb[0].mxu0
  %172 = vmatprep.mubr.f32.mxu0 0.0
  %173 = vmatmul.mubr.f32.gmra.mrb[0].mxu0 %v47
  %v174 = vpop.f32.mrb[0].mxu0
  %v175 = vadd.f32 0.0, %v174
  %v176 = vpop.f32.mrb[0].mxu0
  %177 = vmatprep.mubr.f32.mxu0 0.0
  %178 = vmatmul.mubr.f32.gmra.mrb[0].mxu0 %v50
  %v179 = vpop.f32.mrb[0].mxu0
  %v180 = vadd.f32 0.0, %v179
  %v181 = vpop.f32.mrb[0].mxu0
  %182 = vmatprep.mubr.f32.mxu0 0.0
  %183 = vmatmul.mubr.f32.gmra.mrb[0].mxu0 %v53
  %v184 = vpop.f32.mrb[0].mxu0
  %v185 = vadd.f32 0.0, %v184
  %v186 = vpop.f32.mrb[0].mxu0
  %187 = vmatprep.mubr.f32.mxu0 0.0
  %188 = vmatmul.mubr.f32.gmra.mrb[0].mxu0 %v56
  %v189 = vpop.f32.mrb[0].mxu0
  %v190 = vadd.f32 0.0, %v189
  %v191 = vpop.f32.mrb[0].mxu0
  %192 = vmatprep.mubr.f32.mxu0 0.0
  %193 = vmatmul.mubr.f32.gmra.mrb[0].mxu0 %v59
  %v194 = vpop.f32.mrb[0].mxu0
  %v195 = vadd.f32 0.0, %v194
  %v196 = vpop.f32.mrb[0].mxu0
  %197 = vmatprep.mubr.f32.mxu0 0.0
  %198 = vmatmul.mubr.f32.gmra.mrb[0].mxu0 %v62
  %v199 = vpop.f32.mrb[0].mxu0
  %v200 = vadd.f32 0.0, %v199
  %v201 = vpop.f32.mrb[0].mxu0
  %202 = vmatprep.mubr.f32.mxu0 0.0
  %203 = vmatmul.mubr.f32.gmra.mrb[0].mxu0 %v65
  %v204 = vpop.f32.mrb[0].mxu0
  %v205 = vadd.f32 0.0, %v204
  %v206 = vpop.f32.mrb[0].mxu0
  %207 = vmatprep.mubr.f32.mxu0 0.0
  %208 = vmatmul.mubr.f32.gmra.mrb[0].mxu0 %v68
  %v209 = vpop.f32.mrb[0].mxu0
  %v210 = vadd.f32 0.0, %v209
  %v211 = vpop.f32.mrb[0].mxu0
  %212 = vmatprep.mubr.f32.mxu0 0.0
  %213 = vmatmul.mubr.f32.gmra.mrb[0].mxu0 %v71
  %v214 = vpop.f32.mrb[0].mxu0
  %v215 = vadd.f32 0.0, %v214
  %v216 = vpop.f32.mrb[0].mxu0
  %217 = vmatprep.mubr.f32.mxu0 0.0
  %218 = vmatmul.mubr.f32.gmra.mrb[0].mxu0 %v74
  %v219 = vpop.f32.mrb[0].mxu0
  %v220 = vadd.f32 0.0, %v219
  %v221 = vpop.f32.mrb[0].mxu0
  %222 = vmatprep.mubr.f32.mxu0 0.0
  %223 = vmatmul.mubr.f32.gmra.mrb[0].mxu0 %v77
  %v224 = vpop.f32.mrb[0].mxu0
  %v225 = vadd.f32 0.0, %v224
  %v226 = vpop.f32.mrb[0].mxu0
  %227 = vdwg.mxu0
  %228 = vst [vmem:[%s2] sm:$0xff] %v150
  %229 = vst [vmem:[%s2 + $0x8] sm:$0xff] %v155
  %230 = vst [vmem:[%s2 + $0x10] sm:$0xff] %v160
  %231 = vst [vmem:[%s2 + $0x18] sm:$0xff] %v165
  %232 = vst [vmem:[%s2 + $0x20] sm:$0xff] %v170
  %233 = vst [vmem:[%s2 + $0x28] sm:$0xff] %v175
  %234 = vst [vmem:[%s2 + $0x30] sm:$0xff] %v180
  %235 = vst [vmem:[%s2 + $0x38] sm:$0xff] %v185
  %236 = vst [vmem:[%s2 + $0x40] sm:$0xff] %v190
  %237 = vst [vmem:[%s2 + $0x48] sm:$0xff] %v195
  %238 = vst [vmem:[%s2 + $0x50] sm:$0xff] %v200
  %239 = vst [vmem:[%s2 + $0x58] sm:$0xff] %v205
  %240 = vst [vmem:[%s2 + $0x60] sm:$0xff] %v210
  %241 = vst [vmem:[%s2 + $0x68] sm:$0xff] %v215
  %242 = vst [vmem:[%s2 + $0x70] sm:$0xff] %v220
  %243 = vst [vmem:[%s2 + $0x78] sm:$0xff] %v225
  %v244 = vadd.f32 %v150, %v155
  %v245 = vadd.f32 %v244, %v160
  %v246 = vadd.f32 %v245, %v165
  %v247 = vadd.f32 %v246, %v170
  %v248 = vadd.f32 %v247, %v175
  %v249 = vadd.f32 %v248, %v180
  %v250 = vadd.f32 %v249, %v185
  %v251 = vadd.f32 %v250, %v190
  %v252 = vadd.f32 %v251, %v195
  %v253 = vadd.f32 %v252, %v200
  %v254 = vadd.f32 %v253, %v205
  %v255 = vadd.f32 %v254, %v210
  %v256 = vadd.f32 %v255, %v215
  %v257 = vadd.f32 %v256, %v220
  %v258 = vadd.f32 %v257, %v225
  %v259 = vrot.slane %v258, 4
  %v260 = vadd.f32 %v258, %v259
  %v261 = vrot.slane %v260, 2
  %v262 = vadd.f32 %v260, %v261
  %v263 = vrot.slane %v262, 1
  %v264 = vadd.f32 %v262, %v263
  %265 = vst [vmem:[%s3] sm:$0x1] %v264
  %v266 = vmul.f32 %v150, %v150
  %v267 = vmul.f32 %v155, %v155
  %v268 = vmul.f32 %v160, %v160
  %v269 = vmul.f32 %v165, %v165
  %v270 = vmul.f32 %v170, %v170
  %v271 = vmul.f32 %v175, %v175
  %v272 = vmul.f32 %v180, %v180
  %v273 = vmul.f32 %v185, %v185
  %v274 = vmul.f32 %v190, %v190
  %v275 = vmul.f32 %v195, %v195
  %v276 = vmul.f32 %v200, %v200
  %v277 = vmul.f32 %v205, %v205
  %v278 = vmul.f32 %v210, %v210
  %v279 = vmul.f32 %v215, %v215
  %v280 = vmul.f32 %v220, %v220
  %v281 = vmul.f32 %v225, %v225
  %v282 = vadd.f32 %v266, %v267
  %v283 = vadd.f32 %v282, %v268
  %v284 = vadd.f32 %v283, %v269
  %v285 = vadd.f32 %v284, %v270
  %v286 = vadd.f32 %v285, %v271
  %v287 = vadd.f32 %v286, %v272
  %v288 = vadd.f32 %v287, %v273
  %v289 = vadd.f32 %v288, %v274
  %v290 = vadd.f32 %v289, %v275
  %v291 = vadd.f32 %v290, %v276
  %v292 = vadd.f32 %v291, %v277
  %v293 = vadd.f32 %v292, %v278
  %v294 = vadd.f32 %v293, %v279
  %v295 = vadd.f32 %v294, %v280
  %v296 = vadd.f32 %v295, %v281
  %v297 = vrot.slane %v296, 4
  %v298 = vadd.f32 %v296, %v297
  %v299 = vrot.slane %v298, 2
  %v300 = vadd.f32 %v298, %v299
  %v301 = vrot.slane %v300, 1
  %v302 = vadd.f32 %v300, %v301
  %303 = vst [vmem:[%s3 + $0x1] sm:$0x1] %v302
  // Predicated region
  $region10: #{block_forward.6} parent=0 // pred_check
    _
  $region11: #{block_forward.6} parent=0 // pred_check_branch
    %305 = sbr.rel (0) target = $region13
  $region12: #{block_forward.6} parent=0 // pred_region
    _
  $region13: #{block_forward.6} parent=0 // pred_fallthru
    _
  // Predicated region
  $region14: #{block_forward.6} parent=0 // pred_check
    _
  $region15: #{block_forward.6} parent=0 // pred_check_branch
    %307 = sbr.rel (0) target = $region17
  $region16: #{block_forward.6} parent=0 // pred_region
    _
  $region17: #{block_forward.6} parent=0 // pred_fallthru
    _
  // Predicated region
  $region18: #{block_forward.6} parent=0 // pred_check
    _
  $region19: #{block_forward.6} parent=0 // pred_check_branch
    %309 = sbr.rel (0) target = $region21
  $region20: #{block_forward.6} parent=0 // pred_region
    _
  $region21: #{block_forward.6} parent=0 // pred_fallthru
    _
  // Predicated region
  $region22: #{block_forward.6} parent=0 // pred_check
    _
  $region23: #{block_forward.6} parent=0 // pred_check_branch
    %311 = sbr.rel (0) target = $region25
  $region24: #{block_forward.6} parent=0 // pred_region
    _
  $region25: #{block_forward.6} parent=0 // pred_fallthru
    _

// kernel: block_forward.4
$region0: #{block_forward.4}
  #allocation0 [shape = 'u32[]', space=smem, size = 0x4, offset = 0x4, fixed_abs, tag = 'smem constant byte address 0x4 - core index']
  #allocation1 [shape = 'u32[144,128]{1,0:T(1,128)}', space=vmem, size = 0x12000, scoped, tag = 'internal scratch']
  %s0 = inlined_call_operand.vmem [shape: f32[2,82,4], index: 0, kind: input, shape index: {}]
  %s1 = inlined_call_operand.vmem [shape: f32[2,82,4], index: 1, kind: input, shape index: {}]
  %s2 = inlined_call_operand.vmem [shape: f32[2,82,4], index: 2, kind: input, shape index: {}]
  %s3 = inlined_call_operand.vmem [shape: f32[2,82,4], index: 3, kind: input, shape index: {}]
  %s4 = inlined_call_operand.vmem [shape: f32[9,4,128], index: 4, kind: input, shape index: {}]
  %s5 = inlined_call_operand.vmem [shape: f32[2,72,128], index: 5, kind: output, shape index: {0}]
  %s6 = inlined_call_operand.vmem [shape: f32[2,2,128], index: 6, kind: output, shape index: {1}]
  %7 = xla_tuple %s5, %s6
  %s8 = sld [smem:[#allocation0]]
  $region61: #{block_forward.4} parent=0
    _
  %s10 = ssub.s32 1, %s8
  %s11 = scalar_select 0, %s10, %s8
  loop: start=0, step=1, limit=4
  $region2: #{block_forward.4} parent=0 // loop_pre_header
    _
  $region3: #{block_forward.4} parent=0 // loop_header
    %s13 = sphi 0, %s17
    %p14 = scmp.ge.s32.totalorder %s13, 4
    %s23 = sphi 0, %s25
    %s26 = sphi 0, %s23
    %s27 = sphi 0, %s26
    %s43 = sphi 0, %s27
    %s49 = sphi 0, %s51
    %s52 = sphi 0, %s49
    %s53 = sphi 0, %s52
    %s69 = sphi 0, %s53
    %s75 = sphi 0, %s77
    %s78 = sphi 0, %s75
    %s79 = sphi 0, %s78
    %s95 = sphi 0, %s79
    %s101 = sphi 0, %s103
    %s104 = sphi 0, %s101
    %s105 = sphi 0, %s104
    %s121 = sphi 0, %s105
    %s125 = sphi 0, %s125
    %s127 = sphi 0, %s125
    %s128 = sphi 0, %s127
    %s142 = sphi 0, %s128
    %s148 = sphi 0, %s150
    %s151 = sphi 0, %s148
    %s152 = sphi 0, %s151
    %s168 = sphi 0, %s152
    %s174 = sphi 0, %s176
    %s177 = sphi 0, %s174
    %s178 = sphi 0, %s177
    %s194 = sphi 0, %s178
  $region4: #{block_forward.4} parent=0 // loop_header_branch
    %16 = sbr.rel (%p14) target = $region8
  $region5: #{block_forward.4} parent=0 // loop_body
    %s18 = ssub.s32 %s13, 1
    %s19 = ssub.s32 %s13, 2
    %s20 = sadd.s32 %s13, 1
    %s21 = ssub.s32 %s13, %s20
    %p22 = scmp.eq.s32.totalorder %s21, 0
    %s24 = sadd.s32 %s23, 1
    %s25 = scalar_select %p22, %s23, %s24
    %p28 = pneg %p22
    %p29 = scmp.eq.s32.totalorder %s13, 1
    %p30 = por %p28, %p29
    %p31 = scmp.ne.s32.totalorder %s23, %s26
    %p32 = scmp.eq.s32.totalorder %s13, 0
    %p33 = por %p31, %p32
    %p34 = scmp.ne.s32.totalorder %s23, %s26
    %p35 = scmp.eq.s32.totalorder %s18, 1
    %p36 = por %p34, %p35
    %p37 = scmp.ne.s32.totalorder %s26, %s27
    %p38 = scmp.eq.s32.totalorder %s18, 0
    %p39 = por %p37, %p38
    %p40 = scmp.ne.s32.totalorder %s26, %s27
    %p41 = scmp.eq.s32.totalorder %s19, 1
    %p42 = por %p40, %p41
    %p44 = scmp.ne.s32.totalorder %s27, %s43
    %p45 = scmp.eq.s32.totalorder %s19, 0
    %p46 = por %p44, %p45
    %s47 = ssub.s32 %s13, %s20
    %p48 = scmp.eq.s32.totalorder %s47, 0
    %s50 = sadd.s32 %s49, 1
    %s51 = scalar_select %p48, %s49, %s50
    %p54 = pneg %p48
    %p55 = scmp.eq.s32.totalorder %s13, 1
    %p56 = por %p54, %p55
    %p57 = scmp.ne.s32.totalorder %s49, %s52
    %p58 = scmp.eq.s32.totalorder %s13, 0
    %p59 = por %p57, %p58
    %p60 = scmp.ne.s32.totalorder %s49, %s52
    %p61 = scmp.eq.s32.totalorder %s18, 1
    %p62 = por %p60, %p61
    %p63 = scmp.ne.s32.totalorder %s52, %s53
    %p64 = scmp.eq.s32.totalorder %s18, 0
    %p65 = por %p63, %p64
    %p66 = scmp.ne.s32.totalorder %s52, %s53
    %p67 = scmp.eq.s32.totalorder %s19, 1
    %p68 = por %p66, %p67
    %p70 = scmp.ne.s32.totalorder %s53, %s69
    %p71 = scmp.eq.s32.totalorder %s19, 0
    %p72 = por %p70, %p71
    %s73 = ssub.s32 %s13, %s20
    %p74 = scmp.eq.s32.totalorder %s73, 0
    %s76 = sadd.s32 %s75, 1
    %s77 = scalar_select %p74, %s75, %s76
    %p80 = pneg %p74
    %p81 = scmp.eq.s32.totalorder %s13, 1
    %p82 = por %p80, %p81
    %p83 = scmp.ne.s32.totalorder %s75, %s78
    %p84 = scmp.eq.s32.totalorder %s13, 0
    %p85 = por %p83, %p84
    %p86 = scmp.ne.s32.totalorder %s75, %s78
    %p87 = scmp.eq.s32.totalorder %s18, 1
    %p88 = por %p86, %p87
    %p89 = scmp.ne.s32.totalorder %s78, %s79
    %p90 = scmp.eq.s32.totalorder %s18, 0
    %p91 = por %p89, %p90
    %p92 = scmp.ne.s32.totalorder %s78, %s79
    %p93 = scmp.eq.s32.totalorder %s19, 1
    %p94 = por %p92, %p93
    %p96 = scmp.ne.s32.totalorder %s79, %s95
    %p97 = scmp.eq.s32.totalorder %s19, 0
    %p98 = por %p96, %p97
    %s99 = ssub.s32 %s13, %s20
    %p100 = scmp.eq.s32.totalorder %s99, 0
    %s102 = sadd.s32 %s101, 1
    %s103 = scalar_select %p100, %s101, %s102
    %p106 = pneg %p100
    %p107 = scmp.eq.s32.totalorder %s13, 1
    %p108 = por %p106, %p107
    %p109 = scmp.ne.s32.totalorder %s101, %s104
    %p110 = scmp.eq.s32.totalorder %s13, 0
    %p111 = por %p109, %p110
    %p112 = scmp.ne.s32.totalorder %s101, %s104
    %p113 = scmp.eq.s32.totalorder %s18, 1
    %p114 = por %p112, %p113
    %p115 = scmp.ne.s32.totalorder %s104, %s105
    %p116 = scmp.eq.s32.totalorder %s18, 0
    %p117 = por %p115, %p116
    %p118 = scmp.ne.s32.totalorder %s104, %s105
    %p119 = scmp.eq.s32.totalorder %s19, 1
    %p120 = por %p118, %p119
    %p122 = scmp.ne.s32.totalorder %s105, %s121
    %p123 = scmp.eq.s32.totalorder %s19, 0
    %p124 = por %p122, %p123
    %s126 = sadd.s32 %s125, 1
    %p129 = scmp.eq.s32.totalorder %s13, 1
    %p130 = scmp.ne.s32.totalorder %s125, %s127
    %p131 = scmp.eq.s32.totalorder %s13, 0
    %p132 = por %p130, %p131
    %p133 = scmp.ne.s32.totalorder %s125, %s127
    %p134 = scmp.eq.s32.totalorder %s18, 1
    %p135 = por %p133, %p134
    %p136 = scmp.ne.s32.totalorder %s127, %s128
    %p137 = scmp.eq.s32.totalorder %s18, 0
    %p138 = por %p136, %p137
    %p139 = scmp.ne.s32.totalorder %s127, %s128
    %p140 = scmp.eq.s32.totalorder %s19, 1
    %p141 = por %p139, %p140
    %p143 = scmp.ne.s32.totalorder %s128, %s142
    %p144 = scmp.eq.s32.totalorder %s19, 0
    %p145 = por %p143, %p144
    %s146 = ssub.s32 %s13, %s20
    %p147 = scmp.eq.s32.totalorder %s146, 0
    %s149 = sadd.s32 %s148, 1
    %s150 = scalar_select %p147, %s148, %s149
    %p153 = pneg %p147
    %p154 = scmp.eq.s32.totalorder %s13, 1
    %p155 = por %p153, %p154
    %p156 = scmp.ne.s32.totalorder %s148, %s151
    %p157 = scmp.eq.s32.totalorder %s13, 0
    %p158 = por %p156, %p157
    %p159 = scmp.ne.s32.totalorder %s148, %s151
    %p160 = scmp.eq.s32.totalorder %s18, 1
    %p161 = por %p159, %p160
    %p162 = scmp.ne.s32.totalorder %s151, %s152
    %p163 = scmp.eq.s32.totalorder %s18, 0
    %p164 = por %p162, %p163
    %p165 = scmp.ne.s32.totalorder %s151, %s152
    %p166 = scmp.eq.s32.totalorder %s19, 1
    %p167 = por %p165, %p166
    %p169 = scmp.ne.s32.totalorder %s152, %s168
    %p170 = scmp.eq.s32.totalorder %s19, 0
    %p171 = por %p169, %p170
    %s172 = ssub.s32 %s13, %s20
    %p173 = scmp.eq.s32.totalorder %s172, 0
    %s175 = sadd.s32 %s174, 1
    %s176 = scalar_select %p173, %s174, %s175
    %p179 = pneg %p173
    %p180 = scmp.eq.s32.totalorder %s13, 1
    %p181 = por %p179, %p180
    %p182 = scmp.ne.s32.totalorder %s174, %s177
    %p183 = scmp.eq.s32.totalorder %s13, 0
    %p184 = por %p182, %p183
    %p185 = scmp.ne.s32.totalorder %s174, %s177
    %p186 = scmp.eq.s32.totalorder %s18, 1
    %p187 = por %p185, %p186
    %p188 = scmp.ne.s32.totalorder %s177, %s178
    %p189 = scmp.eq.s32.totalorder %s18, 0
    %p190 = por %p188, %p189
    %p191 = scmp.ne.s32.totalorder %s177, %s178
    %p192 = scmp.eq.s32.totalorder %s19, 1
    %p193 = por %p191, %p192
    %p195 = scmp.ne.s32.totalorder %s178, %s194
    %p196 = scmp.eq.s32.totalorder %s19, 0
    %p197 = por %p195, %p196
    %p198 = scmp.le.s32.totalorder 1, %s13
    %p199 = scmp.lt.s32.totalorder %s13, 3
    %p200 = pnand %p198, %p199
    %p201 = pneg %p200
    // Predicated region
    $region9: #{block_forward.4} parent=5 // pred_check
      _
    $region10: #{block_forward.4} parent=5 // pred_check_branch
      %203 = sbr.rel (%p200) target = $region12
    $region11: #{block_forward.4} parent=5 // pred_region
      %s204 = ssub.s32 %s13, 1
      // Predicated region
      $region13: #{block_forward.4} parent=11 // pred_check
        %p205 = pneg %p138
      $region14: #{block_forward.4} parent=11 // pred_check_branch
        %207 = sbr.rel (%p205) target = $region16
      $region15: #{block_forward.4} parent=11 // pred_region
        _
      $region16: #{block_forward.4} parent=11 // pred_fallthru
        _
    $region12: #{block_forward.4} parent=5 // pred_fallthru
      _
    %p208 = scmp.lt.s32.totalorder %s13, 2
    // Predicated region
    $region17: #{block_forward.4} parent=5 // pred_check
      %p209 = pneg %p208
    $region18: #{block_forward.4} parent=5 // pred_check_branch
      %211 = sbr.rel (%p209) target = $region20
    $region19: #{block_forward.4} parent=5 // pred_region
      // Predicated region
      $region21: #{block_forward.4} parent=19 // pred_check
        %p212 = pneg %p33
      $region22: #{block_forward.4} parent=19 // pred_check_branch
        %214 = sbr.rel (%p212) target = $region24
      $region23: #{block_forward.4} parent=19 // pred_region
        %p215 = scmp.lt.s32.totalorder %s13, 1
        %s216 = scalar_select %p215, %s13, 1
        %s217 = smul.addr %s216, 11
        %s218 = smul.addr %s217, 8
        %s219 = scalar_lea.vmem %s0, %s218
      $region24: #{block_forward.4} parent=19 // pred_fallthru
        _
      // Predicated region
      $region25: #{block_forward.4} parent=19 // pred_check
        %p220 = pneg %p59
      $region26: #{block_forward.4} parent=19 // pred_check_branch
        %222 = sbr.rel (%p220) target = $region28
      $region27: #{block_forward.4} parent=19 // pred_region
        %p223 = scmp.lt.s32.totalorder %s13, 1
        %s224 = scalar_select %p223, %s13, 1
        %s225 = smul.addr %s224, 11
        %s226 = smul.addr %s225, 8
        %s227 = scalar_lea.vmem %s1, %s226
      $region28: #{block_forward.4} parent=19 // pred_fallthru
        _
      // Predicated region
      $region29: #{block_forward.4} parent=19 // pred_check
        %p228 = pneg %p85
      $region30: #{block_forward.4} parent=19 // pred_check_branch
        %230 = sbr.rel (%p228) target = $region32
      $region31: #{block_forward.4} parent=19 // pred_region
        %p231 = scmp.lt.s32.totalorder %s13, 1
        %s232 = scalar_select %p231, %s13, 1
        %s233 = smul.addr %s232, 11
        %s234 = smul.addr %s233, 8
        %s235 = scalar_lea.vmem %s2, %s234
      $region32: #{block_forward.4} parent=19 // pred_fallthru
        _
      // Predicated region
      $region33: #{block_forward.4} parent=19 // pred_check
        %p236 = pneg %p111
      $region34: #{block_forward.4} parent=19 // pred_check_branch
        %238 = sbr.rel (%p236) target = $region36
      $region35: #{block_forward.4} parent=19 // pred_region
        %p239 = scmp.lt.s32.totalorder %s13, 1
        %s240 = scalar_select %p239, %s13, 1
        %s241 = smul.addr %s240, 11
        %s242 = smul.addr %s241, 8
        %s243 = scalar_lea.vmem %s3, %s242
      $region36: #{block_forward.4} parent=19 // pred_fallthru
        _
    $region20: #{block_forward.4} parent=5 // pred_fallthru
      _
    %p244 = scmp.le.s32.totalorder 1, %s13
    %p245 = scmp.lt.s32.totalorder %s13, 3
    %p246 = pnand %p244, %p245
    %p247 = pneg %p246
    // Predicated region
    $region37: #{block_forward.4} parent=5 // pred_check
      _
    $region38: #{block_forward.4} parent=5 // pred_check_branch
      %249 = sbr.rel (%p246) target = $region40
    $region39: #{block_forward.4} parent=5 // pred_region
      %s250 = ssub.s32 %s13, 1
      %p251 = scmp.lt.s32.totalorder %s18, 1
      %s252 = scalar_select %p251, %s18, 1
      %s253 = smul.addr %s252, 11
      %s254 = smul.addr %s253, 8
      %s255 = scalar_lea.vmem %s0, %s254
      %p256 = pneg %p39
      %p257 = pneg %p36
      %p258 = scmp.lt.s32.totalorder %s18, 1
      %s259 = scalar_select %p258, %s18, 1
      %s260 = smul.addr %s259, 11
      %s261 = smul.addr %s260, 8
      %s262 = scalar_lea.vmem %s1, %s261
      %p263 = pneg %p65
      %p264 = pneg %p62
      %p265 = scmp.lt.s32.totalorder %s18, 1
      %s266 = scalar_select %p265, %s18, 1
      %s267 = smul.addr %s266, 11
      %s268 = smul.addr %s267, 8
      %s269 = scalar_lea.vmem %s2, %s268
      %p270 = pneg %p91
      %p271 = pneg %p88
      %p272 = scmp.lt.s32.totalorder %s18, 1
      %s273 = scalar_select %p272, %s18, 1
      %s274 = smul.addr %s273, 11
      %s275 = smul.addr %s274, 8
      %s276 = scalar_lea.vmem %s3, %s275
      %p277 = pneg %p117
      %p278 = pneg %p114
      %p279 = pneg %p138
      %p280 = pneg %p135
      %p281 = pneg %p164
      %p282 = pneg %p161
      %p283 = scmp.lt.s32.totalorder %s18, 1
      %s284 = scalar_select %p283, %s18, 1
      %s285 = smul.addr %s284, 9
      %s286 = smul.addr %s285, 8
      %s287 = scalar_lea.vmem %s5, %s286
      %p288 = pneg %p190
      %p289 = pneg %p187
      %p290 = scmp.lt.s32.totalorder %s18, 1
      %s291 = scalar_select %p290, %s18, 1
      %s292 = smul.addr %s291, 2
      %s293 = scalar_lea.vmem %s6, %s292
      %p294 = scmp.lt.s32.totalorder %s18, 1
      %s295 = scalar_select %p294, %s18, 1
      %s296 = smul.addr %s295, 11
      %s297 = smul.addr %s296, 8
      %s298 = scalar_lea.vmem %s0, %s297
      %p299 = scmp.lt.s32.totalorder %s18, 1
      %s300 = scalar_select %p299, %s18, 1
      %s301 = smul.addr %s300, 11
      %s302 = smul.addr %s301, 8
      %s303 = scalar_lea.vmem %s1, %s302
      %p304 = scmp.lt.s32.totalorder %s18, 1
      %s305 = scalar_select %p304, %s18, 1
      %s306 = smul.addr %s305, 11
      %s307 = smul.addr %s306, 8
      %s308 = scalar_lea.vmem %s2, %s307
      %p309 = scmp.lt.s32.totalorder %s18, 1
      %s310 = scalar_select %p309, %s18, 1
      %s311 = smul.addr %s310, 11
      %s312 = smul.addr %s311, 8
      %s313 = scalar_lea.vmem %s3, %s312
      %p314 = scmp.lt.s32.totalorder %s18, 1
      %s315 = scalar_select %p314, %s18, 1
      %s316 = smul.addr %s315, 9
      %s317 = smul.addr %s316, 8
      %s318 = scalar_lea.vmem %s5, %s317
      %p319 = scmp.lt.s32.totalorder %s18, 1
      %s320 = scalar_select %p319, %s18, 1
      %s321 = smul.addr %s320, 2
      %s322 = scalar_lea.vmem %s6, %s321
      %v323 = vld [vmem:[%s298] sm:$0xff]
      %v324 = vld [vmem:[%s298 + $0x8] sm:$0xff]
      %v325 = vld [vmem:[%s298 + $0x10] sm:$0xff]
      %v326 = vld [vmem:[%s298 + $0x18] sm:$0xff]
      %v327 = vld [vmem:[%s298 + $0x20] sm:$0xff]
      %v328 = vld [vmem:[%s298 + $0x28] sm:$0xff]
      %v329 = vld [vmem:[%s298 + $0x30] sm:$0xff]
      %v330 = vld [vmem:[%s298 + $0x38] sm:$0xff]
      %v331 = vld [vmem:[%s298 + $0x40] sm:$0xff]
      %v332 = vld [vmem:[%s4] sm:$0xf]
      %v333 = vld [vmem:[%s303] sm:$0xff]
      %v334 = vld [vmem:[%s303 + $0x8] sm:$0xff]
      %v335 = vld [vmem:[%s303 + $0x10] sm:$0xff]
      %v336 = vld [vmem:[%s303 + $0x18] sm:$0xff]
      %v337 = vld [vmem:[%s303 + $0x20] sm:$0xff]
      %v338 = vld [vmem:[%s303 + $0x28] sm:$0xff]
      %v339 = vld [vmem:[%s303 + $0x30] sm:$0xff]
      %v340 = vld [vmem:[%s303 + $0x38] sm:$0xff]
      %v341 = vld [vmem:[%s303 + $0x40] sm:$0xff]
      %s342 = scalar_lea.vmem %s4, 4
      %v343 = vld [vmem:[%s342] sm:$0xf]
      %vm344 = vcmask 31744
      %v346 = vsel %vm344, %v333, 0
      %v349 = vsel %vm344, %v334, 0
      %v352 = vsel %vm344, %v335, 0
      %v355 = vsel %vm344, %v336, 0
      %v358 = vsel %vm344, %v337, 0
      %v361 = vsel %vm344, %v338, 0
      %v364 = vsel %vm344, %v339, 0
      %v367 = vsel %vm344, %v340, 0
      %v370 = vsel %vm344, %v341, 0
      %vm372 = vcmask 1043456
      %v374 = vsel %vm372, %v343, 0
      %376 = vmatprep.subr.mxu0 0.0
      %377 = vmatpush1.msra.mxu0 %v374
      %378 = vmatprep.subr.mxu0 0.0
      %379 = vmatpush1.msra.mxu0 0.0
      %380 = vmatprep.subr.mxu0 0.0
      %381 = vmatpush1.msra.mxu0 0.0
      %382 = vmatprep.subr.mxu0 0.0
      %383 = vmatpush1.msra.mxu0 0.0
      %384 = vmatprep.subr.mxu0 0.0
      %385 = vmatpush1.msra.mxu0 0.0
      %386 = vmatprep.subr.mxu0 0.0
      %387 = vmatpush1.msra.mxu0 0.0
      %388 = vmatprep.subr.mxu0 0.0
      %389 = vmatpush1.msra.mxu0 0.0
      %390 = vmatprep.subr.mxu0 0.0
      %391 = vmatpush1.msra.mxu0 0.0
      %392 = vmatprep.subr.mxu0 0.0
      %393 = vmatpush1.msra.mxu0 0.0
      %394 = vmatprep.subr.mxu0 0.0
      %395 = vmatpush1.msra.mxu0 0.0
      %396 = vmatprep.subr.mxu0 0.0
      %397 = vmatpush1.msra.mxu0 0.0
      %398 = vmatprep.subr.mxu0 0.0
      %399 = vmatpush1.msra.mxu0 0.0
      %400 = vmatprep.subr.mxu0 0.0
      %401 = vmatpush1.msra.mxu0 0.0
      %402 = vmatprep.subr.mxu0 0.0
      %403 = vmatpush1.msra.mxu0 0.0
      %404 = vmatprep.subr.mxu0 0.0
      %405 = vmatpush1.msra.mxu0 0.0
      %406 = vmatprep.subr.mxu0 0.0
      %407 = vmatpush1.msra.mxu0 0.0
      %408 = vmatprep.subr.mxu0 0.0
      %409 = vmatpush1.msra.mxu0 0.0
      %410 = vmatprep.subr.mxu0 0.0
      %411 = vmatpush1.msra.mxu0 0.0
      %412 = vmatprep.subr.mxu0 0.0
      %413 = vmatpush1.msra.mxu0 0.0
      %414 = vmatprep.subr.mxu0 0.0
      %415 = vmatpush1.msra.mxu0 0.0
      %416 = vmatprep.subr.mxu0 0.0
      %417 = vmatpush1.msra.mxu0 0.0
      %418 = vmatprep.subr.mxu0 0.0
      %419 = vmatpush1.msra.mxu0 0.0
      %420 = vmatprep.subr.mxu0 0.0
      %421 = vmatpush1.msra.mxu0 0.0
      %422 = vmatprep.subr.mxu0 0.0
      %423 = vmatpush1.msra.mxu0 0.0
      %424 = vmatprep.subr.mxu0 0.0
      %425 = vmatpush1.msra.mxu0 0.0
      %426 = vmatprep.subr.mxu0 0.0
      %427 = vmatpush1.msra.mxu0 0.0
      %428 = vmatprep.subr.mxu0 0.0
      %429 = vmatpush1.msra.mxu0 0.0
      %430 = vmatprep.subr.mxu0 0.0
      %431 = vmatpush1.msra.mxu0 0.0
      %432 = vmatprep.subr.mxu0 0.0
      %433 = vmatpush1.msra.mxu0 0.0
      %434 = vmatprep.subr.mxu0 0.0
      %435 = vmatpush1.msra.mxu0 0.0
      %436 = vmatprep.subr.mxu0 0.0
      %437 = vmatpush1.msra.mxu0 0.0
      %438 = vmatprep.subr.mxu0 0.0
      %439 = vmatpush1.msra.mxu0 0.0
      %440 = vmatprep.mubr.f32.mxu0 0.0
      %441 = vmatmul.mubr.f32.gmra.mrb[0].mxu0 %v346
      %v442 = vpop.f32.mrb[0].mxu0
      %v443 = vadd.f32 0.0, %v442
      %v444 = vpop.f32.mrb[0].mxu0
      %445 = vmatprep.mubr.f32.mxu0 0.0
      %446 = vmatmul.mubr.f32.gmra.mrb[0].mxu0 %v349
      %v447 = vpop.f32.mrb[0].mxu0
      %v448 = vadd.f32 0.0, %v447
      %v449 = vpop.f32.mrb[0].mxu0
      %450 = vmatprep.mubr.f32.mxu0 0.0
      %451 = vmatmul.mubr.f32.gmra.mrb[0].mxu0 %v352
      %v452 = vpop.f32.mrb[0].mxu0
      %v453 = vadd.f32 0.0, %v452
      %v454 = vpop.f32.mrb[0].mxu0
      %455 = vmatprep.mubr.f32.mxu0 0.0
      %456 = vmatmul.mubr.f32.gmra.mrb[0].mxu0 %v355
      %v457 = vpop.f32.mrb[0].mxu0
      %v458 = vadd.f32 0.0, %v457
      %v459 = vpop.f32.mrb[0].mxu0
      %460 = vmatprep.mubr.f32.mxu0 0.0
      %461 = vmatmul.mubr.f32.gmra.mrb[0].mxu0 %v358
      %v462 = vpop.f32.mrb[0].mxu0
      %v463 = vadd.f32 0.0, %v462
      %v464 = vpop.f32.mrb[0].mxu0
      %465 = vmatprep.mubr.f32.mxu0 0.0
      %466 = vmatmul.mubr.f32.gmra.mrb[0].mxu0 %v361
      %v467 = vpop.f32.mrb[0].mxu0
      %v468 = vadd.f32 0.0, %v467
      %v469 = vpop.f32.mrb[0].mxu0
      %470 = vmatprep.mubr.f32.mxu0 0.0
      %471 = vmatmul.mubr.f32.gmra.mrb[0].mxu0 %v364
      %v472 = vpop.f32.mrb[0].mxu0
      %v473 = vadd.f32 0.0, %v472
      %v474 = vpop.f32.mrb[0].mxu0
      %475 = vmatprep.mubr.f32.mxu0 0.0
      %476 = vmatmul.mubr.f32.gmra.mrb[0].mxu0 %v367
      %v477 = vpop.f32.mrb[0].mxu0
      %v478 = vadd.f32 0.0, %v477
      %v479 = vpop.f32.mrb[0].mxu0
      %480 = vmatprep.mubr.f32.mxu0 0.0
      %481 = vmatmul.mubr.f32.gmra.mrb[0].mxu0 %v370
      %v482 = vpop.f32.mrb[0].mxu0
      %v483 = vadd.f32 0.0, %v482
      %v484 = vpop.f32.mrb[0].mxu0
      %485 = vdwg.mxu0
      %v487 = vsel %vm344, %v323, 0
      %v490 = vsel %vm344, %v324, 0
      %v493 = vsel %vm344, %v325, 0
      %v496 = vsel %vm344, %v326, 0
      %v499 = vsel %vm344, %v327, 0
      %v502 = vsel %vm344, %v328, 0
      %v505 = vsel %vm344, %v329, 0
      %v508 = vsel %vm344, %v330, 0
      %v511 = vsel %vm344, %v331, 0
      %v514 = vsel %vm372, %v332, 0
      %516 = vmatprep.subr.mxu0 0.0
      %517 = vmatpush1.msra.mxu0 %v514
      %518 = vmatprep.subr.mxu0 0.0
      %519 = vmatpush1.msra.mxu0 0.0
      %520 = vmatprep.subr.mxu0 0.0
      %521 = vmatpush1.msra.mxu0 0.0
      %522 = vmatprep.subr.mxu0 0.0
      %523 = vmatpush1.msra.mxu0 0.0
      %524 = vmatprep.subr.mxu0 0.0
      %525 = vmatpush1.msra.mxu0 0.0
      %526 = vmatprep.subr.mxu0 0.0
      %527 = vmatpush1.msra.mxu0 0.0
      %528 = vmatprep.subr.mxu0 0.0
      %529 = vmatpush1.msra.mxu0 0.0
      %530 = vmatprep.subr.mxu0 0.0
      %531 = vmatpush1.msra.mxu0 0.0
      %532 = vmatprep.subr.mxu0 0.0
      %533 = vmatpush1.msra.mxu0 0.0
      %534 = vmatprep.subr.mxu0 0.0
      %535 = vmatpush1.msra.mxu0 0.0
      %536 = vmatprep.subr.mxu0 0.0
      %537 = vmatpush1.msra.mxu0 0.0
      %538 = vmatprep.subr.mxu0 0.0
      %539 = vmatpush1.msra.mxu0 0.0
      %540 = vmatprep.subr.mxu0 0.0
      %541 = vmatpush1.msra.mxu0 0.0
      %542 = vmatprep.subr.mxu0 0.0
      %543 = vmatpush1.msra.mxu0 0.0
      %544 = vmatprep.subr.mxu0 0.0
      %545 = vmatpush1.msra.mxu0 0.0
      %546 = vmatprep.subr.mxu0 0.0
      %547 = vmatpush1.msra.mxu0 0.0
      %548 = vmatprep.subr.mxu0 0.0
      %549 = vmatpush1.msra.mxu0 0.0
      %550 = vmatprep.subr.mxu0 0.0
      %551 = vmatpush1.msra.mxu0 0.0
      %552 = vmatprep.subr.mxu0 0.0
      %553 = vmatpush1.msra.mxu0 0.0
      %554 = vmatprep.subr.mxu0 0.0
      %555 = vmatpush1.msra.mxu0 0.0
      %556 = vmatprep.subr.mxu0 0.0
      %557 = vmatpush1.msra.mxu0 0.0
      %558 = vmatprep.subr.mxu0 0.0
      %559 = vmatpush1.msra.mxu0 0.0
      %560 = vmatprep.subr.mxu0 0.0
      %561 = vmatpush1.msra.mxu0 0.0
      %562 = vmatprep.subr.mxu0 0.0
      %563 = vmatpush1.msra.mxu0 0.0
      %564 = vmatprep.subr.mxu0 0.0
      %565 = vmatpush1.msra.mxu0 0.0
      %566 = vmatprep.subr.mxu0 0.0
      %567 = vmatpush1.msra.mxu0 0.0
      %568 = vmatprep.subr.mxu0 0.0
      %569 = vmatpush1.msra.mxu0 0.0
      %570 = vmatprep.subr.mxu0 0.0
      %571 = vmatpush1.msra.mxu0 0.0
      %572 = vmatprep.subr.mxu0 0.0
      %573 = vmatpush1.msra.mxu0 0.0
      %574 = vmatprep.subr.mxu0 0.0
      %575 = vmatpush1.msra.mxu0 0.0
      %576 = vmatprep.subr.mxu0 0.0
      %577 = vmatpush1.msra.mxu0 0.0
      %578 = vmatprep.subr.mxu0 0.0
      %579 = vmatpush1.msra.mxu0 0.0
      %580 = vmatprep.mubr.f32.mxu0 0.0
      %581 = vmatmul.mubr.f32.gmra.mrb[0].mxu0 %v487
      %v582 = vpop.f32.mrb[0].mxu0
      %v583 = vadd.f32 %v443, %v582
      %v584 = vpop.f32.mrb[0].mxu0
      %585 = vmatprep.mubr.f32.mxu0 0.0
      %586 = vmatmul.mubr.f32.gmra.mrb[0].mxu0 %v490
      %v587 = vpop.f32.mrb[0].mxu0
      %v588 = vadd.f32 %v448, %v587
      %v589 = vpop.f32.mrb[0].mxu0
      %590 = vmatprep.mubr.f32.mxu0 0.0
      %591 = vmatmul.mubr.f32.gmra.mrb[0].mxu0 %v493
      %v592 = vpop.f32.mrb[0].mxu0
      %v593 = vadd.f32 %v453, %v592
      %v594 = vpop.f32.mrb[0].mxu0
      %595 = vmatprep.mubr.f32.mxu0 0.0
      %596 = vmatmul.mubr.f32.gmra.mrb[0].mxu0 %v496
      %v597 = vpop.f32.mrb[0].mxu0
      %v598 = vadd.f32 %v458, %v597
      %v599 = vpop.f32.mrb[0].mxu0
      %600 = vmatprep.mubr.f32.mxu0 0.0
      %601 = vmatmul.mubr.f32.gmra.mrb[0].mxu0 %v499
      %v602 = vpop.f32.mrb[0].mxu0
      %v603 = vadd.f32 %v463, %v602
      %v604 = vpop.f32.mrb[0].mxu0
      %605 = vmatprep.mubr.f32.mxu0 0.0
      %606 = vmatmul.mubr.f32.gmra.mrb[0].mxu0 %v502
      %v607 = vpop.f32.mrb[0].mxu0
      %v608 = vadd.f32 %v468, %v607
      %v609 = vpop.f32.mrb[0].mxu0
      %610 = vmatprep.mubr.f32.mxu0 0.0
      %611 = vmatmul.mubr.f32.gmra.mrb[0].mxu0 %v505
      %v612 = vpop.f32.mrb[0].mxu0
      %v613 = vadd.f32 %v473, %v612
      %v614 = vpop.f32.mrb[0].mxu0
      %615 = vmatprep.mubr.f32.mxu0 0.0
      %616 = vmatmul.mubr.f32.gmra.mrb[0].mxu0 %v508
      %v617 = vpop.f32.mrb[0].mxu0
      %v618 = vadd.f32 %v478, %v617
      %v619 = vpop.f32.mrb[0].mxu0
      %620 = vmatprep.mubr.f32.mxu0 0.0
      %621 = vmatmul.mubr.f32.gmra.mrb[0].mxu0 %v511
      %v622 = vpop.f32.mrb[0].mxu0
      %v623 = vadd.f32 %v483, %v622
      %v624 = vpop.f32.mrb[0].mxu0
      %625 = vdwg.mxu0
      %v626 = vld [vmem:[%s298 + $0x1] sm:$0xff]
      %v627 = vld [vmem:[%s298 + $0x9] sm:$0xff]
      %v628 = vld [vmem:[%s298 + $0x11] sm:$0xff]
      %v629 = vld [vmem:[%s298 + $0x19] sm:$0xff]
      %v630 = vld [vmem:[%s298 + $0x21] sm:$0xff]
      %v631 = vld [vmem:[%s298 + $0x29] sm:$0xff]
      %v632 = vld [vmem:[%s298 + $0x31] sm:$0xff]
      %v633 = vld [vmem:[%s298 + $0x39] sm:$0xff]
      %v634 = vld [vmem:[%s298 + $0x41] sm:$0xff]
      %s635 = scalar_lea.vmem %s4, 8
      %v636 = vld [vmem:[%s635] sm:$0xf]
      %v638 = vsel %vm344, %v626, 0
      %v641 = vsel %vm344, %v627, 0
      %v644 = vsel %vm344, %v628, 0
      %v647 = vsel %vm344, %v629, 0
      %v650 = vsel %vm344, %v630, 0
      %v653 = vsel %vm344, %v631, 0
      %v656 = vsel %vm344, %v632, 0
      %v659 = vsel %vm344, %v633, 0
      %v662 = vsel %vm344, %v634, 0
      %v665 = vsel %vm372, %v636, 0
      %667 = vmatprep.subr.mxu0 0.0
      %668 = vmatpush1.msra.mxu0 %v665
      %669 = vmatprep.subr.mxu0 0.0
      %670 = vmatpush1.msra.mxu0 0.0
      %671 = vmatprep.subr.mxu0 0.0
      %672 = vmatpush1.msra.mxu0 0.0
      %673 = vmatprep.subr.mxu0 0.0
      %674 = vmatpush1.msra.mxu0 0.0
      %675 = vmatprep.subr.mxu0 0.0
      %676 = vmatpush1.msra.mxu0 0.0
      %677 = vmatprep.subr.mxu0 0.0
      %678 = vmatpush1.msra.mxu0 0.0
      %679 = vmatprep.subr.mxu0 0.0
      %680 = vmatpush1.msra.mxu0 0.0
      %681 = vmatprep.subr.mxu0 0.0
      %682 = vmatpush1.msra.mxu0 0.0
      %683 = vmatprep.subr.mxu0 0.0
      %684 = vmatpush1.msra.mxu0 0.0
      %685 = vmatprep.subr.mxu0 0.0
      %686 = vmatpush1.msra.mxu0 0.0
      %687 = vmatprep.subr.mxu0 0.0
      %688 = vmatpush1.msra.mxu0 0.0
      %689 = vmatprep.subr.mxu0 0.0
      %690 = vmatpush1.msra.mxu0 0.0
      %691 = vmatprep.subr.mxu0 0.0
      %692 = vmatpush1.msra.mxu0 0.0
      %693 = vmatprep.subr.mxu0 0.0
      %694 = vmatpush1.msra.mxu0 0.0
      %695 = vmatprep.subr.mxu0 0.0
      %696 = vmatpush1.msra.mxu0 0.0
      %697 = vmatprep.subr.mxu0 0.0
      %698 = vmatpush1.msra.mxu0 0.0
      %699 = vmatprep.subr.mxu0 0.0
      %700 = vmatpush1.msra.mxu0 0.0
      %701 = vmatprep.subr.mxu0 0.0
      %702 = vmatpush1.msra.mxu0 0.0
      %703 = vmatprep.subr.mxu0 0.0
      %704 = vmatpush1.msra.mxu0 0.0
      %705 = vmatprep.subr.mxu0 0.0
      %706 = vmatpush1.msra.mxu0 0.0
      %707 = vmatprep.subr.mxu0 0.0
      %708 = vmatpush1.msra.mxu0 0.0
      %709 = vmatprep.subr.mxu0 0.0
      %710 = vmatpush1.msra.mxu0 0.0
      %711 = vmatprep.subr.mxu0 0.0
      %712 = vmatpush1.msra.mxu0 0.0
      %713 = vmatprep.subr.mxu0 0.0
      %714 = vmatpush1.msra.mxu0 0.0
      %715 = vmatprep.subr.mxu0 0.0
      %716 = vmatpush1.msra.mxu0 0.0
      %717 = vmatprep.subr.mxu0 0.0
      %718 = vmatpush1.msra.mxu0 0.0
      %719 = vmatprep.subr.mxu0 0.0
      %720 = vmatpush1.msra.mxu0 0.0
      %721 = vmatprep.subr.mxu0 0.0
      %722 = vmatpush1.msra.mxu0 0.0
      %723 = vmatprep.subr.mxu0 0.0
      %724 = vmatpush1.msra.mxu0 0.0
      %725 = vmatprep.subr.mxu0 0.0
      %726 = vmatpush1.msra.mxu0 0.0
      %727 = vmatprep.subr.mxu0 0.0
      %728 = vmatpush1.msra.mxu0 0.0
      %729 = vmatprep.subr.mxu0 0.0
      %730 = vmatpush1.msra.mxu0 0.0
      %731 = vmatprep.mubr.f32.mxu0 0.0
      %732 = vmatmul.mubr.f32.gmra.mrb[0].mxu0 %v638
      %v733 = vpop.f32.mrb[0].mxu0
      %v734 = vadd.f32 0.0, %v733
      %v735 = vpop.f32.mrb[0].mxu0
      %736 = vmatprep.mubr.f32.mxu0 0.0
      %737 = vmatmul.mubr.f32.gmra.mrb[0].mxu0 %v641
      %v738 = vpop.f32.mrb[0].mxu0
      %v739 = vadd.f32 0.0, %v738
      %v740 = vpop.f32.mrb[0].mxu0
      %741 = vmatprep.mubr.f32.mxu0 0.0
      %742 = vmatmul.mubr.f32.gmra.mrb[0].mxu0 %v644
      %v743 = vpop.f32.mrb[0].mxu0
      %v744 = vadd.f32 0.0, %v743
      %v745 = vpop.f32.mrb[0].mxu0
      %746 = vmatprep.mubr.f32.mxu0 0.0
      %747 = vmatmul.mubr.f32.gmra.mrb[0].mxu0 %v647
      %v748 = vpop.f32.mrb[0].mxu0
      %v749 = vadd.f32 0.0, %v748
      %v750 = vpop.f32.mrb[0].mxu0
      %751 = vmatprep.mubr.f32.mxu0 0.0
      %752 = vmatmul.mubr.f32.gmra.mrb[0].mxu0 %v650
      %v753 = vpop.f32.mrb[0].mxu0
      %v754 = vadd.f32 0.0, %v753
      %v755 = vpop.f32.mrb[0].mxu0
      %756 = vmatprep.mubr.f32.mxu0 0.0
      %757 = vmatmul.mubr.f32.gmra.mrb[0].mxu0 %v653
      %v758 = vpop.f32.mrb[0].mxu0
      %v759 = vadd.f32 0.0, %v758
      %v760 = vpop.f32.mrb[0].mxu0
      %761 = vmatprep.mubr.f32.mxu0 0.0
      %762 = vmatmul.mubr.f32.gmra.mrb[0].mxu0 %v656
      %v763 = vpop.f32.mrb[0].mxu0
      %v764 = vadd.f32 0.0, %v763
      %v765 = vpop.f32.mrb[0].mxu0
      %766 = vmatprep.mubr.f32.mxu0 0.0
      %767 = vmatmul.mubr.f32.gmra.mrb[0].mxu0 %v659
      %v768 = vpop.f32.mrb[0].mxu0
      %v769 = vadd.f32 0.0, %v768
      %v770 = vpop.f32.mrb[0].mxu0
      %771 = vmatprep.mubr.f32.mxu0 0.0
      %772 = vmatmul.mubr.f32.gmra.mrb[0].mxu0 %v662
      %v773 = vpop.f32.mrb[0].mxu0
      %v774 = vadd.f32 0.0, %v773
      %v775 = vpop.f32.mrb[0].mxu0
      %776 = vdwg.mxu0
      %v777 = vadd.f32 %v583, %v734
      %v778 = vadd.f32 %v588, %v739
      %v779 = vadd.f32 %v593, %v744
      %v780 = vadd.f32 %v598, %v749
      %v781 = vadd.f32 %v603, %v754
      %v782 = vadd.f32 %v608, %v759
      %v783 = vadd.f32 %v613, %v764
      %v784 = vadd.f32 %v618, %v769
      %v785 = vadd.f32 %v623, %v774
      %v786 = vld [vmem:[%s308] sm:$0xff]
      %v787 = vld [vmem:[%s308 + $0x8] sm:$0xff]
      %v788 = vld [vmem:[%s308 + $0x10] sm:$0xff]
      %v789 = vld [vmem:[%s308 + $0x18] sm:$0xff]
      %v790 = vld [vmem:[%s308 + $0x20] sm:$0xff]
      %v791 = vld [vmem:[%s308 + $0x28] sm:$0xff]
      %v792 = vld [vmem:[%s308 + $0x30] sm:$0xff]
      %v793 = vld [vmem:[%s308 + $0x38] sm:$0xff]
      %v794 = vld [vmem:[%s308 + $0x40] sm:$0xff]
      %s795 = scalar_lea.vmem %s4, 12
      %v796 = vld [vmem:[%s795] sm:$0xf]
      %v798 = vsel %vm344, %v786, 0
      %v801 = vsel %vm344, %v787, 0
      %v804 = vsel %vm344, %v788, 0
      %v807 = vsel %vm344, %v789, 0
      %v810 = vsel %vm344, %v790, 0
      %v813 = vsel %vm344, %v791, 0
      %v816 = vsel %vm344, %v792, 0
      %v819 = vsel %vm344, %v793, 0
      %v822 = vsel %vm344, %v794, 0
      %v825 = vsel %vm372, %v796, 0
      %827 = vmatprep.subr.mxu0 0.0
      %828 = vmatpush1.msra.mxu0 %v825
      %829 = vmatprep.subr.mxu0 0.0
      %830 = vmatpush1.msra.mxu0 0.0
      %831 = vmatprep.subr.mxu0 0.0
      %832 = vmatpush1.msra.mxu0 0.0
      %833 = vmatprep.subr.mxu0 0.0
      %834 = vmatpush1.msra.mxu0 0.0
      %835 = vmatprep.subr.mxu0 0.0
      %836 = vmatpush1.msra.mxu0 0.0
      %837 = vmatprep.subr.mxu0 0.0
      %838 = vmatpush1.msra.mxu0 0.0
      %839 = vmatprep.subr.mxu0 0.0
      %840 = vmatpush1.msra.mxu0 0.0
      %841 = vmatprep.subr.mxu0 0.0
      %842 = vmatpush1.msra.mxu0 0.0
      %843 = vmatprep.subr.mxu0 0.0
      %844 = vmatpush1.msra.mxu0 0.0
      %845 = vmatprep.subr.mxu0 0.0
      %846 = vmatpush1.msra.mxu0 0.0
      %847 = vmatprep.subr.mxu0 0.0
      %848 = vmatpush1.msra.mxu0 0.0
      %849 = vmatprep.subr.mxu0 0.0
      %850 = vmatpush1.msra.mxu0 0.0
      %851 = vmatprep.subr.mxu0 0.0
      %852 = vmatpush1.msra.mxu0 0.0
      %853 = vmatprep.subr.mxu0 0.0
      %854 = vmatpush1.msra.mxu0 0.0
      %855 = vmatprep.subr.mxu0 0.0
      %856 = vmatpush1.msra.mxu0 0.0
      %857 = vmatprep.subr.mxu0 0.0
      %858 = vmatpush1.msra.mxu0 0.0
      %859 = vmatprep.subr.mxu0 0.0
      %860 = vmatpush1.msra.mxu0 0.0
      %861 = vmatprep.subr.mxu0 0.0
      %862 = vmatpush1.msra.mxu0 0.0
      %863 = vmatprep.subr.mxu0 0.0
      %864 = vmatpush1.msra.mxu0 0.0
      %865 = vmatprep.subr.mxu0 0.0
      %866 = vmatpush1.msra.mxu0 0.0
      %867 = vmatprep.subr.mxu0 0.0
      %868 = vmatpush1.msra.mxu0 0.0
      %869 = vmatprep.subr.mxu0 0.0
      %870 = vmatpush1.msra.mxu0 0.0
      %871 = vmatprep.subr.mxu0 0.0
      %872 = vmatpush1.msra.mxu0 0.0
      %873 = vmatprep.subr.mxu0 0.0
      %874 = vmatpush1.msra.mxu0 0.0
      %875 = vmatprep.subr.mxu0 0.0
      %876 = vmatpush1.msra.mxu0 0.0
      %877 = vmatprep.subr.mxu0 0.0
      %878 = vmatpush1.msra.mxu0 0.0
      %879 = vmatprep.subr.mxu0 0.0
      %880 = vmatpush1.msra.mxu0 0.0
      %881 = vmatprep.subr.mxu0 0.0
      %882 = vmatpush1.msra.mxu0 0.0
      %883 = vmatprep.subr.mxu0 0.0
      %884 = vmatpush1.msra.mxu0 0.0
      %885 = vmatprep.subr.mxu0 0.0
      %886 = vmatpush1.msra.mxu0 0.0
      %887 = vmatprep.subr.mxu0 0.0
      %888 = vmatpush1.msra.mxu0 0.0
      %889 = vmatprep.subr.mxu0 0.0
      %890 = vmatpush1.msra.mxu0 0.0
      %891 = vmatprep.mubr.f32.mxu0 0.0
      %892 = vmatmul.mubr.f32.gmra.mrb[0].mxu0 %v798
      %v893 = vpop.f32.mrb[0].mxu0
      %v894 = vadd.f32 0.0, %v893
      %v895 = vpop.f32.mrb[0].mxu0
      %896 = vmatprep.mubr.f32.mxu0 0.0
      %897 = vmatmul.mubr.f32.gmra.mrb[0].mxu0 %v801
      %v898 = vpop.f32.mrb[0].mxu0
      %v899 = vadd.f32 0.0, %v898
      %v900 = vpop.f32.mrb[0].mxu0
      %901 = vmatprep.mubr.f32.mxu0 0.0
      %902 = vmatmul.mubr.f32.gmra.mrb[0].mxu0 %v804
      %v903 = vpop.f32.mrb[0].mxu0
      %v904 = vadd.f32 0.0, %v903
      %v905 = vpop.f32.mrb[0].mxu0
      %906 = vmatprep.mubr.f32.mxu0 0.0
      %907 = vmatmul.mubr.f32.gmra.mrb[0].mxu0 %v807
      %v908 = vpop.f32.mrb[0].mxu0
      %v909 = vadd.f32 0.0, %v908
      %v910 = vpop.f32.mrb[0].mxu0
      %911 = vmatprep.mubr.f32.mxu0 0.0
      %912 = vmatmul.mubr.f32.gmra.mrb[0].mxu0 %v810
      %v913 = vpop.f32.mrb[0].mxu0
      %v914 = vadd.f32 0.0, %v913
      %v915 = vpop.f32.mrb[0].mxu0
      %916 = vmatprep.mubr.f32.mxu0 0.0
      %917 = vmatmul.mubr.f32.gmra.mrb[0].mxu0 %v813
      %v918 = vpop.f32.mrb[0].mxu0
      %v919 = vadd.f32 0.0, %v918
      %v920 = vpop.f32.mrb[0].mxu0
      %921 = vmatprep.mubr.f32.mxu0 0.0
      %922 = vmatmul.mubr.f32.gmra.mrb[0].mxu0 %v816
      %v923 = vpop.f32.mrb[0].mxu0
      %v924 = vadd.f32 0.0, %v923
      %v925 = vpop.f32.mrb[0].mxu0
      %926 = vmatprep.mubr.f32.mxu0 0.0
      %927 = vmatmul.mubr.f32.gmra.mrb[0].mxu0 %v819
      %v928 = vpop.f32.mrb[0].mxu0
      %v929 = vadd.f32 0.0, %v928
      %v930 = vpop.f32.mrb[0].mxu0
      %931 = vmatprep.mubr.f32.mxu0 0.0
      %932 = vmatmul.mubr.f32.gmra.mrb[0].mxu0 %v822
      %v933 = vpop.f32.mrb[0].mxu0
      %v934 = vadd.f32 0.0, %v933
      %v935 = vpop.f32.mrb[0].mxu0
      %936 = vdwg.mxu0
      %v937 = vadd.f32 %v777, %v894
      %v938 = vadd.f32 %v778, %v899
      %v939 = vadd.f32 %v779, %v904
      %v940 = vadd.f32 %v780, %v909
      %v941 = vadd.f32 %v781, %v914
      %v942 = vadd.f32 %v782, %v919
      %v943 = vadd.f32 %v783, %v924
      %v944 = vadd.f32 %v784, %v929
      %v945 = vadd.f32 %v785, %v934
      %v946 = vld [vmem:[%s313] sm:$0xff]
      %v947 = vld [vmem:[%s313 + $0x8] sm:$0xff]
      %v948 = vld [vmem:[%s313 + $0x10] sm:$0xff]
      %v949 = vld [vmem:[%s313 + $0x18] sm:$0xff]
      %v950 = vld [vmem:[%s313 + $0x20] sm:$0xff]
      %v951 = vld [vmem:[%s313 + $0x28] sm:$0xff]
      %v952 = vld [vmem:[%s313 + $0x30] sm:$0xff]
      %v953 = vld [vmem:[%s313 + $0x38] sm:$0xff]
      %v954 = vld [vmem:[%s313 + $0x40] sm:$0xff]
      %s955 = scalar_lea.vmem %s4, 16
      %v956 = vld [vmem:[%s955] sm:$0xf]
      %v958 = vsel %vm344, %v946, 0
      %v961 = vsel %vm344, %v947, 0
      %v964 = vsel %vm344, %v948, 0
      %v967 = vsel %vm344, %v949, 0
      %v970 = vsel %vm344, %v950, 0
      %v973 = vsel %vm344, %v951, 0
      %v976 = vsel %vm344, %v952, 0
      %v979 = vsel %vm344, %v953, 0
      %v982 = vsel %vm344, %v954, 0
      %v985 = vsel %vm372, %v956, 0
      %987 = vmatprep.subr.mxu0 0.0
      %988 = vmatpush1.msra.mxu0 %v985
      %989 = vmatprep.subr.mxu0 0.0
      %990 = vmatpush1.msra.mxu0 0.0
      %991 = vmatprep.subr.mxu0 0.0
      %992 = vmatpush1.msra.mxu0 0.0
      %993 = vmatprep.subr.mxu0 0.0
      %994 = vmatpush1.msra.mxu0 0.0
      %995 = vmatprep.subr.mxu0 0.0
      %996 = vmatpush1.msra.mxu0 0.0
      %997 = vmatprep.subr.mxu0 0.0
      %998 = vmatpush1.msra.mxu0 0.0
      %999 = vmatprep.subr.mxu0 0.0
      %1000 = vmatpush1.msra.mxu0 0.0
      %1001 = vmatprep.subr.mxu0 0.0
      %1002 = vmatpush1.msra.mxu0 0.0
      %1003 = vmatprep.subr.mxu0 0.0
      %1004 = vmatpush1.msra.mxu0 0.0
      %1005 = vmatprep.subr.mxu0 0.0
      %1006 = vmatpush1.msra.mxu0 0.0
      %1007 = vmatprep.subr.mxu0 0.0
      %1008 = vmatpush1.msra.mxu0 0.0
      %1009 = vmatprep.subr.mxu0 0.0
      %1010 = vmatpush1.msra.mxu0 0.0
      %1011 = vmatprep.subr.mxu0 0.0
      %1012 = vmatpush1.msra.mxu0 0.0
      %1013 = vmatprep.subr.mxu0 0.0
      %1014 = vmatpush1.msra.mxu0 0.0
      %1015 = vmatprep.subr.mxu0 0.0
      %1016 = vmatpush1.msra.mxu0 0.0
      %1017 = vmatprep.subr.mxu0 0.0
      %1018 = vmatpush1.msra.mxu0 0.0
      %1019 = vmatprep.subr.mxu0 0.0
      %1020 = vmatpush1.msra.mxu0 0.0
      %1021 = vmatprep.subr.mxu0 0.0
      %1022 = vmatpush1.msra.mxu0 0.0
      %1023 = vmatprep.subr.mxu0 0.0
      %1024 = vmatpush1.msra.mxu0 0.0
      %1025 = vmatprep.subr.mxu0 0.0
      %1026 = vmatpush1.msra.mxu0 0.0
      %1027 = vmatprep.subr.mxu0 0.0
      %1028 = vmatpush1.msra.mxu0 0.0
      %1029 = vmatprep.subr.mxu0 0.0
      %1030 = vmatpush1.msra.mxu0 0.0
      %1031 = vmatprep.subr.mxu0 0.0
      %1032 = vmatpush1.msra.mxu0 0.0
      %1033 = vmatprep.subr.mxu0 0.0
      %1034 = vmatpush1.msra.mxu0 0.0
      %1035 = vmatprep.subr.mxu0 0.0
      %1036 = vmatpush1.msra.mxu0 0.0
      %1037 = vmatprep.subr.mxu0 0.0
      %1038 = vmatpush1.msra.mxu0 0.0
      %1039 = vmatprep.subr.mxu0 0.0
      %1040 = vmatpush1.msra.mxu0 0.0
      %1041 = vmatprep.subr.mxu0 0.0
      %1042 = vmatpush1.msra.mxu0 0.0
      %1043 = vmatprep.subr.mxu0 0.0
      %1044 = vmatpush1.msra.mxu0 0.0
      %1045 = vmatprep.subr.mxu0 0.0
      %1046 = vmatpush1.msra.mxu0 0.0
      %1047 = vmatprep.subr.mxu0 0.0
      %1048 = vmatpush1.msra.mxu0 0.0
      %1049 = vmatprep.subr.mxu0 0.0
      %1050 = vmatpush1.msra.mxu0 0.0
      %1051 = vmatprep.mubr.f32.mxu0 0.0
      %1052 = vmatmul.mubr.f32.gmra.mrb[0].mxu0 %v958
      %v1053 = vpop.f32.mrb[0].mxu0
      %v1054 = vadd.f32 0.0, %v1053
      %v1055 = vpop.f32.mrb[0].mxu0
      %1056 = vmatprep.mubr.f32.mxu0 0.0
      %1057 = vmatmul.mubr.f32.gmra.mrb[0].mxu0 %v961
      %v1058 = vpop.f32.mrb[0].mxu0
      %v1059 = vadd.f32 0.0, %v1058
      %v1060 = vpop.f32.mrb[0].mxu0
      %1061 = vmatprep.mubr.f32.mxu0 0.0
      %1062 = vmatmul.mubr.f32.gmra.mrb[0].mxu0 %v964
      %v1063 = vpop.f32.mrb[0].mxu0
      %v1064 = vadd.f32 0.0, %v1063
      %v1065 = vpop.f32.mrb[0].mxu0
      %1066 = vmatprep.mubr.f32.mxu0 0.0
      %1067 = vmatmul.mubr.f32.gmra.mrb[0].mxu0 %v967
      %v1068 = vpop.f32.mrb[0].mxu0
      %v1069 = vadd.f32 0.0, %v1068
      %v1070 = vpop.f32.mrb[0].mxu0
      %1071 = vmatprep.mubr.f32.mxu0 0.0
      %1072 = vmatmul.mubr.f32.gmra.mrb[0].mxu0 %v970
      %v1073 = vpop.f32.mrb[0].mxu0
      %v1074 = vadd.f32 0.0, %v1073
      %v1075 = vpop.f32.mrb[0].mxu0
      %1076 = vmatprep.mubr.f32.mxu0 0.0
      %1077 = vmatmul.mubr.f32.gmra.mrb[0].mxu0 %v973
      %v1078 = vpop.f32.mrb[0].mxu0
      %v1079 = vadd.f32 0.0, %v1078
      %v1080 = vpop.f32.mrb[0].mxu0
      %1081 = vmatprep.mubr.f32.mxu0 0.0
      %1082 = vmatmul.mubr.f32.gmra.mrb[0].mxu0 %v976
      %v1083 = vpop.f32.mrb[0].mxu0
      %v1084 = vadd.f32 0.0, %v1083
      %v1085 = vpop.f32.mrb[0].mxu0
      %1086 = vmatprep.mubr.f32.mxu0 0.0
      %1087 = vmatmul.mubr.f32.gmra.mrb[0].mxu0 %v979
      %v1088 = vpop.f32.mrb[0].mxu0
      %v1089 = vadd.f32 0.0, %v1088
      %v1090 = vpop.f32.mrb[0].mxu0
      %1091 = vmatprep.mubr.f32.mxu0 0.0
      %1092 = vmatmul.mubr.f32.gmra.mrb[0].mxu0 %v982
      %v1093 = vpop.f32.mrb[0].mxu0
      %v1094 = vadd.f32 0.0, %v1093
      %v1095 = vpop.f32.mrb[0].mxu0
      %1096 = vdwg.mxu0
      %v1097 = vadd.f32 %v937, %v1054
      %v1098 = vadd.f32 %v938, %v1059
      %v1099 = vadd.f32 %v939, %v1064
      %v1100 = vadd.f32 %v940, %v1069
      %v1101 = vadd.f32 %v941, %v1074
      %v1102 = vadd.f32 %v942, %v1079
      %v1103 = vadd.f32 %v943, %v1084
      %v1104 = vadd.f32 %v944, %v1089
      %v1105 = vadd.f32 %v945, %v1094
      %v1106 = vld [vmem:[%s308 + $0x1] sm:$0xff]
      %v1107 = vld [vmem:[%s308 + $0x9] sm:$0xff]
      %v1108 = vld [vmem:[%s308 + $0x11] sm:$0xff]
      %v1109 = vld [vmem:[%s308 + $0x19] sm:$0xff]
      %v1110 = vld [vmem:[%s308 + $0x21] sm:$0xff]
      %v1111 = vld [vmem:[%s308 + $0x29] sm:$0xff]
      %v1112 = vld [vmem:[%s308 + $0x31] sm:$0xff]
      %v1113 = vld [vmem:[%s308 + $0x39] sm:$0xff]
      %v1114 = vld [vmem:[%s308 + $0x41] sm:$0xff]
      %s1115 = scalar_lea.vmem %s4, 20
      %v1116 = vld [vmem:[%s1115] sm:$0xf]
      %v1118 = vsel %vm344, %v1106, 0
      %v1121 = vsel %vm344, %v1107, 0
      %v1124 = vsel %vm344, %v1108, 0
      %v1127 = vsel %vm344, %v1109, 0
      %v1130 = vsel %vm344, %v1110, 0
      %v1133 = vsel %vm344, %v1111, 0
      %v1136 = vsel %vm344, %v1112, 0
      %v1139 = vsel %vm344, %v1113, 0
      %v1142 = vsel %vm344, %v1114, 0
      %v1145 = vsel %vm372, %v1116, 0
      %1147 = vmatprep.subr.mxu0 0.0
      %1148 = vmatpush1.msra.mxu0 %v1145
      %1149 = vmatprep.subr.mxu0 0.0
      %1150 = vmatpush1.msra.mxu0 0.0
      %1151 = vmatprep.subr.mxu0 0.0
      %1152 = vmatpush1.msra.mxu0 0.0
      %1153 = vmatprep.subr.mxu0 0.0
      %1154 = vmatpush1.msra.mxu0 0.0
      %1155 = vmatprep.subr.mxu0 0.0
      %1156 = vmatpush1.msra.mxu0 0.0
      %1157 = vmatprep.subr.mxu0 0.0
      %1158 = vmatpush1.msra.mxu0 0.0
      %1159 = vmatprep.subr.mxu0 0.0
      %1160 = vmatpush1.msra.mxu0 0.0
      %1161 = vmatprep.subr.mxu0 0.0
      %1162 = vmatpush1.msra.mxu0 0.0
      %1163 = vmatprep.subr.mxu0 0.0
      %1164 = vmatpush1.msra.mxu0 0.0
      %1165 = vmatprep.subr.mxu0 0.0
      %1166 = vmatpush1.msra.mxu0 0.0
      %1167 = vmatprep.subr.mxu0 0.0
      %1168 = vmatpush1.msra.mxu0 0.0
      %1169 = vmatprep.subr.mxu0 0.0
      %1170 = vmatpush1.msra.mxu0 0.0
      %1171 = vmatprep.subr.mxu0 0.0
      %1172 = vmatpush1.msra.mxu0 0.0
      %1173 = vmatprep.subr.mxu0 0.0
      %1174 = vmatpush1.msra.mxu0 0.0
      %1175 = vmatprep.subr.mxu0 0.0
      %1176 = vmatpush1.msra.mxu0 0.0
      %1177 = vmatprep.subr.mxu0 0.0
      %1178 = vmatpush1.msra.mxu0 0.0
      %1179 = vmatprep.subr.mxu0 0.0
      %1180 = vmatpush1.msra.mxu0 0.0
      %1181 = vmatprep.subr.mxu0 0.0
      %1182 = vmatpush1.msra.mxu0 0.0
      %1183 = vmatprep.subr.mxu0 0.0
      %1184 = vmatpush1.msra.mxu0 0.0
      %1185 = vmatprep.subr.mxu0 0.0
      %1186 = vmatpush1.msra.mxu0 0.0
      %1187 = vmatprep.subr.mxu0 0.0
      %1188 = vmatpush1.msra.mxu0 0.0
      %1189 = vmatprep.subr.mxu0 0.0
      %1190 = vmatpush1.msra.mxu0 0.0
      %1191 = vmatprep.subr.mxu0 0.0
      %1192 = vmatpush1.msra.mxu0 0.0
      %1193 = vmatprep.subr.mxu0 0.0
      %1194 = vmatpush1.msra.mxu0 0.0
      %1195 = vmatprep.subr.mxu0 0.0
      %1196 = vmatpush1.msra.mxu0 0.0
      %1197 = vmatprep.subr.mxu0 0.0
      %1198 = vmatpush1.msra.mxu0 0.0
      %1199 = vmatprep.subr.mxu0 0.0
      %1200 = vmatpush1.msra.mxu0 0.0
      %1201 = vmatprep.subr.mxu0 0.0
      %1202 = vmatpush1.msra.mxu0 0.0
      %1203 = vmatprep.subr.mxu0 0.0
      %1204 = vmatpush1.msra.mxu0 0.0
      %1205 = vmatprep.subr.mxu0 0.0
      %1206 = vmatpush1.msra.mxu0 0.0
      %1207 = vmatprep.subr.mxu0 0.0
      %1208 = vmatpush1.msra.mxu0 0.0
      %1209 = vmatprep.subr.mxu0 0.0
      %1210 = vmatpush1.msra.mxu0 0.0
      %1211 = vmatprep.mubr.f32.mxu0 0.0
      %1212 = vmatmul.mubr.f32.gmra.mrb[0].mxu0 %v1118
      %v1213 = vpop.f32.mrb[0].mxu0
      %v1214 = vadd.f32 0.0, %v1213
      %v1215 = vpop.f32.mrb[0].mxu0
      %1216 = vmatprep.mubr.f32.mxu0 0.0
      %1217 = vmatmul.mubr.f32.gmra.mrb[0].mxu0 %v1121
      %v1218 = vpop.f32.mrb[0].mxu0
      %v1219 = vadd.f32 0.0, %v1218
      %v1220 = vpop.f32.mrb[0].mxu0
      %1221 = vmatprep.mubr.f32.mxu0 0.0
      %1222 = vmatmul.mubr.f32.gmra.mrb[0].mxu0 %v1124
      %v1223 = vpop.f32.mrb[0].mxu0
      %v1224 = vadd.f32 0.0, %v1223
      %v1225 = vpop.f32.mrb[0].mxu0
      %1226 = vmatprep.mubr.f32.mxu0 0.0
      %1227 = vmatmul.mubr.f32.gmra.mrb[0].mxu0 %v1127
      %v1228 = vpop.f32.mrb[0].mxu0
      %v1229 = vadd.f32 0.0, %v1228
      %v1230 = vpop.f32.mrb[0].mxu0
      %1231 = vmatprep.mubr.f32.mxu0 0.0
      %1232 = vmatmul.mubr.f32.gmra.mrb[0].mxu0 %v1130
      %v1233 = vpop.f32.mrb[0].mxu0
      %v1234 = vadd.f32 0.0, %v1233
      %v1235 = vpop.f32.mrb[0].mxu0
      %1236 = vmatprep.mubr.f32.mxu0 0.0
      %1237 = vmatmul.mubr.f32.gmra.mrb[0].mxu0 %v1133
      %v1238 = vpop.f32.mrb[0].mxu0
      %v1239 = vadd.f32 0.0, %v1238
      %v1240 = vpop.f32.mrb[0].mxu0
      %1241 = vmatprep.mubr.f32.mxu0 0.0
      %1242 = vmatmul.mubr.f32.gmra.mrb[0].mxu0 %v1136
      %v1243 = vpop.f32.mrb[0].mxu0
      %v1244 = vadd.f32 0.0, %v1243
      %v1245 = vpop.f32.mrb[0].mxu0
      %1246 = vmatprep.mubr.f32.mxu0 0.0
      %1247 = vmatmul.mubr.f32.gmra.mrb[0].mxu0 %v1139
      %v1248 = vpop.f32.mrb[0].mxu0
      %v1249 = vadd.f32 0.0, %v1248
      %v1250 = vpop.f32.mrb[0].mxu0
      %1251 = vmatprep.mubr.f32.mxu0 0.0
      %1252 = vmatmul.mubr.f32.gmra.mrb[0].mxu0 %v1142
      %v1253 = vpop.f32.mrb[0].mxu0
      %v1254 = vadd.f32 0.0, %v1253
      %v1255 = vpop.f32.mrb[0].mxu0
      %1256 = vdwg.mxu0
      %v1257 = vadd.f32 %v1097, %v1214
      %v1258 = vadd.f32 %v1098, %v1219
      %v1259 = vadd.f32 %v1099, %v1224
      %v1260 = vadd.f32 %v1100, %v1229
      %v1261 = vadd.f32 %v1101, %v1234
      %v1262 = vadd.f32 %v1102, %v1239
      %v1263 = vadd.f32 %v1103, %v1244
      %v1264 = vadd.f32 %v1104, %v1249
      %v1265 = vadd.f32 %v1105, %v1254
      %v1266 = vld [vmem:[%s298 + $0x9] sm:$0xff]
      %v1267 = vld [vmem:[%s298 + $0x11] sm:$0xff]
      %v1268 = vld [vmem:[%s298 + $0x19] sm:$0xff]
      %v1269 = vld [vmem:[%s298 + $0x21] sm:$0xff]
      %v1270 = vld [vmem:[%s298 + $0x29] sm:$0xff]
      %v1271 = vld [vmem:[%s298 + $0x31] sm:$0xff]
      %v1272 = vld [vmem:[%s298 + $0x39] sm:$0xff]
      %v1273 = vld [vmem:[%s298 + $0x41] sm:$0xff]
      %v1274 = vld [vmem:[%s298 + $0x49] sm:$0xff]
      %s1275 = scalar_lea.vmem %s4, 24
      %v1276 = vld [vmem:[%s1275] sm:$0xf]
      %v1278 = vsel %vm344, %v1266, 0
      %v1281 = vsel %vm344, %v1267, 0
      %v1284 = vsel %vm344, %v1268, 0
      %v1287 = vsel %vm344, %v1269, 0
      %v1290 = vsel %vm344, %v1270, 0
      %v1293 = vsel %vm344, %v1271, 0
      %v1296 = vsel %vm344, %v1272, 0
      %v1299 = vsel %vm344, %v1273, 0
      %v1302 = vsel %vm344, %v1274, 0
      %v1305 = vsel %vm372, %v1276, 0
      %1307 = vmatprep.subr.mxu0 0.0
      %1308 = vmatpush1.msra.mxu0 %v1305
      %1309 = vmatprep.subr.mxu0 0.0
      %1310 = vmatpush1.msra.mxu0 0.0
      %1311 = vmatprep.subr.mxu0 0.0
      %1312 = vmatpush1.msra.mxu0 0.0
      %1313 = vmatprep.subr.mxu0 0.0
      %1314 = vmatpush1.msra.mxu0 0.0
      %1315 = vmatprep.subr.mxu0 0.0
      %1316 = vmatpush1.msra.mxu0 0.0
      %1317 = vmatprep.subr.mxu0 0.0
      %1318 = vmatpush1.msra.mxu0 0.0
      %1319 = vmatprep.subr.mxu0 0.0
      %1320 = vmatpush1.msra.mxu0 0.0
      %1321 = vmatprep.subr.mxu0 0.0
      %1322 = vmatpush1.msra.mxu0 0.0
      %1323 = vmatprep.subr.mxu0 0.0
      %1324 = vmatpush1.msra.mxu0 0.0
      %1325 = vmatprep.subr.mxu0 0.0
      %1326 = vmatpush1.msra.mxu0 0.0
      %1327 = vmatprep.subr.mxu0 0.0
      %1328 = vmatpush1.msra.mxu0 0.0
      %1329 = vmatprep.subr.mxu0 0.0
      %1330 = vmatpush1.msra.mxu0 0.0
      %1331 = vmatprep.subr.mxu0 0.0
      %1332 = vmatpush1.msra.mxu0 0.0
      %1333 = vmatprep.subr.mxu0 0.0
      %1334 = vmatpush1.msra.mxu0 0.0
      %1335 = vmatprep.subr.mxu0 0.0
      %1336 = vmatpush1.msra.mxu0 0.0
      %1337 = vmatprep.subr.mxu0 0.0
      %1338 = vmatpush1.msra.mxu0 0.0
      %1339 = vmatprep.subr.mxu0 0.0
      %1340 = vmatpush1.msra.mxu0 0.0
      %1341 = vmatprep.subr.mxu0 0.0
      %1342 = vmatpush1.msra.mxu0 0.0
      %1343 = vmatprep.subr.mxu0 0.0
      %1344 = vmatpush1.msra.mxu0 0.0
      %1345 = vmatprep.subr.mxu0 0.0
      %1346 = vmatpush1.msra.mxu0 0.0
      %1347 = vmatprep.subr.mxu0 0.0
      %1348 = vmatpush1.msra.mxu0 0.0
      %1349 = vmatprep.subr.mxu0 0.0
      %1350 = vmatpush1.msra.mxu0 0.0
      %1351 = vmatprep.subr.mxu0 0.0
      %1352 = vmatpush1.msra.mxu0 0.0
      %1353 = vmatprep.subr.mxu0 0.0
      %1354 = vmatpush1.msra.mxu0 0.0
      %1355 = vmatprep.subr.mxu0 0.0
      %1356 = vmatpush1.msra.mxu0 0.0
      %1357 = vmatprep.subr.mxu0 0.0
      %1358 = vmatpush1.msra.mxu0 0.0
      %1359 = vmatprep.subr.mxu0 0.0
      %1360 = vmatpush1.msra.mxu0 0.0
      %1361 = vmatprep.subr.mxu0 0.0
      %1362 = vmatpush1.msra.mxu0 0.0
      %1363 = vmatprep.subr.mxu0 0.0
      %1364 = vmatpush1.msra.mxu0 0.0
      %1365 = vmatprep.subr.mxu0 0.0
      %1366 = vmatpush1.msra.mxu0 0.0
      %1367 = vmatprep.subr.mxu0 0.0
      %1368 = vmatpush1.msra.mxu0 0.0
      %1369 = vmatprep.subr.mxu0 0.0
      %1370 = vmatpush1.msra.mxu0 0.0
      %1371 = vmatprep.mubr.f32.mxu0 0.0
      %1372 = vmatmul.mubr.f32.gmra.mrb[0].mxu0 %v1278
      %v1373 = vpop.f32.mrb[0].mxu0
      %v1374 = vadd.f32 0.0, %v1373
      %v1375 = vpop.f32.mrb[0].mxu0
      %1376 = vmatprep.mubr.f32.mxu0 0.0
      %1377 = vmatmul.mubr.f32.gmra.mrb[0].mxu0 %v1281
      %v1378 = vpop.f32.mrb[0].mxu0
      %v1379 = vadd.f32 0.0, %v1378
      %v1380 = vpop.f32.mrb[0].mxu0
      %1381 = vmatprep.mubr.f32.mxu0 0.0
      %1382 = vmatmul.mubr.f32.gmra.mrb[0].mxu0 %v1284
      %v1383 = vpop.f32.mrb[0].mxu0
      %v1384 = vadd.f32 0.0, %v1383
      %v1385 = vpop.f32.mrb[0].mxu0
      %1386 = vmatprep.mubr.f32.mxu0 0.0
      %1387 = vmatmul.mubr.f32.gmra.mrb[0].mxu0 %v1287
      %v1388 = vpop.f32.mrb[0].mxu0
      %v1389 = vadd.f32 0.0, %v1388
      %v1390 = vpop.f32.mrb[0].mxu0
      %1391 = vmatprep.mubr.f32.mxu0 0.0
      %1392 = vmatmul.mubr.f32.gmra.mrb[0].mxu0 %v1290
      %v1393 = vpop.f32.mrb[0].mxu0
      %v1394 = vadd.f32 0.0, %v1393
      %v1395 = vpop.f32.mrb[0].mxu0
      %1396 = vmatprep.mubr.f32.mxu0 0.0
      %1397 = vmatmul.mubr.f32.gmra.mrb[0].mxu0 %v1293
      %v1398 = vpop.f32.mrb[0].mxu0
      %v1399 = vadd.f32 0.0, %v1398
      %v1400 = vpop.f32.mrb[0].mxu0
      %1401 = vmatprep.mubr.f32.mxu0 0.0
      %1402 = vmatmul.mubr.f32.gmra.mrb[0].mxu0 %v1296
      %v1403 = vpop.f32.mrb[0].mxu0
      %v1404 = vadd.f32 0.0, %v1403
      %v1405 = vpop.f32.mrb[0].mxu0
      %1406 = vmatprep.mubr.f32.mxu0 0.0
      %1407 = vmatmul.mubr.f32.gmra.mrb[0].mxu0 %v1299
      %v1408 = vpop.f32.mrb[0].mxu0
      %v1409 = vadd.f32 0.0, %v1408
      %v1410 = vpop.f32.mrb[0].mxu0
      %1411 = vmatprep.mubr.f32.mxu0 0.0
      %1412 = vmatmul.mubr.f32.gmra.mrb[0].mxu0 %v1302
      %v1413 = vpop.f32.mrb[0].mxu0
      %v1414 = vadd.f32 0.0, %v1413
      %v1415 = vpop.f32.mrb[0].mxu0
      %1416 = vdwg.mxu0
      %v1417 = vadd.f32 %v1257, %v1374
      %v1418 = vadd.f32 %v1258, %v1379
      %v1419 = vadd.f32 %v1259, %v1384
      %v1420 = vadd.f32 %v1260, %v1389
      %v1421 = vadd.f32 %v1261, %v1394
      %v1422 = vadd.f32 %v1262, %v1399
      %v1423 = vadd.f32 %v1263, %v1404
      %v1424 = vadd.f32 %v1264, %v1409
      %v1425 = vadd.f32 %v1265, %v1414
      %v1426 = vld [vmem:[%s303 + $0x9] sm:$0xff]
      %v1427 = vld [vmem:[%s303 + $0x11] sm:$0xff]
      %v1428 = vld [vmem:[%s303 + $0x19] sm:$0xff]
      %v1429 = vld [vmem:[%s303 + $0x21] sm:$0xff]
      %v1430 = vld [vmem:[%s303 + $0x29] sm:$0xff]
      %v1431 = vld [vmem:[%s303 + $0x31] sm:$0xff]
      %v1432 = vld [vmem:[%s303 + $0x39] sm:$0xff]
      %v1433 = vld [vmem:[%s303 + $0x41] sm:$0xff]
      %v1434 = vld [vmem:[%s303 + $0x49] sm:$0xff]
      %s1435 = scalar_lea.vmem %s4, 28
      %v1436 = vld [vmem:[%s1435] sm:$0xf]
      %v1438 = vsel %vm344, %v1426, 0
      %v1441 = vsel %vm344, %v1427, 0
      %v1444 = vsel %vm344, %v1428, 0
      %v1447 = vsel %vm344, %v1429, 0
      %v1450 = vsel %vm344, %v1430, 0
      %v1453 = vsel %vm344, %v1431, 0
      %v1456 = vsel %vm344, %v1432, 0
      %v1459 = vsel %vm344, %v1433, 0
      %v1462 = vsel %vm344, %v1434, 0
      %v1465 = vsel %vm372, %v1436, 0
      %1467 = vmatprep.subr.mxu0 0.0
      %1468 = vmatpush1.msra.mxu0 %v1465
      %1469 = vmatprep.subr.mxu0 0.0
      %1470 = vmatpush1.msra.mxu0 0.0
      %1471 = vmatprep.subr.mxu0 0.0
      %1472 = vmatpush1.msra.mxu0 0.0
      %1473 = vmatprep.subr.mxu0 0.0
      %1474 = vmatpush1.msra.mxu0 0.0
      %1475 = vmatprep.subr.mxu0 0.0
      %1476 = vmatpush1.msra.mxu0 0.0
      %1477 = vmatprep.subr.mxu0 0.0
      %1478 = vmatpush1.msra.mxu0 0.0
      %1479 = vmatprep.subr.mxu0 0.0
      %1480 = vmatpush1.msra.mxu0 0.0
      %1481 = vmatprep.subr.mxu0 0.0
      %1482 = vmatpush1.msra.mxu0 0.0
      %1483 = vmatprep.subr.mxu0 0.0
      %1484 = vmatpush1.msra.mxu0 0.0
      %1485 = vmatprep.subr.mxu0 0.0
      %1486 = vmatpush1.msra.mxu0 0.0
      %1487 = vmatprep.subr.mxu0 0.0
      %1488 = vmatpush1.msra.mxu0 0.0
      %1489 = vmatprep.subr.mxu0 0.0
      %1490 = vmatpush1.msra.mxu0 0.0
      %1491 = vmatprep.subr.mxu0 0.0
      %1492 = vmatpush1.msra.mxu0 0.0
      %1493 = vmatprep.subr.mxu0 0.0
      %1494 = vmatpush1.msra.mxu0 0.0
      %1495 = vmatprep.subr.mxu0 0.0
      %1496 = vmatpush1.msra.mxu0 0.0
      %1497 = vmatprep.subr.mxu0 0.0
      %1498 = vmatpush1.msra.mxu0 0.0
      %1499 = vmatprep.subr.mxu0 0.0
      %1500 = vmatpush1.msra.mxu0 0.0
      %1501 = vmatprep.subr.mxu0 0.0
      %1502 = vmatpush1.msra.mxu0 0.0
      %1503 = vmatprep.subr.mxu0 0.0
      %1504 = vmatpush1.msra.mxu0 0.0
      %1505 = vmatprep.subr.mxu0 0.0
      %1506 = vmatpush1.msra.mxu0 0.0
      %1507 = vmatprep.subr.mxu0 0.0
      %1508 = vmatpush1.msra.mxu0 0.0
      %1509 = vmatprep.subr.mxu0 0.0
      %1510 = vmatpush1.msra.mxu0 0.0
      %1511 = vmatprep.subr.mxu0 0.0
      %1512 = vmatpush1.msra.mxu0 0.0
      %1513 = vmatprep.subr.mxu0 0.0
      %1514 = vmatpush1.msra.mxu0 0.0
      %1515 = vmatprep.subr.mxu0 0.0
      %1516 = vmatpush1.msra.mxu0 0.0
      %1517 = vmatprep.subr.mxu0 0.0
      %1518 = vmatpush1.msra.mxu0 0.0
      %1519 = vmatprep.subr.mxu0 0.0
      %1520 = vmatpush1.msra.mxu0 0.0
      %1521 = vmatprep.subr.mxu0 0.0
      %1522 = vmatpush1.msra.mxu0 0.0
      %1523 = vmatprep.subr.mxu0 0.0
      %1524 = vmatpush1.msra.mxu0 0.0
      %1525 = vmatprep.subr.mxu0 0.0
      %1526 = vmatpush1.msra.mxu0 0.0
      %1527 = vmatprep.subr.mxu0 0.0
      %1528 = vmatpush1.msra.mxu0 0.0
      %1529 = vmatprep.subr.mxu0 0.0
      %1530 = vmatpush1.msra.mxu0 0.0
      %1531 = vmatprep.mubr.f32.mxu0 0.0
      %1532 = vmatmul.mubr.f32.gmra.mrb[0].mxu0 %v1438
      %v1533 = vpop.f32.mrb[0].mxu0
      %v1534 = vadd.f32 0.0, %v1533
      %v1535 = vpop.f32.mrb[0].mxu0
      %1536 = vmatprep.mubr.f32.mxu0 0.0
      %1537 = vmatmul.mubr.f32.gmra.mrb[0].mxu0 %v1441
      %v1538 = vpop.f32.mrb[0].mxu0
      %v1539 = vadd.f32 0.0, %v1538
      %v1540 = vpop.f32.mrb[0].mxu0
      %1541 = vmatprep.mubr.f32.mxu0 0.0
      %1542 = vmatmul.mubr.f32.gmra.mrb[0].mxu0 %v1444
      %v1543 = vpop.f32.mrb[0].mxu0
      %v1544 = vadd.f32 0.0, %v1543
      %v1545 = vpop.f32.mrb[0].mxu0
      %1546 = vmatprep.mubr.f32.mxu0 0.0
      %1547 = vmatmul.mubr.f32.gmra.mrb[0].mxu0 %v1447
      %v1548 = vpop.f32.mrb[0].mxu0
      %v1549 = vadd.f32 0.0, %v1548
      %v1550 = vpop.f32.mrb[0].mxu0
      %1551 = vmatprep.mubr.f32.mxu0 0.0
      %1552 = vmatmul.mubr.f32.gmra.mrb[0].mxu0 %v1450
      %v1553 = vpop.f32.mrb[0].mxu0
      %v1554 = vadd.f32 0.0, %v1553
      %v1555 = vpop.f32.mrb[0].mxu0
      %1556 = vmatprep.mubr.f32.mxu0 0.0
      %1557 = vmatmul.mubr.f32.gmra.mrb[0].mxu0 %v1453
      %v1558 = vpop.f32.mrb[0].mxu0
      %v1559 = vadd.f32 0.0, %v1558
      %v1560 = vpop.f32.mrb[0].mxu0
      %1561 = vmatprep.mubr.f32.mxu0 0.0
      %1562 = vmatmul.mubr.f32.gmra.mrb[0].mxu0 %v1456
      %v1563 = vpop.f32.mrb[0].mxu0
      %v1564 = vadd.f32 0.0, %v1563
      %v1565 = vpop.f32.mrb[0].mxu0
      %1566 = vmatprep.mubr.f32.mxu0 0.0
      %1567 = vmatmul.mubr.f32.gmra.mrb[0].mxu0 %v1459
      %v1568 = vpop.f32.mrb[0].mxu0
      %v1569 = vadd.f32 0.0, %v1568
      %v1570 = vpop.f32.mrb[0].mxu0
      %1571 = vmatprep.mubr.f32.mxu0 0.0
      %1572 = vmatmul.mubr.f32.gmra.mrb[0].mxu0 %v1462
      %v1573 = vpop.f32.mrb[0].mxu0
      %v1574 = vadd.f32 0.0, %v1573
      %v1575 = vpop.f32.mrb[0].mxu0
      %1576 = vdwg.mxu0
      %v1577 = vadd.f32 %v1417, %v1534
      %v1578 = vadd.f32 %v1418, %v1539
      %v1579 = vadd.f32 %v1419, %v1544
      %v1580 = vadd.f32 %v1420, %v1549
      %v1581 = vadd.f32 %v1421, %v1554
      %v1582 = vadd.f32 %v1422, %v1559
      %v1583 = vadd.f32 %v1423, %v1564
      %v1584 = vadd.f32 %v1424, %v1569
      %v1585 = vadd.f32 %v1425, %v1574
      %v1586 = vld [vmem:[%s298 + $0xa] sm:$0xff]
      %v1587 = vld [vmem:[%s298 + $0x12] sm:$0xff]
      %v1588 = vld [vmem:[%s298 + $0x1a] sm:$0xff]
      %v1589 = vld [vmem:[%s298 + $0x22] sm:$0xff]
      %v1590 = vld [vmem:[%s298 + $0x2a] sm:$0xff]
      %v1591 = vld [vmem:[%s298 + $0x32] sm:$0xff]
      %v1592 = vld [vmem:[%s298 + $0x3a] sm:$0xff]
      %v1593 = vld [vmem:[%s298 + $0x42] sm:$0xff]
      %v1594 = vld [vmem:[%s298 + $0x4a] sm:$0xff]
      %s1595 = scalar_lea.vmem %s4, 32
      %v1596 = vld [vmem:[%s1595] sm:$0xf]
      %v1598 = vsel %vm344, %v1586, 0
      %v1601 = vsel %vm344, %v1587, 0
      %v1604 = vsel %vm344, %v1588, 0
      %v1607 = vsel %vm344, %v1589, 0
      %v1610 = vsel %vm344, %v1590, 0
      %v1613 = vsel %vm344, %v1591, 0
      %v1616 = vsel %vm344, %v1592, 0
      %v1619 = vsel %vm344, %v1593, 0
      %v1622 = vsel %vm344, %v1594, 0
      %v1625 = vsel %vm372, %v1596, 0
      %1627 = vmatprep.subr.mxu0 0.0
      %1628 = vmatpush1.msra.mxu0 %v1625
      %1629 = vmatprep.subr.mxu0 0.0
      %1630 = vmatpush1.msra.mxu0 0.0
      %1631 = vmatprep.subr.mxu0 0.0
      %1632 = vmatpush1.msra.mxu0 0.0
      %1633 = vmatprep.subr.mxu0 0.0
      %1634 = vmatpush1.msra.mxu0 0.0
      %1635 = vmatprep.subr.mxu0 0.0
      %1636 = vmatpush1.msra.mxu0 0.0
      %1637 = vmatprep.subr.mxu0 0.0
      %1638 = vmatpush1.msra.mxu0 0.0
      %1639 = vmatprep.subr.mxu0 0.0
      %1640 = vmatpush1.msra.mxu0 0.0
      %1641 = vmatprep.subr.mxu0 0.0
      %1642 = vmatpush1.msra.mxu0 0.0
      %1643 = vmatprep.subr.mxu0 0.0
      %1644 = vmatpush1.msra.mxu0 0.0
      %1645 = vmatprep.subr.mxu0 0.0
      %1646 = vmatpush1.msra.mxu0 0.0
      %1647 = vmatprep.subr.mxu0 0.0
      %1648 = vmatpush1.msra.mxu0 0.0
      %1649 = vmatprep.subr.mxu0 0.0
      %1650 = vmatpush1.msra.mxu0 0.0
      %1651 = vmatprep.subr.mxu0 0.0
      %1652 = vmatpush1.msra.mxu0 0.0
      %1653 = vmatprep.subr.mxu0 0.0
      %1654 = vmatpush1.msra.mxu0 0.0
      %1655 = vmatprep.subr.mxu0 0.0
      %1656 = vmatpush1.msra.mxu0 0.0
      %1657 = vmatprep.subr.mxu0 0.0
      %1658 = vmatpush1.msra.mxu0 0.0
      %1659 = vmatprep.subr.mxu0 0.0
      %1660 = vmatpush1.msra.mxu0 0.0
      %1661 = vmatprep.subr.mxu0 0.0
      %1662 = vmatpush1.msra.mxu0 0.0
      %1663 = vmatprep.subr.mxu0 0.0
      %1664 = vmatpush1.msra.mxu0 0.0
      %1665 = vmatprep.subr.mxu0 0.0
      %1666 = vmatpush1.msra.mxu0 0.0
      %1667 = vmatprep.subr.mxu0 0.0
      %1668 = vmatpush1.msra.mxu0 0.0
      %1669 = vmatprep.subr.mxu0 0.0
      %1670 = vmatpush1.msra.mxu0 0.0
      %1671 = vmatprep.subr.mxu0 0.0
      %1672 = vmatpush1.msra.mxu0 0.0
      %1673 = vmatprep.subr.mxu0 0.0
      %1674 = vmatpush1.msra.mxu0 0.0
      %1675 = vmatprep.subr.mxu0 0.0
      %1676 = vmatpush1.msra.mxu0 0.0
      %1677 = vmatprep.subr.mxu0 0.0
      %1678 = vmatpush1.msra.mxu0 0.0
      %1679 = vmatprep.subr.mxu0 0.0
      %1680 = vmatpush1.msra.mxu0 0.0
      %1681 = vmatprep.subr.mxu0 0.0
      %1682 = vmatpush1.msra.mxu0 0.0
      %1683 = vmatprep.subr.mxu0 0.0
      %1684 = vmatpush1.msra.mxu0 0.0
      %1685 = vmatprep.subr.mxu0 0.0
      %1686 = vmatpush1.msra.mxu0 0.0
      %1687 = vmatprep.subr.mxu0 0.0
      %1688 = vmatpush1.msra.mxu0 0.0
      %1689 = vmatprep.subr.mxu0 0.0
      %1690 = vmatpush1.msra.mxu0 0.0
      %1691 = vmatprep.mubr.f32.mxu0 0.0
      %1692 = vmatmul.mubr.f32.gmra.mrb[0].mxu0 %v1598
      %v1693 = vpop.f32.mrb[0].mxu0
      %v1694 = vadd.f32 0.0, %v1693
      %v1695 = vpop.f32.mrb[0].mxu0
      %1696 = vmatprep.mubr.f32.mxu0 0.0
      %1697 = vmatmul.mubr.f32.gmra.mrb[0].mxu0 %v1601
      %v1698 = vpop.f32.mrb[0].mxu0
      %v1699 = vadd.f32 0.0, %v1698
      %v1700 = vpop.f32.mrb[0].mxu0
      %1701 = vmatprep.mubr.f32.mxu0 0.0
      %1702 = vmatmul.mubr.f32.gmra.mrb[0].mxu0 %v1604
      %v1703 = vpop.f32.mrb[0].mxu0
      %v1704 = vadd.f32 0.0, %v1703
      %v1705 = vpop.f32.mrb[0].mxu0
      %1706 = vmatprep.mubr.f32.mxu0 0.0
      %1707 = vmatmul.mubr.f32.gmra.mrb[0].mxu0 %v1607
      %v1708 = vpop.f32.mrb[0].mxu0
      %v1709 = vadd.f32 0.0, %v1708
      %v1710 = vpop.f32.mrb[0].mxu0
      %1711 = vmatprep.mubr.f32.mxu0 0.0
      %1712 = vmatmul.mubr.f32.gmra.mrb[0].mxu0 %v1610
      %v1713 = vpop.f32.mrb[0].mxu0
      %v1714 = vadd.f32 0.0, %v1713
      %v1715 = vpop.f32.mrb[0].mxu0
      %1716 = vmatprep.mubr.f32.mxu0 0.0
      %1717 = vmatmul.mubr.f32.gmra.mrb[0].mxu0 %v1613
      %v1718 = vpop.f32.mrb[0].mxu0
      %v1719 = vadd.f32 0.0, %v1718
      %v1720 = vpop.f32.mrb[0].mxu0
      %1721 = vmatprep.mubr.f32.mxu0 0.0
      %1722 = vmatmul.mubr.f32.gmra.mrb[0].mxu0 %v1616
      %v1723 = vpop.f32.mrb[0].mxu0
      %v1724 = vadd.f32 0.0, %v1723
      %v1725 = vpop.f32.mrb[0].mxu0
      %1726 = vmatprep.mubr.f32.mxu0 0.0
      %1727 = vmatmul.mubr.f32.gmra.mrb[0].mxu0 %v1619
      %v1728 = vpop.f32.mrb[0].mxu0
      %v1729 = vadd.f32 0.0, %v1728
      %v1730 = vpop.f32.mrb[0].mxu0
      %1731 = vmatprep.mubr.f32.mxu0 0.0
      %1732 = vmatmul.mubr.f32.gmra.mrb[0].mxu0 %v1622
      %v1733 = vpop.f32.mrb[0].mxu0
      %v1734 = vadd.f32 0.0, %v1733
      %v1735 = vpop.f32.mrb[0].mxu0
      %1736 = vdwg.mxu0
      %v1737 = vadd.f32 %v1577, %v1694
      %v1738 = vadd.f32 %v1578, %v1699
      %v1739 = vadd.f32 %v1579, %v1704
      %v1740 = vadd.f32 %v1580, %v1709
      %v1741 = vadd.f32 %v1581, %v1714
      %v1742 = vadd.f32 %v1582, %v1719
      %v1743 = vadd.f32 %v1583, %v1724
      %v1744 = vadd.f32 %v1584, %v1729
      %v1745 = vadd.f32 %v1585, %v1734
      %1746 = vst [vmem:[%s318] sm:$0xff] %v1737
      %1747 = vst [vmem:[%s318 + $0x8] sm:$0xff] %v1738
      %1748 = vst [vmem:[%s318 + $0x10] sm:$0xff] %v1739
      %1749 = vst [vmem:[%s318 + $0x18] sm:$0xff] %v1740
      %1750 = vst [vmem:[%s318 + $0x20] sm:$0xff] %v1741
      %1751 = vst [vmem:[%s318 + $0x28] sm:$0xff] %v1742
      %1752 = vst [vmem:[%s318 + $0x30] sm:$0xff] %v1743
      %1753 = vst [vmem:[%s318 + $0x38] sm:$0xff] %v1744
      %1754 = vst [vmem:[%s318 + $0x40] sm:$0xff] %v1745
      %v1755 = vlaneseq
      %v1756 = vshrl.u32 %v1755, 7
      %v1757 = vadd.s32 %v1756, 8
      %v1758 = vadd.s32 %v1756, 16
      %v1759 = vadd.s32 %v1756, 24
      %v1760 = vadd.s32 %v1756, 32
      %v1761 = vadd.s32 %v1756, 40
      %v1762 = vadd.s32 %v1756, 48
      %v1763 = vadd.s32 %v1756, 56
      %v1764 = vadd.s32 %v1756, 64
      %vm1765 = vcmp.lt.s32.totalorder %v1756, 0
      %v1766 = vsub.s32 0, %v1756
      %v1767 = vsel %vm1765, %v1766, %v1756
      %v1768 = vmul.u32.u64.compose %v1767, 3817748708
      %v1769 = vextract.low.u32 %v1768
      %v1770 = vextract.high.u32 %v1768
      %v1771 = vshrl.u32 %v1770, 3
      %v1772 = vmul.u32 %v1771, 9
      %v1773 = vsub.s32 %v1767, %v1772
      %v1774 = vsub.s32 0, %v1773
      %v1775 = vsel %vm1765, %v1774, %v1773
      %vm1776 = vcmp.lt.s32.totalorder %v1757, 0
      %v1777 = vsub.s32 0, %v1757
      %v1778 = vsel %vm1776, %v1777, %v1757
      %v1779 = vmul.u32.u64.compose %v1778, 3817748708
      %v1780 = vextract.low.u32 %v1779
      %v1781 = vextract.high.u32 %v1779
      %v1782 = vshrl.u32 %v1781, 3
      %v1783 = vmul.u32 %v1782, 9
      %v1784 = vsub.s32 %v1778, %v1783
      %v1785 = vsub.s32 0, %v1784
      %v1786 = vsel %vm1776, %v1785, %v1784
      %vm1787 = vcmp.lt.s32.totalorder %v1758, 0
      %v1788 = vsub.s32 0, %v1758
      %v1789 = vsel %vm1787, %v1788, %v1758
      %v1790 = vmul.u32.u64.compose %v1789, 3817748708
      %v1791 = vextract.low.u32 %v1790
      %v1792 = vextract.high.u32 %v1790
      %v1793 = vshrl.u32 %v1792, 3
      %v1794 = vmul.u32 %v1793, 9
      %v1795 = vsub.s32 %v1789, %v1794
      %v1796 = vsub.s32 0, %v1795
      %v1797 = vsel %vm1787, %v1796, %v1795
      %vm1798 = vcmp.lt.s32.totalorder %v1759, 0
      %v1799 = vsub.s32 0, %v1759
      %v1800 = vsel %vm1798, %v1799, %v1759
      %v1801 = vmul.u32.u64.compose %v1800, 3817748708
      %v1802 = vextract.low.u32 %v1801
      %v1803 = vextract.high.u32 %v1801
      %v1804 = vshrl.u32 %v1803, 3
      %v1805 = vmul.u32 %v1804, 9
      %v1806 = vsub.s32 %v1800, %v1805
      %v1807 = vsub.s32 0, %v1806
      %v1808 = vsel %vm1798, %v1807, %v1806
      %vm1809 = vcmp.lt.s32.totalorder %v1760, 0
      %v1810 = vsub.s32 0, %v1760
      %v1811 = vsel %vm1809, %v1810, %v1760
      %v1812 = vmul.u32.u64.compose %v1811, 3817748708
      %v1813 = vextract.low.u32 %v1812
      %v1814 = vextract.high.u32 %v1812
      %v1815 = vshrl.u32 %v1814, 3
      %v1816 = vmul.u32 %v1815, 9
      %v1817 = vsub.s32 %v1811, %v1816
      %v1818 = vsub.s32 0, %v1817
      %v1819 = vsel %vm1809, %v1818, %v1817
      %vm1820 = vcmp.lt.s32.totalorder %v1761, 0
      %v1821 = vsub.s32 0, %v1761
      %v1822 = vsel %vm1820, %v1821, %v1761
      %v1823 = vmul.u32.u64.compose %v1822, 3817748708
      %v1824 = vextract.low.u32 %v1823
      %v1825 = vextract.high.u32 %v1823
      %v1826 = vshrl.u32 %v1825, 3
      %v1827 = vmul.u32 %v1826, 9
      %v1828 = vsub.s32 %v1822, %v1827
      %v1829 = vsub.s32 0, %v1828
      %v1830 = vsel %vm1820, %v1829, %v1828
      %vm1831 = vcmp.lt.s32.totalorder %v1762, 0
      %v1832 = vsub.s32 0, %v1762
      %v1833 = vsel %vm1831, %v1832, %v1762
      %v1834 = vmul.u32.u64.compose %v1833, 3817748708
      %v1835 = vextract.low.u32 %v1834
      %v1836 = vextract.high.u32 %v1834
      %v1837 = vshrl.u32 %v1836, 3
      %v1838 = vmul.u32 %v1837, 9
      %v1839 = vsub.s32 %v1833, %v1838
      %v1840 = vsub.s32 0, %v1839
      %v1841 = vsel %vm1831, %v1840, %v1839
      %vm1842 = vcmp.lt.s32.totalorder %v1763, 0
      %v1843 = vsub.s32 0, %v1763
      %v1844 = vsel %vm1842, %v1843, %v1763
      %v1845 = vmul.u32.u64.compose %v1844, 3817748708
      %v1846 = vextract.low.u32 %v1845
      %v1847 = vextract.high.u32 %v1845
      %v1848 = vshrl.u32 %v1847, 3
      %v1849 = vmul.u32 %v1848, 9
      %v1850 = vsub.s32 %v1844, %v1849
      %v1851 = vsub.s32 0, %v1850
      %v1852 = vsel %vm1842, %v1851, %v1850
      %vm1853 = vcmp.lt.s32.totalorder %v1764, 0
      %v1854 = vsub.s32 0, %v1764
      %v1855 = vsel %vm1853, %v1854, %v1764
      %v1856 = vmul.u32.u64.compose %v1855, 3817748708
      %v1857 = vextract.low.u32 %v1856
      %v1858 = vextract.high.u32 %v1856
      %v1859 = vshrl.u32 %v1858, 3
      %v1860 = vmul.u32 %v1859, 9
      %v1861 = vsub.s32 %v1855, %v1860
      %v1862 = vsub.s32 0, %v1861
      %v1863 = vsel %vm1853, %v1862, %v1861
      %vm1864 = vcmp.ne.s32.totalorder %v1775, 0
      %vm1865 = vcmp.ne.s32.totalorder %v1786, 0
      %vm1866 = vcmp.ne.s32.totalorder %v1797, 0
      %vm1867 = vcmp.ne.s32.totalorder %v1808, 0
      %vm1868 = vcmp.ne.s32.totalorder %v1819, 0
      %vm1869 = vcmp.ne.s32.totalorder %v1830, 0
      %vm1870 = vcmp.ne.s32.totalorder %v1841, 0
      %vm1871 = vcmp.ne.s32.totalorder %v1852, 0
      %vm1872 = vcmp.ne.s32.totalorder %v1863, 0
      %vm1873 = vcmp.lt.s32.totalorder %v1775, 0
      %vm1874 = vcmp.lt.s32.totalorder %v1786, 0
      %vm1875 = vcmp.lt.s32.totalorder %v1797, 0
      %vm1876 = vcmp.lt.s32.totalorder %v1808, 0
      %vm1877 = vcmp.lt.s32.totalorder %v1819, 0
      %vm1878 = vcmp.lt.s32.totalorder %v1830, 0
      %vm1879 = vcmp.lt.s32.totalorder %v1841, 0
      %vm1880 = vcmp.lt.s32.totalorder %v1852, 0
      %vm1881 = vcmp.lt.s32.totalorder %v1863, 0
      %vm1882 = vmand %vm1873, %vm1864
      %vm1883 = vmand %vm1874, %vm1865
      %vm1884 = vmand %vm1875, %vm1866
      %vm1885 = vmand %vm1876, %vm1867
      %vm1886 = vmand %vm1877, %vm1868
      %vm1887 = vmand %vm1878, %vm1869
      %vm1888 = vmand %vm1879, %vm1870
      %vm1889 = vmand %vm1880, %vm1871
      %vm1890 = vmand %vm1881, %vm1872
      %v1891 = vadd.s32 %v1775, 9
      %v1892 = vadd.s32 %v1786, 9
      %v1893 = vadd.s32 %v1797, 9
      %v1894 = vadd.s32 %v1808, 9
      %v1895 = vadd.s32 %v1819, 9
      %v1896 = vadd.s32 %v1830, 9
      %v1897 = vadd.s32 %v1841, 9
      %v1898 = vadd.s32 %v1852, 9
      %v1899 = vadd.s32 %v1863, 9
      %v1900 = vsel %vm1882, %v1891, %v1775
      %v1901 = vsel %vm1883, %v1892, %v1786
      %v1902 = vsel %vm1884, %v1893, %v1797
      %v1903 = vsel %vm1885, %v1894, %v1808
      %v1904 = vsel %vm1886, %v1895, %v1819
      %v1905 = vsel %vm1887, %v1896, %v1830
      %v1906 = vsel %vm1888, %v1897, %v1841
      %v1907 = vsel %vm1889, %v1898, %v1852
      %v1908 = vsel %vm1890, %v1899, %v1863
      %vm1909 = vcmp.lt.s32.totalorder %v1900, 8
      %vm1910 = vcmp.lt.s32.totalorder %v1901, 8
      %vm1911 = vcmp.lt.s32.totalorder %v1902, 8
      %vm1912 = vcmp.lt.s32.totalorder %v1903, 8
      %vm1913 = vcmp.lt.s32.totalorder %v1904, 8
      %vm1914 = vcmp.lt.s32.totalorder %v1905, 8
      %vm1915 = vcmp.lt.s32.totalorder %v1906, 8
      %vm1916 = vcmp.lt.s32.totalorder %v1907, 8
      %vm1917 = vcmp.lt.s32.totalorder %v1908, 8
      %v1918 = vsel %vm1909, 1, 0
      %v1919 = vsel %vm1910, 1, 0
      %v1920 = vsel %vm1911, 1, 0
      %v1921 = vsel %vm1912, 1, 0
      %v1922 = vsel %vm1913, 1, 0
      %v1923 = vsel %vm1914, 1, 0
      %v1924 = vsel %vm1915, 1, 0
      %v1925 = vsel %vm1916, 1, 0
      %v1926 = vsel %vm1917, 1, 0
      %vm1927 = vcmp.eq.s32.totalorder %v1918, 1
      %vm1928 = vcmp.eq.s32.totalorder %v1919, 1
      %vm1929 = vcmp.eq.s32.totalorder %v1920, 1
      %vm1930 = vcmp.eq.s32.totalorder %v1921, 1
      %vm1931 = vcmp.eq.s32.totalorder %v1922, 1
      %vm1932 = vcmp.eq.s32.totalorder %v1923, 1
      %vm1933 = vcmp.eq.s32.totalorder %v1924, 1
      %vm1934 = vcmp.eq.s32.totalorder %v1925, 1
      %vm1935 = vcmp.eq.s32.totalorder %v1926, 1
      %v1936 = vsel %vm1927, %v1737, 0.0
      %v1937 = vsel %vm1928, %v1738, 0.0
      %v1938 = vsel %vm1929, %v1739, 0.0
      %v1939 = vsel %vm1930, %v1740, 0.0
      %v1940 = vsel %vm1931, %v1741, 0.0
      %v1941 = vsel %vm1932, %v1742, 0.0
      %v1942 = vsel %vm1933, %v1743, 0.0
      %v1943 = vsel %vm1934, %v1744, 0.0
      %v1944 = vsel %vm1935, %v1745, 0.0
      %v1945 = vadd.f32 %v1936, %v1937
      %v1946 = vadd.f32 %v1945, %v1938
      %v1947 = vadd.f32 %v1946, %v1939
      %v1948 = vadd.f32 %v1947, %v1940
      %v1949 = vadd.f32 %v1948, %v1941
      %v1950 = vadd.f32 %v1949, %v1942
      %v1951 = vadd.f32 %v1950, %v1943
      %v1952 = vadd.f32 %v1951, %v1944
      %v1953 = vrot.slane %v1952, 4
      %v1954 = vadd.f32 %v1952, %v1953
      %v1955 = vrot.slane %v1954, 2
      %v1956 = vadd.f32 %v1954, %v1955
      %v1957 = vrot.slane %v1956, 1
      %v1958 = vadd.f32 %v1956, %v1957
      %1959 = vst [vmem:[%s322] sm:$0x1] %v1958
      %v1960 = vmul.f32 %v1936, %v1936
      %v1961 = vmul.f32 %v1937, %v1937
      %v1962 = vmul.f32 %v1938, %v1938
      %v1963 = vmul.f32 %v1939, %v1939
      %v1964 = vmul.f32 %v1940, %v1940
      %v1965 = vmul.f32 %v1941, %v1941
      %v1966 = vmul.f32 %v1942, %v1942
      %v1967 = vmul.f32 %v1943, %v1943
      %v1968 = vmul.f32 %v1944, %v1944
      %v1969 = vadd.f32 %v1960, %v1961
      %v1970 = vadd.f32 %v1969, %v1962
      %v1971 = vadd.f32 %v1970, %v1963
      %v1972 = vadd.f32 %v1971, %v1964
      %v1973 = vadd.f32 %v1972, %v1965
      %v1974 = vadd.f32 %v1973, %v1966
      %v1975 = vadd.f32 %v1974, %v1967
      %v1976 = vadd.f32 %v1975, %v1968
      %v1977 = vrot.slane %v1976, 4
      %v1978 = vadd.f32 %v1976, %v1977
      %v1979 = vrot.slane %v1978, 2
      %v1980 = vadd.f32 %v1978, %v1979
      %v1981 = vrot.slane %v1980, 1
      %v1982 = vadd.f32 %v1980, %v1981
      %1983 = vst [vmem:[%s322 + $0x1] sm:$0x1] %v1982
      %p1984 = scmp.lt.s32.totalorder %s18, 1
      %s1985 = scalar_select %p1984, %s18, 1
      %s1986 = smul.addr %s1985, 9
      %s1987 = smul.addr %s1986, 8
      %s1988 = scalar_lea.vmem %s5, %s1987
      %p1989 = scmp.lt.s32.totalorder %s18, 1
      %s1990 = scalar_select %p1989, %s18, 1
      %s1991 = smul.addr %s1990, 2
      %s1992 = scalar_lea.vmem %s6, %s1991
      // Predicated region
      $region41: #{block_forward.4} parent=39 // pred_check
        %p1993 = pneg %p161
      $region42: #{block_forward.4} parent=39 // pred_check_branch
        %1995 = sbr.rel (%p1993) target = $region44
      $region43: #{block_forward.4} parent=39 // pred_region
        _
      $region44: #{block_forward.4} parent=39 // pred_fallthru
        _
      // Predicated region
      $region45: #{block_forward.4} parent=39 // pred_check
        %p1996 = pneg %p187
      $region46: #{block_forward.4} parent=39 // pred_check_branch
        %1998 = sbr.rel (%p1996) target = $region48
      $region47: #{block_forward.4} parent=39 // pred_region
        _
      $region48: #{block_forward.4} parent=39 // pred_fallthru
        _
    $region40: #{block_forward.4} parent=5 // pred_fallthru
      _
    %p1999 = scmp.le.s32.totalorder 2, %s13
    // Predicated region
    $region49: #{block_forward.4} parent=5 // pred_check
      %p2000 = pneg %p1999
    $region50: #{block_forward.4} parent=5 // pred_check_branch
      %2002 = sbr.rel (%p2000) target = $region52
    $region51: #{block_forward.4} parent=5 // pred_region
      %s2003 = ssub.s32 %s13, 2
      // Predicated region
      $region53: #{block_forward.4} parent=51 // pred_check
        %p2004 = pneg %p167
      $region54: #{block_forward.4} parent=51 // pred_check_branch
        %2006 = sbr.rel (%p2004) target = $region56
      $region55: #{block_forward.4} parent=51 // pred_region
        %p2007 = scmp.lt.s32.totalorder %s19, 1
        %s2008 = scalar_select %p2007, %s19, 1
        %s2009 = smul.addr %s2008, 9
        %s2010 = smul.addr %s2009, 8
        %s2011 = scalar_lea.vmem %s5, %s2010
      $region56: #{block_forward.4} parent=51 // pred_fallthru
        _
      // Predicated region
      $region57: #{block_forward.4} parent=51 // pred_check
        %p2012 = pneg %p193
      $region58: #{block_forward.4} parent=51 // pred_check_branch
        %2014 = sbr.rel (%p2012) target = $region60
      $region59: #{block_forward.4} parent=51 // pred_region
        %p2015 = scmp.lt.s32.totalorder %s19, 1
        %s2016 = scalar_select %p2015, %s19, 1
        %s2017 = smul.addr %s2016, 2
        %s2018 = scalar_lea.vmem %s6, %s2017
      $region60: #{block_forward.4} parent=51 // pred_fallthru
        _
    $region52: #{block_forward.4} parent=5 // pred_fallthru
      _
  $region6: #{block_forward.4} parent=0 // loop_footer
    %s17 = sadd.s32 1, %s13
  $region7: #{block_forward.4} parent=0 // loop_footer_branch
    %12 = sbr.rel target = $region3
  $region8: #{block_forward.4} parent=0 // loop_exit
    _

// kernel: block_forward.5
$region0: #{block_forward.5}
  #allocation0 [shape = 'u32[]', space=smem, size = 0x4, offset = 0x4, fixed_abs, tag = 'smem constant byte address 0x4 - core index']
  #allocation1 [shape = 'u32[144,128]{1,0:T(1,128)}', space=vmem, size = 0x12000, scoped, tag = 'internal scratch']
  %s0 = inlined_call_operand.vmem [shape: f32[2,102,128], index: 0, kind: input, shape index: {}]
  %s1 = inlined_call_operand.vmem [shape: f32[9,128,128], index: 1, kind: input, shape index: {}]
  %s2 = inlined_call_operand.vmem [shape: f32[2,80,128], index: 2, kind: output, shape index: {0}]
  %s3 = inlined_call_operand.vmem [shape: f32[2,2,128], index: 3, kind: output, shape index: {1}]
  %4 = xla_tuple %s2, %s3
  %s5 = sld [smem:[#allocation0]]
  $region49: #{block_forward.5} parent=0
    _
  %s7 = ssub.s32 1, %s5
  %s8 = scalar_select 0, %s7, %s5
  loop: start=0, step=1, limit=4
  $region2: #{block_forward.5} parent=0 // loop_pre_header
    _
  $region3: #{block_forward.5} parent=0 // loop_header
    %s10 = sphi 0, %s14
    %p11 = scmp.ge.s32.totalorder %s10, 4
    %s20 = sphi 0, %s22
    %s23 = sphi 0, %s20
    %s24 = sphi 0, %s23
    %s40 = sphi 0, %s24
    %s44 = sphi 0, %s44
    %s46 = sphi 0, %s44
    %s47 = sphi 0, %s46
    %s61 = sphi 0, %s47
    %s67 = sphi 0, %s69
    %s70 = sphi 0, %s67
    %s71 = sphi 0, %s70
    %s87 = sphi 0, %s71
    %s93 = sphi 0, %s95
    %s96 = sphi 0, %s93
    %s97 = sphi 0, %s96
    %s113 = sphi 0, %s97
  $region4: #{block_forward.5} parent=0 // loop_header_branch
    %13 = sbr.rel (%p11) target = $region8
  $region5: #{block_forward.5} parent=0 // loop_body
    %s15 = ssub.s32 %s10, 1
    %s16 = ssub.s32 %s10, 2
    %s17 = sadd.s32 %s10, 1
    %s18 = ssub.s32 %s10, %s17
    %p19 = scmp.eq.s32.totalorder %s18, 0
    %s21 = sadd.s32 %s20, 1
    %s22 = scalar_select %p19, %s20, %s21
    %p25 = pneg %p19
    %p26 = scmp.eq.s32.totalorder %s10, 1
    %p27 = por %p25, %p26
    %p28 = scmp.ne.s32.totalorder %s20, %s23
    %p29 = scmp.eq.s32.totalorder %s10, 0
    %p30 = por %p28, %p29
    %p31 = scmp.ne.s32.totalorder %s20, %s23
    %p32 = scmp.eq.s32.totalorder %s15, 1
    %p33 = por %p31, %p32
    %p34 = scmp.ne.s32.totalorder %s23, %s24
    %p35 = scmp.eq.s32.totalorder %s15, 0
    %p36 = por %p34, %p35
    %p37 = scmp.ne.s32.totalorder %s23, %s24
    %p38 = scmp.eq.s32.totalorder %s16, 1
    %p39 = por %p37, %p38
    %p41 = scmp.ne.s32.totalorder %s24, %s40
    %p42 = scmp.eq.s32.totalorder %s16, 0
    %p43 = por %p41, %p42
    %s45 = sadd.s32 %s44, 1
    %p48 = scmp.eq.s32.totalorder %s10, 1
    %p49 = scmp.ne.s32.totalorder %s44, %s46
    %p50 = scmp.eq.s32.totalorder %s10, 0
    %p51 = por %p49, %p50
    %p52 = scmp.ne.s32.totalorder %s44, %s46
    %p53 = scmp.eq.s32.totalorder %s15, 1
    %p54 = por %p52, %p53
    %p55 = scmp.ne.s32.totalorder %s46, %s47
    %p56 = scmp.eq.s32.totalorder %s15, 0
    %p57 = por %p55, %p56
    %p58 = scmp.ne.s32.totalorder %s46, %s47
    %p59 = scmp.eq.s32.totalorder %s16, 1
    %p60 = por %p58, %p59
    %p62 = scmp.ne.s32.totalorder %s47, %s61
    %p63 = scmp.eq.s32.totalorder %s16, 0
    %p64 = por %p62, %p63
    %s65 = ssub.s32 %s10, %s17
    %p66 = scmp.eq.s32.totalorder %s65, 0
    %s68 = sadd.s32 %s67, 1
    %s69 = scalar_select %p66, %s67, %s68
    %p72 = pneg %p66
    %p73 = scmp.eq.s32.totalorder %s10, 1
    %p74 = por %p72, %p73
    %p75 = scmp.ne.s32.totalorder %s67, %s70
    %p76 = scmp.eq.s32.totalorder %s10, 0
    %p77 = por %p75, %p76
    %p78 = scmp.ne.s32.totalorder %s67, %s70
    %p79 = scmp.eq.s32.totalorder %s15, 1
    %p80 = por %p78, %p79
    %p81 = scmp.ne.s32.totalorder %s70, %s71
    %p82 = scmp.eq.s32.totalorder %s15, 0
    %p83 = por %p81, %p82
    %p84 = scmp.ne.s32.totalorder %s70, %s71
    %p85 = scmp.eq.s32.totalorder %s16, 1
    %p86 = por %p84, %p85
    %p88 = scmp.ne.s32.totalorder %s71, %s87
    %p89 = scmp.eq.s32.totalorder %s16, 0
    %p90 = por %p88, %p89
    %s91 = ssub.s32 %s10, %s17
    %p92 = scmp.eq.s32.totalorder %s91, 0
    %s94 = sadd.s32 %s93, 1
    %s95 = scalar_select %p92, %s93, %s94
    %p98 = pneg %p92
    %p99 = scmp.eq.s32.totalorder %s10, 1
    %p100 = por %p98, %p99
    %p101 = scmp.ne.s32.totalorder %s93, %s96
    %p102 = scmp.eq.s32.totalorder %s10, 0
    %p103 = por %p101, %p102
    %p104 = scmp.ne.s32.totalorder %s93, %s96
    %p105 = scmp.eq.s32.totalorder %s15, 1
    %p106 = por %p104, %p105
    %p107 = scmp.ne.s32.totalorder %s96, %s97
    %p108 = scmp.eq.s32.totalorder %s15, 0
    %p109 = por %p107, %p108
    %p110 = scmp.ne.s32.totalorder %s96, %s97
    %p111 = scmp.eq.s32.totalorder %s16, 1
    %p112 = por %p110, %p111
    %p114 = scmp.ne.s32.totalorder %s97, %s113
    %p115 = scmp.eq.s32.totalorder %s16, 0
    %p116 = por %p114, %p115
    %p117 = scmp.le.s32.totalorder 1, %s10
    %p118 = scmp.lt.s32.totalorder %s10, 3
    %p119 = pnand %p117, %p118
    %p120 = pneg %p119
    // Predicated region
    $region9: #{block_forward.5} parent=5 // pred_check
      _
    $region10: #{block_forward.5} parent=5 // pred_check_branch
      %122 = sbr.rel (%p119) target = $region12
    $region11: #{block_forward.5} parent=5 // pred_region
      %s123 = ssub.s32 %s10, 1
      // Predicated region
      $region13: #{block_forward.5} parent=11 // pred_check
        %p124 = pneg %p57
      $region14: #{block_forward.5} parent=11 // pred_check_branch
        %126 = sbr.rel (%p124) target = $region16
      $region15: #{block_forward.5} parent=11 // pred_region
        _
      $region16: #{block_forward.5} parent=11 // pred_fallthru
        _
    $region12: #{block_forward.5} parent=5 // pred_fallthru
      _
    %p127 = scmp.lt.s32.totalorder %s10, 2
    // Predicated region
    $region17: #{block_forward.5} parent=5 // pred_check
      %p128 = pneg %p127
    $region18: #{block_forward.5} parent=5 // pred_check_branch
      %130 = sbr.rel (%p128) target = $region20
    $region19: #{block_forward.5} parent=5 // pred_region
      // Predicated region
      $region21: #{block_forward.5} parent=19 // pred_check
        %p131 = pneg %p30
      $region22: #{block_forward.5} parent=19 // pred_check_branch
        %133 = sbr.rel (%p131) target = $region24
      $region23: #{block_forward.5} parent=19 // pred_region
        %p134 = scmp.lt.s32.totalorder %s10, 1
        %s135 = scalar_select %p134, %s10, 1
        %s136 = smul.addr %s135, 13
        %s137 = smul.addr %s136, 8
        %s138 = scalar_lea.vmem %s0, %s137
      $region24: #{block_forward.5} parent=19 // pred_fallthru
        _
    $region20: #{block_forward.5} parent=5 // pred_fallthru
      _
    %p139 = scmp.le.s32.totalorder 1, %s10
    %p140 = scmp.lt.s32.totalorder %s10, 3
    %p141 = pnand %p139, %p140
    %p142 = pneg %p141
    // Predicated region
    $region25: #{block_forward.5} parent=5 // pred_check
      _
    $region26: #{block_forward.5} parent=5 // pred_check_branch
      %144 = sbr.rel (%p141) target = $region28
    $region27: #{block_forward.5} parent=5 // pred_region
      %s145 = ssub.s32 %s10, 1
      %p146 = scmp.lt.s32.totalorder %s15, 1
      %s147 = scalar_select %p146, %s15, 1
      %s148 = smul.addr %s147, 13
      %s149 = smul.addr %s148, 8
      %s150 = scalar_lea.vmem %s0, %s149
      %p151 = pneg %p36
      %p152 = pneg %p33
      %p153 = pneg %p57
      %p154 = pneg %p54
      %p155 = pneg %p83
      %p156 = pneg %p80
      %p157 = scmp.lt.s32.totalorder %s15, 1
      %s158 = scalar_select %p157, %s15, 1
      %s159 = smul.addr %s158, 10
      %s160 = smul.addr %s159, 8
      %s161 = scalar_lea.vmem %s2, %s160
      %p162 = pneg %p109
      %p163 = pneg %p106
      %p164 = scmp.lt.s32.totalorder %s15, 1
      %s165 = scalar_select %p164, %s15, 1
      %s166 = smul.addr %s165, 2
      %s167 = scalar_lea.vmem %s3, %s166
      %p168 = scmp.lt.s32.totalorder %s15, 1
      %s169 = scalar_select %p168, %s15, 1
      %s170 = smul.addr %s169, 13
      %s171 = smul.addr %s170, 8
      %s172 = scalar_lea.vmem %s0, %s171
      %p173 = scmp.lt.s32.totalorder %s15, 1
      %s174 = scalar_select %p173, %s15, 1
      %s175 = smul.addr %s174, 10
      %s176 = smul.addr %s175, 8
      %s177 = scalar_lea.vmem %s2, %s176
      %p178 = scmp.lt.s32.totalorder %s15, 1
      %s179 = scalar_select %p178, %s15, 1
      %s180 = smul.addr %s179, 2
      %s181 = scalar_lea.vmem %s3, %s180
      %v182 = vld [vmem:[%s172] sm:$0xff]
      %v183 = vld [vmem:[%s172 + $0x8] sm:$0xff]
      %v184 = vld [vmem:[%s172 + $0x10] sm:$0xff]
      %v185 = vld [vmem:[%s172 + $0x18] sm:$0xff]
      %v186 = vld [vmem:[%s172 + $0x20] sm:$0xff]
      %v187 = vld [vmem:[%s172 + $0x28] sm:$0xff]
      %v188 = vld [vmem:[%s172 + $0x30] sm:$0xff]
      %v189 = vld [vmem:[%s172 + $0x38] sm:$0xff]
      %v190 = vld [vmem:[%s172 + $0x40] sm:$0xff]
      %v191 = vld [vmem:[%s172 + $0x48] sm:$0xff]
      %v192 = vld [vmem:[%s1] sm:$0xff]
      %v193 = vld [vmem:[%s1 + $0x8] sm:$0xff]
      %v194 = vld [vmem:[%s1 + $0x10] sm:$0xff]
      %v195 = vld [vmem:[%s1 + $0x18] sm:$0xff]
      %v196 = vld [vmem:[%s1 + $0x20] sm:$0xff]
      %v197 = vld [vmem:[%s1 + $0x28] sm:$0xff]
      %v198 = vld [vmem:[%s1 + $0x30] sm:$0xff]
      %v199 = vld [vmem:[%s1 + $0x38] sm:$0xff]
      %v200 = vld [vmem:[%s1 + $0x40] sm:$0xff]
      %v201 = vld [vmem:[%s1 + $0x48] sm:$0xff]
      %v202 = vld [vmem:[%s1 + $0x50] sm:$0xff]
      %v203 = vld [vmem:[%s1 + $0x58] sm:$0xff]
      %v204 = vld [vmem:[%s1 + $0x60] sm:$0xff]
      %v205 = vld [vmem:[%s1 + $0x68] sm:$0xff]
      %v206 = vld [vmem:[%s1 + $0x70] sm:$0xff]
      %v207 = vld [vmem:[%s1 + $0x78] sm:$0xff]
      %v208 = vld [vmem:[%s172 + $0x1] sm:$0xff]
      %v209 = vld [vmem:[%s172 + $0x9] sm:$0xff]
      %v210 = vld [vmem:[%s172 + $0x11] sm:$0xff]
      %v211 = vld [vmem:[%s172 + $0x19] sm:$0xff]
      %v212 = vld [vmem:[%s172 + $0x21] sm:$0xff]
      %v213 = vld [vmem:[%s172 + $0x29] sm:$0xff]
      %v214 = vld [vmem:[%s172 + $0x31] sm:$0xff]
      %v215 = vld [vmem:[%s172 + $0x39] sm:$0xff]
      %v216 = vld [vmem:[%s172 + $0x41] sm:$0xff]
      %v217 = vld [vmem:[%s172 + $0x49] sm:$0xff]
      %s218 = scalar_lea.vmem %s1, 128
      %v219 = vld [vmem:[%s218] sm:$0xff]
      %v220 = vld [vmem:[%s218 + $0x8] sm:$0xff]
      %v221 = vld [vmem:[%s218 + $0x10] sm:$0xff]
      %v222 = vld [vmem:[%s218 + $0x18] sm:$0xff]
      %v223 = vld [vmem:[%s218 + $0x20] sm:$0xff]
      %v224 = vld [vmem:[%s218 + $0x28] sm:$0xff]
      %v225 = vld [vmem:[%s218 + $0x30] sm:$0xff]
      %v226 = vld [vmem:[%s218 + $0x38] sm:$0xff]
      %v227 = vld [vmem:[%s218 + $0x40] sm:$0xff]
      %v228 = vld [vmem:[%s218 + $0x48] sm:$0xff]
      %v229 = vld [vmem:[%s218 + $0x50] sm:$0xff]
      %v230 = vld [vmem:[%s218 + $0x58] sm:$0xff]
      %v231 = vld [vmem:[%s218 + $0x60] sm:$0xff]
      %v232 = vld [vmem:[%s218 + $0x68] sm:$0xff]
      %v233 = vld [vmem:[%s218 + $0x70] sm:$0xff]
      %v234 = vld [vmem:[%s218 + $0x78] sm:$0xff]
      %235 = vmatprep.subr.mxu0 0.0
      %236 = vmatpush1.msra.mxu0 %v219
      %237 = vmatprep.subr.mxu0 0.0
      %238 = vmatpush1.msra.mxu0 %v220
      %239 = vmatprep.subr.mxu0 0.0
      %240 = vmatpush1.msra.mxu0 %v221
      %241 = vmatprep.subr.mxu0 0.0
      %242 = vmatpush1.msra.mxu0 %v222
      %243 = vmatprep.subr.mxu0 0.0
      %244 = vmatpush1.msra.mxu0 %v223
      %245 = vmatprep.subr.mxu0 0.0
      %246 = vmatpush1.msra.mxu0 %v224
      %247 = vmatprep.subr.mxu0 0.0
      %248 = vmatpush1.msra.mxu0 %v225
      %249 = vmatprep.subr.mxu0 0.0
      %250 = vmatpush1.msra.mxu0 %v226
      %251 = vmatprep.subr.mxu0 0.0
      %252 = vmatpush1.msra.mxu0 %v227
      %253 = vmatprep.subr.mxu0 0.0
      %254 = vmatpush1.msra.mxu0 %v228
      %255 = vmatprep.subr.mxu0 0.0
      %256 = vmatpush1.msra.mxu0 %v229
      %257 = vmatprep.subr.mxu0 0.0
      %258 = vmatpush1.msra.mxu0 %v230
      %259 = vmatprep.subr.mxu0 0.0
      %260 = vmatpush1.msra.mxu0 %v231
      %261 = vmatprep.subr.mxu0 0.0
      %262 = vmatpush1.msra.mxu0 %v232
      %263 = vmatprep.subr.mxu0 0.0
      %264 = vmatpush1.msra.mxu0 %v233
      %265 = vmatprep.subr.mxu0 0.0
      %266 = vmatpush1.msra.mxu0 %v234
      %267 = vmatprep.subr.mxu0 0.0
      %268 = vmatpush1.msra.mxu0 0.0
      %269 = vmatprep.subr.mxu0 0.0
      %270 = vmatpush1.msra.mxu0 0.0
      %271 = vmatprep.subr.mxu0 0.0
      %272 = vmatpush1.msra.mxu0 0.0
      %273 = vmatprep.subr.mxu0 0.0
      %274 = vmatpush1.msra.mxu0 0.0
      %275 = vmatprep.subr.mxu0 0.0
      %276 = vmatpush1.msra.mxu0 0.0
      %277 = vmatprep.subr.mxu0 0.0
      %278 = vmatpush1.msra.mxu0 0.0
      %279 = vmatprep.subr.mxu0 0.0
      %280 = vmatpush1.msra.mxu0 0.0
      %281 = vmatprep.subr.mxu0 0.0
      %282 = vmatpush1.msra.mxu0 0.0
      %283 = vmatprep.subr.mxu0 0.0
      %284 = vmatpush1.msra.mxu0 0.0
      %285 = vmatprep.subr.mxu0 0.0
      %286 = vmatpush1.msra.mxu0 0.0
      %287 = vmatprep.subr.mxu0 0.0
      %288 = vmatpush1.msra.mxu0 0.0
      %289 = vmatprep.subr.mxu0 0.0
      %290 = vmatpush1.msra.mxu0 0.0
      %291 = vmatprep.subr.mxu0 0.0
      %292 = vmatpush1.msra.mxu0 0.0
      %293 = vmatprep.subr.mxu0 0.0
      %294 = vmatpush1.msra.mxu0 0.0
      %295 = vmatprep.subr.mxu0 0.0
      %296 = vmatpush1.msra.mxu0 0.0
      %297 = vmatprep.subr.mxu0 0.0
      %298 = vmatpush1.msra.mxu0 0.0
      %299 = vmatprep.mubr.f32.mxu0 0.0
      %300 = vmatmul.mubr.f32.gmra.mrb[0].mxu0 %v208
      %v301 = vpop.f32.mrb[0].mxu0
      %v302 = vadd.f32 0.0, %v301
      %v303 = vpop.f32.mrb[0].mxu0
      %304 = vmatprep.mubr.f32.mxu0 0.0
      %305 = vmatmul.mubr.f32.gmra.mrb[0].mxu0 %v209
      %v306 = vpop.f32.mrb[0].mxu0
      %v307 = vadd.f32 0.0, %v306
      %v308 = vpop.f32.mrb[0].mxu0
      %309 = vmatprep.mubr.f32.mxu0 0.0
      %310 = vmatmul.mubr.f32.gmra.mrb[0].mxu0 %v210
      %v311 = vpop.f32.mrb[0].mxu0
      %v312 = vadd.f32 0.0, %v311
      %v313 = vpop.f32.mrb[0].mxu0
      %314 = vmatprep.mubr.f32.mxu0 0.0
      %315 = vmatmul.mubr.f32.gmra.mrb[0].mxu0 %v211
      %v316 = vpop.f32.mrb[0].mxu0
      %v317 = vadd.f32 0.0, %v316
      %v318 = vpop.f32.mrb[0].mxu0
      %319 = vmatprep.mubr.f32.mxu0 0.0
      %320 = vmatmul.mubr.f32.gmra.mrb[0].mxu0 %v212
      %v321 = vpop.f32.mrb[0].mxu0
      %v322 = vadd.f32 0.0, %v321
      %v323 = vpop.f32.mrb[0].mxu0
      %324 = vmatprep.mubr.f32.mxu0 0.0
      %325 = vmatmul.mubr.f32.gmra.mrb[0].mxu0 %v213
      %v326 = vpop.f32.mrb[0].mxu0
      %v327 = vadd.f32 0.0, %v326
      %v328 = vpop.f32.mrb[0].mxu0
      %329 = vmatprep.mubr.f32.mxu0 0.0
      %330 = vmatmul.mubr.f32.gmra.mrb[0].mxu0 %v214
      %v331 = vpop.f32.mrb[0].mxu0
      %v332 = vadd.f32 0.0, %v331
      %v333 = vpop.f32.mrb[0].mxu0
      %334 = vmatprep.mubr.f32.mxu0 0.0
      %335 = vmatmul.mubr.f32.gmra.mrb[0].mxu0 %v215
      %v336 = vpop.f32.mrb[0].mxu0
      %v337 = vadd.f32 0.0, %v336
      %v338 = vpop.f32.mrb[0].mxu0
      %339 = vmatprep.mubr.f32.mxu0 0.0
      %340 = vmatmul.mubr.f32.gmra.mrb[0].mxu0 %v216
      %v341 = vpop.f32.mrb[0].mxu0
      %v342 = vadd.f32 0.0, %v341
      %v343 = vpop.f32.mrb[0].mxu0
      %344 = vmatprep.mubr.f32.mxu0 0.0
      %345 = vmatmul.mubr.f32.gmra.mrb[0].mxu0 %v217
      %v346 = vpop.f32.mrb[0].mxu0
      %v347 = vadd.f32 0.0, %v346
      %v348 = vpop.f32.mrb[0].mxu0
      %349 = vdwg.mxu0
      %350 = vmatprep.subr.mxu0 0.0
      %351 = vmatpush1.msra.mxu0 %v192
      %352 = vmatprep.subr.mxu0 0.0
      %353 = vmatpush1.msra.mxu0 %v193
      %354 = vmatprep.subr.mxu0 0.0
      %355 = vmatpush1.msra.mxu0 %v194
      %356 = vmatprep.subr.mxu0 0.0
      %357 = vmatpush1.msra.mxu0 %v195
      %358 = vmatprep.subr.mxu0 0.0
      %359 = vmatpush1.msra.mxu0 %v196
      %360 = vmatprep.subr.mxu0 0.0
      %361 = vmatpush1.msra.mxu0 %v197
      %362 = vmatprep.subr.mxu0 0.0
      %363 = vmatpush1.msra.mxu0 %v198
      %364 = vmatprep.subr.mxu0 0.0
      %365 = vmatpush1.msra.mxu0 %v199
      %366 = vmatprep.subr.mxu0 0.0
      %367 = vmatpush1.msra.mxu0 %v200
      %368 = vmatprep.subr.mxu0 0.0
      %369 = vmatpush1.msra.mxu0 %v201
      %370 = vmatprep.subr.mxu0 0.0
      %371 = vmatpush1.msra.mxu0 %v202
      %372 = vmatprep.subr.mxu0 0.0
      %373 = vmatpush1.msra.mxu0 %v203
      %374 = vmatprep.subr.mxu0 0.0
      %375 = vmatpush1.msra.mxu0 %v204
      %376 = vmatprep.subr.mxu0 0.0
      %377 = vmatpush1.msra.mxu0 %v205
      %378 = vmatprep.subr.mxu0 0.0
      %379 = vmatpush1.msra.mxu0 %v206
      %380 = vmatprep.subr.mxu0 0.0
      %381 = vmatpush1.msra.mxu0 %v207
      %382 = vmatprep.subr.mxu0 0.0
      %383 = vmatpush1.msra.mxu0 0.0
      %384 = vmatprep.subr.mxu0 0.0
      %385 = vmatpush1.msra.mxu0 0.0
      %386 = vmatprep.subr.mxu0 0.0
      %387 = vmatpush1.msra.mxu0 0.0
      %388 = vmatprep.subr.mxu0 0.0
      %389 = vmatpush1.msra.mxu0 0.0
      %390 = vmatprep.subr.mxu0 0.0
      %391 = vmatpush1.msra.mxu0 0.0
      %392 = vmatprep.subr.mxu0 0.0
      %393 = vmatpush1.msra.mxu0 0.0
      %394 = vmatprep.subr.mxu0 0.0
      %395 = vmatpush1.msra.mxu0 0.0
      %396 = vmatprep.subr.mxu0 0.0
      %397 = vmatpush1.msra.mxu0 0.0
      %398 = vmatprep.subr.mxu0 0.0
      %399 = vmatpush1.msra.mxu0 0.0
      %400 = vmatprep.subr.mxu0 0.0
      %401 = vmatpush1.msra.mxu0 0.0
      %402 = vmatprep.subr.mxu0 0.0
      %403 = vmatpush1.msra.mxu0 0.0
      %404 = vmatprep.subr.mxu0 0.0
      %405 = vmatpush1.msra.mxu0 0.0
      %406 = vmatprep.subr.mxu0 0.0
      %407 = vmatpush1.msra.mxu0 0.0
      %408 = vmatprep.subr.mxu0 0.0
      %409 = vmatpush1.msra.mxu0 0.0
      %410 = vmatprep.subr.mxu0 0.0
      %411 = vmatpush1.msra.mxu0 0.0
      %412 = vmatprep.subr.mxu0 0.0
      %413 = vmatpush1.msra.mxu0 0.0
      %414 = vmatprep.mubr.f32.mxu0 0.0
      %415 = vmatmul.mubr.f32.gmra.mrb[0].mxu0 %v182
      %v416 = vpop.f32.mrb[0].mxu0
      %v417 = vadd.f32 %v302, %v416
      %v418 = vpop.f32.mrb[0].mxu0
      %419 = vmatprep.mubr.f32.mxu0 0.0
      %420 = vmatmul.mubr.f32.gmra.mrb[0].mxu0 %v183
      %v421 = vpop.f32.mrb[0].mxu0
      %v422 = vadd.f32 %v307, %v421
      %v423 = vpop.f32.mrb[0].mxu0
      %424 = vmatprep.mubr.f32.mxu0 0.0
      %425 = vmatmul.mubr.f32.gmra.mrb[0].mxu0 %v184
      %v426 = vpop.f32.mrb[0].mxu0
      %v427 = vadd.f32 %v312, %v426
      %v428 = vpop.f32.mrb[0].mxu0
      %429 = vmatprep.mubr.f32.mxu0 0.0
      %430 = vmatmul.mubr.f32.gmra.mrb[0].mxu0 %v185
      %v431 = vpop.f32.mrb[0].mxu0
      %v432 = vadd.f32 %v317, %v431
      %v433 = vpop.f32.mrb[0].mxu0
      %434 = vmatprep.mubr.f32.mxu0 0.0
      %435 = vmatmul.mubr.f32.gmra.mrb[0].mxu0 %v186
      %v436 = vpop.f32.mrb[0].mxu0
      %v437 = vadd.f32 %v322, %v436
      %v438 = vpop.f32.mrb[0].mxu0
      %439 = vmatprep.mubr.f32.mxu0 0.0
      %440 = vmatmul.mubr.f32.gmra.mrb[0].mxu0 %v187
      %v441 = vpop.f32.mrb[0].mxu0
      %v442 = vadd.f32 %v327, %v441
      %v443 = vpop.f32.mrb[0].mxu0
      %444 = vmatprep.mubr.f32.mxu0 0.0
      %445 = vmatmul.mubr.f32.gmra.mrb[0].mxu0 %v188
      %v446 = vpop.f32.mrb[0].mxu0
      %v447 = vadd.f32 %v332, %v446
      %v448 = vpop.f32.mrb[0].mxu0
      %449 = vmatprep.mubr.f32.mxu0 0.0
      %450 = vmatmul.mubr.f32.gmra.mrb[0].mxu0 %v189
      %v451 = vpop.f32.mrb[0].mxu0
      %v452 = vadd.f32 %v337, %v451
      %v453 = vpop.f32.mrb[0].mxu0
      %454 = vmatprep.mubr.f32.mxu0 0.0
      %455 = vmatmul.mubr.f32.gmra.mrb[0].mxu0 %v190
      %v456 = vpop.f32.mrb[0].mxu0
      %v457 = vadd.f32 %v342, %v456
      %v458 = vpop.f32.mrb[0].mxu0
      %459 = vmatprep.mubr.f32.mxu0 0.0
      %460 = vmatmul.mubr.f32.gmra.mrb[0].mxu0 %v191
      %v461 = vpop.f32.mrb[0].mxu0
      %v462 = vadd.f32 %v347, %v461
      %v463 = vpop.f32.mrb[0].mxu0
      %464 = vdwg.mxu0
      %v465 = vld [vmem:[%s172 + $0x2] sm:$0xff]
      %v466 = vld [vmem:[%s172 + $0xa] sm:$0xff]
      %v467 = vld [vmem:[%s172 + $0x12] sm:$0xff]
      %v468 = vld [vmem:[%s172 + $0x1a] sm:$0xff]
      %v469 = vld [vmem:[%s172 + $0x22] sm:$0xff]
      %v470 = vld [vmem:[%s172 + $0x2a] sm:$0xff]
      %v471 = vld [vmem:[%s172 + $0x32] sm:$0xff]
      %v472 = vld [vmem:[%s172 + $0x3a] sm:$0xff]
      %v473 = vld [vmem:[%s172 + $0x42] sm:$0xff]
      %v474 = vld [vmem:[%s172 + $0x4a] sm:$0xff]
      %s475 = scalar_lea.vmem %s1, 256
      %v476 = vld [vmem:[%s475] sm:$0xff]
      %v477 = vld [vmem:[%s475 + $0x8] sm:$0xff]
      %v478 = vld [vmem:[%s475 + $0x10] sm:$0xff]
      %v479 = vld [vmem:[%s475 + $0x18] sm:$0xff]
      %v480 = vld [vmem:[%s475 + $0x20] sm:$0xff]
      %v481 = vld [vmem:[%s475 + $0x28] sm:$0xff]
      %v482 = vld [vmem:[%s475 + $0x30] sm:$0xff]
      %v483 = vld [vmem:[%s475 + $0x38] sm:$0xff]
      %v484 = vld [vmem:[%s475 + $0x40] sm:$0xff]
      %v485 = vld [vmem:[%s475 + $0x48] sm:$0xff]
      %v486 = vld [vmem:[%s475 + $0x50] sm:$0xff]
      %v487 = vld [vmem:[%s475 + $0x58] sm:$0xff]
      %v488 = vld [vmem:[%s475 + $0x60] sm:$0xff]
      %v489 = vld [vmem:[%s475 + $0x68] sm:$0xff]
      %v490 = vld [vmem:[%s475 + $0x70] sm:$0xff]
      %v491 = vld [vmem:[%s475 + $0x78] sm:$0xff]
      %492 = vmatprep.subr.mxu0 0.0
      %493 = vmatpush1.msra.mxu0 %v476
      %494 = vmatprep.subr.mxu0 0.0
      %495 = vmatpush1.msra.mxu0 %v477
      %496 = vmatprep.subr.mxu0 0.0
      %497 = vmatpush1.msra.mxu0 %v478
      %498 = vmatprep.subr.mxu0 0.0
      %499 = vmatpush1.msra.mxu0 %v479
      %500 = vmatprep.subr.mxu0 0.0
      %501 = vmatpush1.msra.mxu0 %v480
      %502 = vmatprep.subr.mxu0 0.0
      %503 = vmatpush1.msra.mxu0 %v481
      %504 = vmatprep.subr.mxu0 0.0
      %505 = vmatpush1.msra.mxu0 %v482
      %506 = vmatprep.subr.mxu0 0.0
      %507 = vmatpush1.msra.mxu0 %v483
      %508 = vmatprep.subr.mxu0 0.0
      %509 = vmatpush1.msra.mxu0 %v484
      %510 = vmatprep.subr.mxu0 0.0
      %511 = vmatpush1.msra.mxu0 %v485
      %512 = vmatprep.subr.mxu0 0.0
      %513 = vmatpush1.msra.mxu0 %v486
      %514 = vmatprep.subr.mxu0 0.0
      %515 = vmatpush1.msra.mxu0 %v487
      %516 = vmatprep.subr.mxu0 0.0
      %517 = vmatpush1.msra.mxu0 %v488
      %518 = vmatprep.subr.mxu0 0.0
      %519 = vmatpush1.msra.mxu0 %v489
      %520 = vmatprep.subr.mxu0 0.0
      %521 = vmatpush1.msra.mxu0 %v490
      %522 = vmatprep.subr.mxu0 0.0
      %523 = vmatpush1.msra.mxu0 %v491
      %524 = vmatprep.subr.mxu0 0.0
      %525 = vmatpush1.msra.mxu0 0.0
      %526 = vmatprep.subr.mxu0 0.0
      %527 = vmatpush1.msra.mxu0 0.0
      %528 = vmatprep.subr.mxu0 0.0
      %529 = vmatpush1.msra.mxu0 0.0
      %530 = vmatprep.subr.mxu0 0.0
      %531 = vmatpush1.msra.mxu0 0.0
      %532 = vmatprep.subr.mxu0 0.0
      %533 = vmatpush1.msra.mxu0 0.0
      %534 = vmatprep.subr.mxu0 0.0
      %535 = vmatpush1.msra.mxu0 0.0
      %536 = vmatprep.subr.mxu0 0.0
      %537 = vmatpush1.msra.mxu0 0.0
      %538 = vmatprep.subr.mxu0 0.0
      %539 = vmatpush1.msra.mxu0 0.0
      %540 = vmatprep.subr.mxu0 0.0
      %541 = vmatpush1.msra.mxu0 0.0
      %542 = vmatprep.subr.mxu0 0.0
      %543 = vmatpush1.msra.mxu0 0.0
      %544 = vmatprep.subr.mxu0 0.0
      %545 = vmatpush1.msra.mxu0 0.0
      %546 = vmatprep.subr.mxu0 0.0
      %547 = vmatpush1.msra.mxu0 0.0
      %548 = vmatprep.subr.mxu0 0.0
      %549 = vmatpush1.msra.mxu0 0.0
      %550 = vmatprep.subr.mxu0 0.0
      %551 = vmatpush1.msra.mxu0 0.0
      %552 = vmatprep.subr.mxu0 0.0
      %553 = vmatpush1.msra.mxu0 0.0
      %554 = vmatprep.subr.mxu0 0.0
      %555 = vmatpush1.msra.mxu0 0.0
      %556 = vmatprep.mubr.f32.mxu0 0.0
      %557 = vmatmul.mubr.f32.gmra.mrb[0].mxu0 %v465
      %v558 = vpop.f32.mrb[0].mxu0
      %v559 = vadd.f32 0.0, %v558
      %v560 = vpop.f32.mrb[0].mxu0
      %561 = vmatprep.mubr.f32.mxu0 0.0
      %562 = vmatmul.mubr.f32.gmra.mrb[0].mxu0 %v466
      %v563 = vpop.f32.mrb[0].mxu0
      %v564 = vadd.f32 0.0, %v563
      %v565 = vpop.f32.mrb[0].mxu0
      %566 = vmatprep.mubr.f32.mxu0 0.0
      %567 = vmatmul.mubr.f32.gmra.mrb[0].mxu0 %v467
      %v568 = vpop.f32.mrb[0].mxu0
      %v569 = vadd.f32 0.0, %v568
      %v570 = vpop.f32.mrb[0].mxu0
      %571 = vmatprep.mubr.f32.mxu0 0.0
      %572 = vmatmul.mubr.f32.gmra.mrb[0].mxu0 %v468
      %v573 = vpop.f32.mrb[0].mxu0
      %v574 = vadd.f32 0.0, %v573
      %v575 = vpop.f32.mrb[0].mxu0
      %576 = vmatprep.mubr.f32.mxu0 0.0
      %577 = vmatmul.mubr.f32.gmra.mrb[0].mxu0 %v469
      %v578 = vpop.f32.mrb[0].mxu0
      %v579 = vadd.f32 0.0, %v578
      %v580 = vpop.f32.mrb[0].mxu0
      %581 = vmatprep.mubr.f32.mxu0 0.0
      %582 = vmatmul.mubr.f32.gmra.mrb[0].mxu0 %v470
      %v583 = vpop.f32.mrb[0].mxu0
      %v584 = vadd.f32 0.0, %v583
      %v585 = vpop.f32.mrb[0].mxu0
      %586 = vmatprep.mubr.f32.mxu0 0.0
      %587 = vmatmul.mubr.f32.gmra.mrb[0].mxu0 %v471
      %v588 = vpop.f32.mrb[0].mxu0
      %v589 = vadd.f32 0.0, %v588
      %v590 = vpop.f32.mrb[0].mxu0
      %591 = vmatprep.mubr.f32.mxu0 0.0
      %592 = vmatmul.mubr.f32.gmra.mrb[0].mxu0 %v472
      %v593 = vpop.f32.mrb[0].mxu0
      %v594 = vadd.f32 0.0, %v593
      %v595 = vpop.f32.mrb[0].mxu0
      %596 = vmatprep.mubr.f32.mxu0 0.0
      %597 = vmatmul.mubr.f32.gmra.mrb[0].mxu0 %v473
      %v598 = vpop.f32.mrb[0].mxu0
      %v599 = vadd.f32 0.0, %v598
      %v600 = vpop.f32.mrb[0].mxu0
      %601 = vmatprep.mubr.f32.mxu0 0.0
      %602 = vmatmul.mubr.f32.gmra.mrb[0].mxu0 %v474
      %v603 = vpop.f32.mrb[0].mxu0
      %v604 = vadd.f32 0.0, %v603
      %v605 = vpop.f32.mrb[0].mxu0
      %606 = vdwg.mxu0
      %v607 = vadd.f32 %v417, %v559
      %v608 = vadd.f32 %v422, %v564
      %v609 = vadd.f32 %v427, %v569
      %v610 = vadd.f32 %v432, %v574
      %v611 = vadd.f32 %v437, %v579
      %v612 = vadd.f32 %v442, %v584
      %v613 = vadd.f32 %v447, %v589
      %v614 = vadd.f32 %v452, %v594
      %v615 = vadd.f32 %v457, %v599
      %v616 = vadd.f32 %v462, %v604
      %v617 = vld [vmem:[%s172 + $0xa] sm:$0xff]
      %v618 = vld [vmem:[%s172 + $0x12] sm:$0xff]
      %v619 = vld [vmem:[%s172 + $0x1a] sm:$0xff]
      %v620 = vld [vmem:[%s172 + $0x22] sm:$0xff]
      %v621 = vld [vmem:[%s172 + $0x2a] sm:$0xff]
      %v622 = vld [vmem:[%s172 + $0x32] sm:$0xff]
      %v623 = vld [vmem:[%s172 + $0x3a] sm:$0xff]
      %v624 = vld [vmem:[%s172 + $0x42] sm:$0xff]
      %v625 = vld [vmem:[%s172 + $0x4a] sm:$0xff]
      %v626 = vld [vmem:[%s172 + $0x52] sm:$0xff]
      %s627 = scalar_lea.vmem %s1, 384
      %v628 = vld [vmem:[%s627] sm:$0xff]
      %v629 = vld [vmem:[%s627 + $0x8] sm:$0xff]
      %v630 = vld [vmem:[%s627 + $0x10] sm:$0xff]
      %v631 = vld [vmem:[%s627 + $0x18] sm:$0xff]
      %v632 = vld [vmem:[%s627 + $0x20] sm:$0xff]
      %v633 = vld [vmem:[%s627 + $0x28] sm:$0xff]
      %v634 = vld [vmem:[%s627 + $0x30] sm:$0xff]
      %v635 = vld [vmem:[%s627 + $0x38] sm:$0xff]
      %v636 = vld [vmem:[%s627 + $0x40] sm:$0xff]
      %v637 = vld [vmem:[%s627 + $0x48] sm:$0xff]
      %v638 = vld [vmem:[%s627 + $0x50] sm:$0xff]
      %v639 = vld [vmem:[%s627 + $0x58] sm:$0xff]
      %v640 = vld [vmem:[%s627 + $0x60] sm:$0xff]
      %v641 = vld [vmem:[%s627 + $0x68] sm:$0xff]
      %v642 = vld [vmem:[%s627 + $0x70] sm:$0xff]
      %v643 = vld [vmem:[%s627 + $0x78] sm:$0xff]
      %644 = vmatprep.subr.mxu0 0.0
      %645 = vmatpush1.msra.mxu0 %v628
      %646 = vmatprep.subr.mxu0 0.0
      %647 = vmatpush1.msra.mxu0 %v629
      %648 = vmatprep.subr.mxu0 0.0
      %649 = vmatpush1.msra.mxu0 %v630
      %650 = vmatprep.subr.mxu0 0.0
      %651 = vmatpush1.msra.mxu0 %v631
      %652 = vmatprep.subr.mxu0 0.0
      %653 = vmatpush1.msra.mxu0 %v632
      %654 = vmatprep.subr.mxu0 0.0
      %655 = vmatpush1.msra.mxu0 %v633
      %656 = vmatprep.subr.mxu0 0.0
      %657 = vmatpush1.msra.mxu0 %v634
      %658 = vmatprep.subr.mxu0 0.0
      %659 = vmatpush1.msra.mxu0 %v635
      %660 = vmatprep.subr.mxu0 0.0
      %661 = vmatpush1.msra.mxu0 %v636
      %662 = vmatprep.subr.mxu0 0.0
      %663 = vmatpush1.msra.mxu0 %v637
      %664 = vmatprep.subr.mxu0 0.0
      %665 = vmatpush1.msra.mxu0 %v638
      %666 = vmatprep.subr.mxu0 0.0
      %667 = vmatpush1.msra.mxu0 %v639
      %668 = vmatprep.subr.mxu0 0.0
      %669 = vmatpush1.msra.mxu0 %v640
      %670 = vmatprep.subr.mxu0 0.0
      %671 = vmatpush1.msra.mxu0 %v641
      %672 = vmatprep.subr.mxu0 0.0
      %673 = vmatpush1.msra.mxu0 %v642
      %674 = vmatprep.subr.mxu0 0.0
      %675 = vmatpush1.msra.mxu0 %v643
      %676 = vmatprep.subr.mxu0 0.0
      %677 = vmatpush1.msra.mxu0 0.0
      %678 = vmatprep.subr.mxu0 0.0
      %679 = vmatpush1.msra.mxu0 0.0
      %680 = vmatprep.subr.mxu0 0.0
      %681 = vmatpush1.msra.mxu0 0.0
      %682 = vmatprep.subr.mxu0 0.0
      %683 = vmatpush1.msra.mxu0 0.0
      %684 = vmatprep.subr.mxu0 0.0
      %685 = vmatpush1.msra.mxu0 0.0
      %686 = vmatprep.subr.mxu0 0.0
      %687 = vmatpush1.msra.mxu0 0.0
      %688 = vmatprep.subr.mxu0 0.0
      %689 = vmatpush1.msra.mxu0 0.0
      %690 = vmatprep.subr.mxu0 0.0
      %691 = vmatpush1.msra.mxu0 0.0
      %692 = vmatprep.subr.mxu0 0.0
      %693 = vmatpush1.msra.mxu0 0.0
      %694 = vmatprep.subr.mxu0 0.0
      %695 = vmatpush1.msra.mxu0 0.0
      %696 = vmatprep.subr.mxu0 0.0
      %697 = vmatpush1.msra.mxu0 0.0
      %698 = vmatprep.subr.mxu0 0.0
      %699 = vmatpush1.msra.mxu0 0.0
      %700 = vmatprep.subr.mxu0 0.0
      %701 = vmatpush1.msra.mxu0 0.0
      %702 = vmatprep.subr.mxu0 0.0
      %703 = vmatpush1.msra.mxu0 0.0
      %704 = vmatprep.subr.mxu0 0.0
      %705 = vmatpush1.msra.mxu0 0.0
      %706 = vmatprep.subr.mxu0 0.0
      %707 = vmatpush1.msra.mxu0 0.0
      %708 = vmatprep.mubr.f32.mxu0 0.0
      %709 = vmatmul.mubr.f32.gmra.mrb[0].mxu0 %v617
      %v710 = vpop.f32.mrb[0].mxu0
      %v711 = vadd.f32 0.0, %v710
      %v712 = vpop.f32.mrb[0].mxu0
      %713 = vmatprep.mubr.f32.mxu0 0.0
      %714 = vmatmul.mubr.f32.gmra.mrb[0].mxu0 %v618
      %v715 = vpop.f32.mrb[0].mxu0
      %v716 = vadd.f32 0.0, %v715
      %v717 = vpop.f32.mrb[0].mxu0
      %718 = vmatprep.mubr.f32.mxu0 0.0
      %719 = vmatmul.mubr.f32.gmra.mrb[0].mxu0 %v619
      %v720 = vpop.f32.mrb[0].mxu0
      %v721 = vadd.f32 0.0, %v720
      %v722 = vpop.f32.mrb[0].mxu0
      %723 = vmatprep.mubr.f32.mxu0 0.0
      %724 = vmatmul.mubr.f32.gmra.mrb[0].mxu0 %v620
      %v725 = vpop.f32.mrb[0].mxu0
      %v726 = vadd.f32 0.0, %v725
      %v727 = vpop.f32.mrb[0].mxu0
      %728 = vmatprep.mubr.f32.mxu0 0.0
      %729 = vmatmul.mubr.f32.gmra.mrb[0].mxu0 %v621
      %v730 = vpop.f32.mrb[0].mxu0
      %v731 = vadd.f32 0.0, %v730
      %v732 = vpop.f32.mrb[0].mxu0
      %733 = vmatprep.mubr.f32.mxu0 0.0
      %734 = vmatmul.mubr.f32.gmra.mrb[0].mxu0 %v622
      %v735 = vpop.f32.mrb[0].mxu0
      %v736 = vadd.f32 0.0, %v735
      %v737 = vpop.f32.mrb[0].mxu0
      %738 = vmatprep.mubr.f32.mxu0 0.0
      %739 = vmatmul.mubr.f32.gmra.mrb[0].mxu0 %v623
      %v740 = vpop.f32.mrb[0].mxu0
      %v741 = vadd.f32 0.0, %v740
      %v742 = vpop.f32.mrb[0].mxu0
      %743 = vmatprep.mubr.f32.mxu0 0.0
      %744 = vmatmul.mubr.f32.gmra.mrb[0].mxu0 %v624
      %v745 = vpop.f32.mrb[0].mxu0
      %v746 = vadd.f32 0.0, %v745
      %v747 = vpop.f32.mrb[0].mxu0
      %748 = vmatprep.mubr.f32.mxu0 0.0
      %749 = vmatmul.mubr.f32.gmra.mrb[0].mxu0 %v625
      %v750 = vpop.f32.mrb[0].mxu0
      %v751 = vadd.f32 0.0, %v750
      %v752 = vpop.f32.mrb[0].mxu0
      %753 = vmatprep.mubr.f32.mxu0 0.0
      %754 = vmatmul.mubr.f32.gmra.mrb[0].mxu0 %v626
      %v755 = vpop.f32.mrb[0].mxu0
      %v756 = vadd.f32 0.0, %v755
      %v757 = vpop.f32.mrb[0].mxu0
      %758 = vdwg.mxu0
      %v759 = vadd.f32 %v607, %v711
      %v760 = vadd.f32 %v608, %v716
      %v761 = vadd.f32 %v609, %v721
      %v762 = vadd.f32 %v610, %v726
      %v763 = vadd.f32 %v611, %v731
      %v764 = vadd.f32 %v612, %v736
      %v765 = vadd.f32 %v613, %v741
      %v766 = vadd.f32 %v614, %v746
      %v767 = vadd.f32 %v615, %v751
      %v768 = vadd.f32 %v616, %v756
      %v769 = vld [vmem:[%s172 + $0xb] sm:$0xff]
      %v770 = vld [vmem:[%s172 + $0x13] sm:$0xff]
      %v771 = vld [vmem:[%s172 + $0x1b] sm:$0xff]
      %v772 = vld [vmem:[%s172 + $0x23] sm:$0xff]
      %v773 = vld [vmem:[%s172 + $0x2b] sm:$0xff]
      %v774 = vld [vmem:[%s172 + $0x33] sm:$0xff]
      %v775 = vld [vmem:[%s172 + $0x3b] sm:$0xff]
      %v776 = vld [vmem:[%s172 + $0x43] sm:$0xff]
      %v777 = vld [vmem:[%s172 + $0x4b] sm:$0xff]
      %v778 = vld [vmem:[%s172 + $0x53] sm:$0xff]
      %s779 = scalar_lea.vmem %s1, 512
      %v780 = vld [vmem:[%s779] sm:$0xff]
      %v781 = vld [vmem:[%s779 + $0x8] sm:$0xff]
      %v782 = vld [vmem:[%s779 + $0x10] sm:$0xff]
      %v783 = vld [vmem:[%s779 + $0x18] sm:$0xff]
      %v784 = vld [vmem:[%s779 + $0x20] sm:$0xff]
      %v785 = vld [vmem:[%s779 + $0x28] sm:$0xff]
      %v786 = vld [vmem:[%s779 + $0x30] sm:$0xff]
      %v787 = vld [vmem:[%s779 + $0x38] sm:$0xff]
      %v788 = vld [vmem:[%s779 + $0x40] sm:$0xff]
      %v789 = vld [vmem:[%s779 + $0x48] sm:$0xff]
      %v790 = vld [vmem:[%s779 + $0x50] sm:$0xff]
      %v791 = vld [vmem:[%s779 + $0x58] sm:$0xff]
      %v792 = vld [vmem:[%s779 + $0x60] sm:$0xff]
      %v793 = vld [vmem:[%s779 + $0x68] sm:$0xff]
      %v794 = vld [vmem:[%s779 + $0x70] sm:$0xff]
      %v795 = vld [vmem:[%s779 + $0x78] sm:$0xff]
      %796 = vmatprep.subr.mxu0 0.0
      %797 = vmatpush1.msra.mxu0 %v780
      %798 = vmatprep.subr.mxu0 0.0
      %799 = vmatpush1.msra.mxu0 %v781
      %800 = vmatprep.subr.mxu0 0.0
      %801 = vmatpush1.msra.mxu0 %v782
      %802 = vmatprep.subr.mxu0 0.0
      %803 = vmatpush1.msra.mxu0 %v783
      %804 = vmatprep.subr.mxu0 0.0
      %805 = vmatpush1.msra.mxu0 %v784
      %806 = vmatprep.subr.mxu0 0.0
      %807 = vmatpush1.msra.mxu0 %v785
      %808 = vmatprep.subr.mxu0 0.0
      %809 = vmatpush1.msra.mxu0 %v786
      %810 = vmatprep.subr.mxu0 0.0
      %811 = vmatpush1.msra.mxu0 %v787
      %812 = vmatprep.subr.mxu0 0.0
      %813 = vmatpush1.msra.mxu0 %v788
      %814 = vmatprep.subr.mxu0 0.0
      %815 = vmatpush1.msra.mxu0 %v789
      %816 = vmatprep.subr.mxu0 0.0
      %817 = vmatpush1.msra.mxu0 %v790
      %818 = vmatprep.subr.mxu0 0.0
      %819 = vmatpush1.msra.mxu0 %v791
      %820 = vmatprep.subr.mxu0 0.0
      %821 = vmatpush1.msra.mxu0 %v792
      %822 = vmatprep.subr.mxu0 0.0
      %823 = vmatpush1.msra.mxu0 %v793
      %824 = vmatprep.subr.mxu0 0.0
      %825 = vmatpush1.msra.mxu0 %v794
      %826 = vmatprep.subr.mxu0 0.0
      %827 = vmatpush1.msra.mxu0 %v795
      %828 = vmatprep.subr.mxu0 0.0
      %829 = vmatpush1.msra.mxu0 0.0
      %830 = vmatprep.subr.mxu0 0.0
      %831 = vmatpush1.msra.mxu0 0.0
      %832 = vmatprep.subr.mxu0 0.0
      %833 = vmatpush1.msra.mxu0 0.0
      %834 = vmatprep.subr.mxu0 0.0
      %835 = vmatpush1.msra.mxu0 0.0
      %836 = vmatprep.subr.mxu0 0.0
      %837 = vmatpush1.msra.mxu0 0.0
      %838 = vmatprep.subr.mxu0 0.0
      %839 = vmatpush1.msra.mxu0 0.0
      %840 = vmatprep.subr.mxu0 0.0
      %841 = vmatpush1.msra.mxu0 0.0
      %842 = vmatprep.subr.mxu0 0.0
      %843 = vmatpush1.msra.mxu0 0.0
      %844 = vmatprep.subr.mxu0 0.0
      %845 = vmatpush1.msra.mxu0 0.0
      %846 = vmatprep.subr.mxu0 0.0
      %847 = vmatpush1.msra.mxu0 0.0
      %848 = vmatprep.subr.mxu0 0.0
      %849 = vmatpush1.msra.mxu0 0.0
      %850 = vmatprep.subr.mxu0 0.0
      %851 = vmatpush1.msra.mxu0 0.0
      %852 = vmatprep.subr.mxu0 0.0
      %853 = vmatpush1.msra.mxu0 0.0
      %854 = vmatprep.subr.mxu0 0.0
      %855 = vmatpush1.msra.mxu0 0.0
      %856 = vmatprep.subr.mxu0 0.0
      %857 = vmatpush1.msra.mxu0 0.0
      %858 = vmatprep.subr.mxu0 0.0
      %859 = vmatpush1.msra.mxu0 0.0
      %860 = vmatprep.mubr.f32.mxu0 0.0
      %861 = vmatmul.mubr.f32.gmra.mrb[0].mxu0 %v769
      %v862 = vpop.f32.mrb[0].mxu0
      %v863 = vadd.f32 0.0, %v862
      %v864 = vpop.f32.mrb[0].mxu0
      %865 = vmatprep.mubr.f32.mxu0 0.0
      %866 = vmatmul.mubr.f32.gmra.mrb[0].mxu0 %v770
      %v867 = vpop.f32.mrb[0].mxu0
      %v868 = vadd.f32 0.0, %v867
      %v869 = vpop.f32.mrb[0].mxu0
      %870 = vmatprep.mubr.f32.mxu0 0.0
      %871 = vmatmul.mubr.f32.gmra.mrb[0].mxu0 %v771
      %v872 = vpop.f32.mrb[0].mxu0
      %v873 = vadd.f32 0.0, %v872
      %v874 = vpop.f32.mrb[0].mxu0
      %875 = vmatprep.mubr.f32.mxu0 0.0
      %876 = vmatmul.mubr.f32.gmra.mrb[0].mxu0 %v772
      %v877 = vpop.f32.mrb[0].mxu0
      %v878 = vadd.f32 0.0, %v877
      %v879 = vpop.f32.mrb[0].mxu0
      %880 = vmatprep.mubr.f32.mxu0 0.0
      %881 = vmatmul.mubr.f32.gmra.mrb[0].mxu0 %v773
      %v882 = vpop.f32.mrb[0].mxu0
      %v883 = vadd.f32 0.0, %v882
      %v884 = vpop.f32.mrb[0].mxu0
      %885 = vmatprep.mubr.f32.mxu0 0.0
      %886 = vmatmul.mubr.f32.gmra.mrb[0].mxu0 %v774
      %v887 = vpop.f32.mrb[0].mxu0
      %v888 = vadd.f32 0.0, %v887
      %v889 = vpop.f32.mrb[0].mxu0
      %890 = vmatprep.mubr.f32.mxu0 0.0
      %891 = vmatmul.mubr.f32.gmra.mrb[0].mxu0 %v775
      %v892 = vpop.f32.mrb[0].mxu0
      %v893 = vadd.f32 0.0, %v892
      %v894 = vpop.f32.mrb[0].mxu0
      %895 = vmatprep.mubr.f32.mxu0 0.0
      %896 = vmatmul.mubr.f32.gmra.mrb[0].mxu0 %v776
      %v897 = vpop.f32.mrb[0].mxu0
      %v898 = vadd.f32 0.0, %v897
      %v899 = vpop.f32.mrb[0].mxu0
      %900 = vmatprep.mubr.f32.mxu0 0.0
      %901 = vmatmul.mubr.f32.gmra.mrb[0].mxu0 %v777
      %v902 = vpop.f32.mrb[0].mxu0
      %v903 = vadd.f32 0.0, %v902
      %v904 = vpop.f32.mrb[0].mxu0
      %905 = vmatprep.mubr.f32.mxu0 0.0
      %906 = vmatmul.mubr.f32.gmra.mrb[0].mxu0 %v778
      %v907 = vpop.f32.mrb[0].mxu0
      %v908 = vadd.f32 0.0, %v907
      %v909 = vpop.f32.mrb[0].mxu0
      %910 = vdwg.mxu0
      %v911 = vadd.f32 %v759, %v863
      %v912 = vadd.f32 %v760, %v868
      %v913 = vadd.f32 %v761, %v873
      %v914 = vadd.f32 %v762, %v878
      %v915 = vadd.f32 %v763, %v883
      %v916 = vadd.f32 %v764, %v888
      %v917 = vadd.f32 %v765, %v893
      %v918 = vadd.f32 %v766, %v898
      %v919 = vadd.f32 %v767, %v903
      %v920 = vadd.f32 %v768, %v908
      %v921 = vld [vmem:[%s172 + $0xc] sm:$0xff]
      %v922 = vld [vmem:[%s172 + $0x14] sm:$0xff]
      %v923 = vld [vmem:[%s172 + $0x1c] sm:$0xff]
      %v924 = vld [vmem:[%s172 + $0x24] sm:$0xff]
      %v925 = vld [vmem:[%s172 + $0x2c] sm:$0xff]
      %v926 = vld [vmem:[%s172 + $0x34] sm:$0xff]
      %v927 = vld [vmem:[%s172 + $0x3c] sm:$0xff]
      %v928 = vld [vmem:[%s172 + $0x44] sm:$0xff]
      %v929 = vld [vmem:[%s172 + $0x4c] sm:$0xff]
      %v930 = vld [vmem:[%s172 + $0x54] sm:$0xff]
      %s931 = scalar_lea.vmem %s1, 640
      %v932 = vld [vmem:[%s931] sm:$0xff]
      %v933 = vld [vmem:[%s931 + $0x8] sm:$0xff]
      %v934 = vld [vmem:[%s931 + $0x10] sm:$0xff]
      %v935 = vld [vmem:[%s931 + $0x18] sm:$0xff]
      %v936 = vld [vmem:[%s931 + $0x20] sm:$0xff]
      %v937 = vld [vmem:[%s931 + $0x28] sm:$0xff]
      %v938 = vld [vmem:[%s931 + $0x30] sm:$0xff]
      %v939 = vld [vmem:[%s931 + $0x38] sm:$0xff]
      %v940 = vld [vmem:[%s931 + $0x40] sm:$0xff]
      %v941 = vld [vmem:[%s931 + $0x48] sm:$0xff]
      %v942 = vld [vmem:[%s931 + $0x50] sm:$0xff]
      %v943 = vld [vmem:[%s931 + $0x58] sm:$0xff]
      %v944 = vld [vmem:[%s931 + $0x60] sm:$0xff]
      %v945 = vld [vmem:[%s931 + $0x68] sm:$0xff]
      %v946 = vld [vmem:[%s931 + $0x70] sm:$0xff]
      %v947 = vld [vmem:[%s931 + $0x78] sm:$0xff]
      %948 = vmatprep.subr.mxu0 0.0
      %949 = vmatpush1.msra.mxu0 %v932
      %950 = vmatprep.subr.mxu0 0.0
      %951 = vmatpush1.msra.mxu0 %v933
      %952 = vmatprep.subr.mxu0 0.0
      %953 = vmatpush1.msra.mxu0 %v934
      %954 = vmatprep.subr.mxu0 0.0
      %955 = vmatpush1.msra.mxu0 %v935
      %956 = vmatprep.subr.mxu0 0.0
      %957 = vmatpush1.msra.mxu0 %v936
      %958 = vmatprep.subr.mxu0 0.0
      %959 = vmatpush1.msra.mxu0 %v937
      %960 = vmatprep.subr.mxu0 0.0
      %961 = vmatpush1.msra.mxu0 %v938
      %962 = vmatprep.subr.mxu0 0.0
      %963 = vmatpush1.msra.mxu0 %v939
      %964 = vmatprep.subr.mxu0 0.0
      %965 = vmatpush1.msra.mxu0 %v940
      %966 = vmatprep.subr.mxu0 0.0
      %967 = vmatpush1.msra.mxu0 %v941
      %968 = vmatprep.subr.mxu0 0.0
      %969 = vmatpush1.msra.mxu0 %v942
      %970 = vmatprep.subr.mxu0 0.0
      %971 = vmatpush1.msra.mxu0 %v943
      %972 = vmatprep.subr.mxu0 0.0
      %973 = vmatpush1.msra.mxu0 %v944
      %974 = vmatprep.subr.mxu0 0.0
      %975 = vmatpush1.msra.mxu0 %v945
      %976 = vmatprep.subr.mxu0 0.0
      %977 = vmatpush1.msra.mxu0 %v946
      %978 = vmatprep.subr.mxu0 0.0
      %979 = vmatpush1.msra.mxu0 %v947
      %980 = vmatprep.subr.mxu0 0.0
      %981 = vmatpush1.msra.mxu0 0.0
      %982 = vmatprep.subr.mxu0 0.0
      %983 = vmatpush1.msra.mxu0 0.0
      %984 = vmatprep.subr.mxu0 0.0
      %985 = vmatpush1.msra.mxu0 0.0
      %986 = vmatprep.subr.mxu0 0.0
      %987 = vmatpush1.msra.mxu0 0.0
      %988 = vmatprep.subr.mxu0 0.0
      %989 = vmatpush1.msra.mxu0 0.0
      %990 = vmatprep.subr.mxu0 0.0
      %991 = vmatpush1.msra.mxu0 0.0
      %992 = vmatprep.subr.mxu0 0.0
      %993 = vmatpush1.msra.mxu0 0.0
      %994 = vmatprep.subr.mxu0 0.0
      %995 = vmatpush1.msra.mxu0 0.0
      %996 = vmatprep.subr.mxu0 0.0
      %997 = vmatpush1.msra.mxu0 0.0
      %998 = vmatprep.subr.mxu0 0.0
      %999 = vmatpush1.msra.mxu0 0.0
      %1000 = vmatprep.subr.mxu0 0.0
      %1001 = vmatpush1.msra.mxu0 0.0
      %1002 = vmatprep.subr.mxu0 0.0
      %1003 = vmatpush1.msra.mxu0 0.0
      %1004 = vmatprep.subr.mxu0 0.0
      %1005 = vmatpush1.msra.mxu0 0.0
      %1006 = vmatprep.subr.mxu0 0.0
      %1007 = vmatpush1.msra.mxu0 0.0
      %1008 = vmatprep.subr.mxu0 0.0
      %1009 = vmatpush1.msra.mxu0 0.0
      %1010 = vmatprep.subr.mxu0 0.0
      %1011 = vmatpush1.msra.mxu0 0.0
      %1012 = vmatprep.mubr.f32.mxu0 0.0
      %1013 = vmatmul.mubr.f32.gmra.mrb[0].mxu0 %v921
      %v1014 = vpop.f32.mrb[0].mxu0
      %v1015 = vadd.f32 0.0, %v1014
      %v1016 = vpop.f32.mrb[0].mxu0
      %1017 = vmatprep.mubr.f32.mxu0 0.0
      %1018 = vmatmul.mubr.f32.gmra.mrb[0].mxu0 %v922
      %v1019 = vpop.f32.mrb[0].mxu0
      %v1020 = vadd.f32 0.0, %v1019
      %v1021 = vpop.f32.mrb[0].mxu0
      %1022 = vmatprep.mubr.f32.mxu0 0.0
      %1023 = vmatmul.mubr.f32.gmra.mrb[0].mxu0 %v923
      %v1024 = vpop.f32.mrb[0].mxu0
      %v1025 = vadd.f32 0.0, %v1024
      %v1026 = vpop.f32.mrb[0].mxu0
      %1027 = vmatprep.mubr.f32.mxu0 0.0
      %1028 = vmatmul.mubr.f32.gmra.mrb[0].mxu0 %v924
      %v1029 = vpop.f32.mrb[0].mxu0
      %v1030 = vadd.f32 0.0, %v1029
      %v1031 = vpop.f32.mrb[0].mxu0
      %1032 = vmatprep.mubr.f32.mxu0 0.0
      %1033 = vmatmul.mubr.f32.gmra.mrb[0].mxu0 %v925
      %v1034 = vpop.f32.mrb[0].mxu0
      %v1035 = vadd.f32 0.0, %v1034
      %v1036 = vpop.f32.mrb[0].mxu0
      %1037 = vmatprep.mubr.f32.mxu0 0.0
      %1038 = vmatmul.mubr.f32.gmra.mrb[0].mxu0 %v926
      %v1039 = vpop.f32.mrb[0].mxu0
      %v1040 = vadd.f32 0.0, %v1039
      %v1041 = vpop.f32.mrb[0].mxu0
      %1042 = vmatprep.mubr.f32.mxu0 0.0
      %1043 = vmatmul.mubr.f32.gmra.mrb[0].mxu0 %v927
      %v1044 = vpop.f32.mrb[0].mxu0
      %v1045 = vadd.f32 0.0, %v1044
      %v1046 = vpop.f32.mrb[0].mxu0
      %1047 = vmatprep.mubr.f32.mxu0 0.0
      %1048 = vmatmul.mubr.f32.gmra.mrb[0].mxu0 %v928
      %v1049 = vpop.f32.mrb[0].mxu0
      %v1050 = vadd.f32 0.0, %v1049
      %v1051 = vpop.f32.mrb[0].mxu0
      %1052 = vmatprep.mubr.f32.mxu0 0.0
      %1053 = vmatmul.mubr.f32.gmra.mrb[0].mxu0 %v929
      %v1054 = vpop.f32.mrb[0].mxu0
      %v1055 = vadd.f32 0.0, %v1054
      %v1056 = vpop.f32.mrb[0].mxu0
      %1057 = vmatprep.mubr.f32.mxu0 0.0
      %1058 = vmatmul.mubr.f32.gmra.mrb[0].mxu0 %v930
      %v1059 = vpop.f32.mrb[0].mxu0
      %v1060 = vadd.f32 0.0, %v1059
      %v1061 = vpop.f32.mrb[0].mxu0
      %1062 = vdwg.mxu0
      %v1063 = vadd.f32 %v911, %v1015
      %v1064 = vadd.f32 %v912, %v1020
      %v1065 = vadd.f32 %v913, %v1025
      %v1066 = vadd.f32 %v914, %v1030
      %v1067 = vadd.f32 %v915, %v1035
      %v1068 = vadd.f32 %v916, %v1040
      %v1069 = vadd.f32 %v917, %v1045
      %v1070 = vadd.f32 %v918, %v1050
      %v1071 = vadd.f32 %v919, %v1055
      %v1072 = vadd.f32 %v920, %v1060
      %v1073 = vld [vmem:[%s172 + $0x14] sm:$0xff]
      %v1074 = vld [vmem:[%s172 + $0x1c] sm:$0xff]
      %v1075 = vld [vmem:[%s172 + $0x24] sm:$0xff]
      %v1076 = vld [vmem:[%s172 + $0x2c] sm:$0xff]
      %v1077 = vld [vmem:[%s172 + $0x34] sm:$0xff]
      %v1078 = vld [vmem:[%s172 + $0x3c] sm:$0xff]
      %v1079 = vld [vmem:[%s172 + $0x44] sm:$0xff]
      %v1080 = vld [vmem:[%s172 + $0x4c] sm:$0xff]
      %v1081 = vld [vmem:[%s172 + $0x54] sm:$0xff]
      %v1082 = vld [vmem:[%s172 + $0x5c] sm:$0xff]
      %s1083 = scalar_lea.vmem %s1, 768
      %v1084 = vld [vmem:[%s1083] sm:$0xff]
      %v1085 = vld [vmem:[%s1083 + $0x8] sm:$0xff]
      %v1086 = vld [vmem:[%s1083 + $0x10] sm:$0xff]
      %v1087 = vld [vmem:[%s1083 + $0x18] sm:$0xff]
      %v1088 = vld [vmem:[%s1083 + $0x20] sm:$0xff]
      %v1089 = vld [vmem:[%s1083 + $0x28] sm:$0xff]
      %v1090 = vld [vmem:[%s1083 + $0x30] sm:$0xff]
      %v1091 = vld [vmem:[%s1083 + $0x38] sm:$0xff]
      %v1092 = vld [vmem:[%s1083 + $0x40] sm:$0xff]
      %v1093 = vld [vmem:[%s1083 + $0x48] sm:$0xff]
      %v1094 = vld [vmem:[%s1083 + $0x50] sm:$0xff]
      %v1095 = vld [vmem:[%s1083 + $0x58] sm:$0xff]
      %v1096 = vld [vmem:[%s1083 + $0x60] sm:$0xff]
      %v1097 = vld [vmem:[%s1083 + $0x68] sm:$0xff]
      %v1098 = vld [vmem:[%s1083 + $0x70] sm:$0xff]
      %v1099 = vld [vmem:[%s1083 + $0x78] sm:$0xff]
      %1100 = vmatprep.subr.mxu0 0.0
      %1101 = vmatpush1.msra.mxu0 %v1084
      %1102 = vmatprep.subr.mxu0 0.0
      %1103 = vmatpush1.msra.mxu0 %v1085
      %1104 = vmatprep.subr.mxu0 0.0
      %1105 = vmatpush1.msra.mxu0 %v1086
      %1106 = vmatprep.subr.mxu0 0.0
      %1107 = vmatpush1.msra.mxu0 %v1087
      %1108 = vmatprep.subr.mxu0 0.0
      %1109 = vmatpush1.msra.mxu0 %v1088
      %1110 = vmatprep.subr.mxu0 0.0
      %1111 = vmatpush1.msra.mxu0 %v1089
      %1112 = vmatprep.subr.mxu0 0.0
      %1113 = vmatpush1.msra.mxu0 %v1090
      %1114 = vmatprep.subr.mxu0 0.0
      %1115 = vmatpush1.msra.mxu0 %v1091
      %1116 = vmatprep.subr.mxu0 0.0
      %1117 = vmatpush1.msra.mxu0 %v1092
      %1118 = vmatprep.subr.mxu0 0.0
      %1119 = vmatpush1.msra.mxu0 %v1093
      %1120 = vmatprep.subr.mxu0 0.0
      %1121 = vmatpush1.msra.mxu0 %v1094
      %1122 = vmatprep.subr.mxu0 0.0
      %1123 = vmatpush1.msra.mxu0 %v1095
      %1124 = vmatprep.subr.mxu0 0.0
      %1125 = vmatpush1.msra.mxu0 %v1096
      %1126 = vmatprep.subr.mxu0 0.0
      %1127 = vmatpush1.msra.mxu0 %v1097
      %1128 = vmatprep.subr.mxu0 0.0
      %1129 = vmatpush1.msra.mxu0 %v1098
      %1130 = vmatprep.subr.mxu0 0.0
      %1131 = vmatpush1.msra.mxu0 %v1099
      %1132 = vmatprep.subr.mxu0 0.0
      %1133 = vmatpush1.msra.mxu0 0.0
      %1134 = vmatprep.subr.mxu0 0.0
      %1135 = vmatpush1.msra.mxu0 0.0
      %1136 = vmatprep.subr.mxu0 0.0
      %1137 = vmatpush1.msra.mxu0 0.0
      %1138 = vmatprep.subr.mxu0 0.0
      %1139 = vmatpush1.msra.mxu0 0.0
      %1140 = vmatprep.subr.mxu0 0.0
      %1141 = vmatpush1.msra.mxu0 0.0
      %1142 = vmatprep.subr.mxu0 0.0
      %1143 = vmatpush1.msra.mxu0 0.0
      %1144 = vmatprep.subr.mxu0 0.0
      %1145 = vmatpush1.msra.mxu0 0.0
      %1146 = vmatprep.subr.mxu0 0.0
      %1147 = vmatpush1.msra.mxu0 0.0
      %1148 = vmatprep.subr.mxu0 0.0
      %1149 = vmatpush1.msra.mxu0 0.0
      %1150 = vmatprep.subr.mxu0 0.0
      %1151 = vmatpush1.msra.mxu0 0.0
      %1152 = vmatprep.subr.mxu0 0.0
      %1153 = vmatpush1.msra.mxu0 0.0
      %1154 = vmatprep.subr.mxu0 0.0
      %1155 = vmatpush1.msra.mxu0 0.0
      %1156 = vmatprep.subr.mxu0 0.0
      %1157 = vmatpush1.msra.mxu0 0.0
      %1158 = vmatprep.subr.mxu0 0.0
      %1159 = vmatpush1.msra.mxu0 0.0
      %1160 = vmatprep.subr.mxu0 0.0
      %1161 = vmatpush1.msra.mxu0 0.0
      %1162 = vmatprep.subr.mxu0 0.0
      %1163 = vmatpush1.msra.mxu0 0.0
      %1164 = vmatprep.mubr.f32.mxu0 0.0
      %1165 = vmatmul.mubr.f32.gmra.mrb[0].mxu0 %v1073
      %v1166 = vpop.f32.mrb[0].mxu0
      %v1167 = vadd.f32 0.0, %v1166
      %v1168 = vpop.f32.mrb[0].mxu0
      %1169 = vmatprep.mubr.f32.mxu0 0.0
      %1170 = vmatmul.mubr.f32.gmra.mrb[0].mxu0 %v1074
      %v1171 = vpop.f32.mrb[0].mxu0
      %v1172 = vadd.f32 0.0, %v1171
      %v1173 = vpop.f32.mrb[0].mxu0
      %1174 = vmatprep.mubr.f32.mxu0 0.0
      %1175 = vmatmul.mubr.f32.gmra.mrb[0].mxu0 %v1075
      %v1176 = vpop.f32.mrb[0].mxu0
      %v1177 = vadd.f32 0.0, %v1176
      %v1178 = vpop.f32.mrb[0].mxu0
      %1179 = vmatprep.mubr.f32.mxu0 0.0
      %1180 = vmatmul.mubr.f32.gmra.mrb[0].mxu0 %v1076
      %v1181 = vpop.f32.mrb[0].mxu0
      %v1182 = vadd.f32 0.0, %v1181
      %v1183 = vpop.f32.mrb[0].mxu0
      %1184 = vmatprep.mubr.f32.mxu0 0.0
      %1185 = vmatmul.mubr.f32.gmra.mrb[0].mxu0 %v1077
      %v1186 = vpop.f32.mrb[0].mxu0
      %v1187 = vadd.f32 0.0, %v1186
      %v1188 = vpop.f32.mrb[0].mxu0
      %1189 = vmatprep.mubr.f32.mxu0 0.0
      %1190 = vmatmul.mubr.f32.gmra.mrb[0].mxu0 %v1078
      %v1191 = vpop.f32.mrb[0].mxu0
      %v1192 = vadd.f32 0.0, %v1191
      %v1193 = vpop.f32.mrb[0].mxu0
      %1194 = vmatprep.mubr.f32.mxu0 0.0
      %1195 = vmatmul.mubr.f32.gmra.mrb[0].mxu0 %v1079
      %v1196 = vpop.f32.mrb[0].mxu0
      %v1197 = vadd.f32 0.0, %v1196
      %v1198 = vpop.f32.mrb[0].mxu0
      %1199 = vmatprep.mubr.f32.mxu0 0.0
      %1200 = vmatmul.mubr.f32.gmra.mrb[0].mxu0 %v1080
      %v1201 = vpop.f32.mrb[0].mxu0
      %v1202 = vadd.f32 0.0, %v1201
      %v1203 = vpop.f32.mrb[0].mxu0
      %1204 = vmatprep.mubr.f32.mxu0 0.0
      %1205 = vmatmul.mubr.f32.gmra.mrb[0].mxu0 %v1081
      %v1206 = vpop.f32.mrb[0].mxu0
      %v1207 = vadd.f32 0.0, %v1206
      %v1208 = vpop.f32.mrb[0].mxu0
      %1209 = vmatprep.mubr.f32.mxu0 0.0
      %1210 = vmatmul.mubr.f32.gmra.mrb[0].mxu0 %v1082
      %v1211 = vpop.f32.mrb[0].mxu0
      %v1212 = vadd.f32 0.0, %v1211
      %v1213 = vpop.f32.mrb[0].mxu0
      %1214 = vdwg.mxu0
      %v1215 = vadd.f32 %v1063, %v1167
      %v1216 = vadd.f32 %v1064, %v1172
      %v1217 = vadd.f32 %v1065, %v1177
      %v1218 = vadd.f32 %v1066, %v1182
      %v1219 = vadd.f32 %v1067, %v1187
      %v1220 = vadd.f32 %v1068, %v1192
      %v1221 = vadd.f32 %v1069, %v1197
      %v1222 = vadd.f32 %v1070, %v1202
      %v1223 = vadd.f32 %v1071, %v1207
      %v1224 = vadd.f32 %v1072, %v1212
      %v1225 = vld [vmem:[%s172 + $0x15] sm:$0xff]
      %v1226 = vld [vmem:[%s172 + $0x1d] sm:$0xff]
      %v1227 = vld [vmem:[%s172 + $0x25] sm:$0xff]
      %v1228 = vld [vmem:[%s172 + $0x2d] sm:$0xff]
      %v1229 = vld [vmem:[%s172 + $0x35] sm:$0xff]
      %v1230 = vld [vmem:[%s172 + $0x3d] sm:$0xff]
      %v1231 = vld [vmem:[%s172 + $0x45] sm:$0xff]
      %v1232 = vld [vmem:[%s172 + $0x4d] sm:$0xff]
      %v1233 = vld [vmem:[%s172 + $0x55] sm:$0xff]
      %v1234 = vld [vmem:[%s172 + $0x5d] sm:$0xff]
      %s1235 = scalar_lea.vmem %s1, 896
      %v1236 = vld [vmem:[%s1235] sm:$0xff]
      %v1237 = vld [vmem:[%s1235 + $0x8] sm:$0xff]
      %v1238 = vld [vmem:[%s1235 + $0x10] sm:$0xff]
      %v1239 = vld [vmem:[%s1235 + $0x18] sm:$0xff]
      %v1240 = vld [vmem:[%s1235 + $0x20] sm:$0xff]
      %v1241 = vld [vmem:[%s1235 + $0x28] sm:$0xff]
      %v1242 = vld [vmem:[%s1235 + $0x30] sm:$0xff]
      %v1243 = vld [vmem:[%s1235 + $0x38] sm:$0xff]
      %v1244 = vld [vmem:[%s1235 + $0x40] sm:$0xff]
      %v1245 = vld [vmem:[%s1235 + $0x48] sm:$0xff]
      %v1246 = vld [vmem:[%s1235 + $0x50] sm:$0xff]
      %v1247 = vld [vmem:[%s1235 + $0x58] sm:$0xff]
      %v1248 = vld [vmem:[%s1235 + $0x60] sm:$0xff]
      %v1249 = vld [vmem:[%s1235 + $0x68] sm:$0xff]
      %v1250 = vld [vmem:[%s1235 + $0x70] sm:$0xff]
      %v1251 = vld [vmem:[%s1235 + $0x78] sm:$0xff]
      %1252 = vmatprep.subr.mxu0 0.0
      %1253 = vmatpush1.msra.mxu0 %v1236
      %1254 = vmatprep.subr.mxu0 0.0
      %1255 = vmatpush1.msra.mxu0 %v1237
      %1256 = vmatprep.subr.mxu0 0.0
      %1257 = vmatpush1.msra.mxu0 %v1238
      %1258 = vmatprep.subr.mxu0 0.0
      %1259 = vmatpush1.msra.mxu0 %v1239
      %1260 = vmatprep.subr.mxu0 0.0
      %1261 = vmatpush1.msra.mxu0 %v1240
      %1262 = vmatprep.subr.mxu0 0.0
      %1263 = vmatpush1.msra.mxu0 %v1241
      %1264 = vmatprep.subr.mxu0 0.0
      %1265 = vmatpush1.msra.mxu0 %v1242
      %1266 = vmatprep.subr.mxu0 0.0
      %1267 = vmatpush1.msra.mxu0 %v1243
      %1268 = vmatprep.subr.mxu0 0.0
      %1269 = vmatpush1.msra.mxu0 %v1244
      %1270 = vmatprep.subr.mxu0 0.0
      %1271 = vmatpush1.msra.mxu0 %v1245
      %1272 = vmatprep.subr.mxu0 0.0
      %1273 = vmatpush1.msra.mxu0 %v1246
      %1274 = vmatprep.subr.mxu0 0.0
      %1275 = vmatpush1.msra.mxu0 %v1247
      %1276 = vmatprep.subr.mxu0 0.0
      %1277 = vmatpush1.msra.mxu0 %v1248
      %1278 = vmatprep.subr.mxu0 0.0
      %1279 = vmatpush1.msra.mxu0 %v1249
      %1280 = vmatprep.subr.mxu0 0.0
      %1281 = vmatpush1.msra.mxu0 %v1250
      %1282 = vmatprep.subr.mxu0 0.0
      %1283 = vmatpush1.msra.mxu0 %v1251
      %1284 = vmatprep.subr.mxu0 0.0
      %1285 = vmatpush1.msra.mxu0 0.0
      %1286 = vmatprep.subr.mxu0 0.0
      %1287 = vmatpush1.msra.mxu0 0.0
      %1288 = vmatprep.subr.mxu0 0.0
      %1289 = vmatpush1.msra.mxu0 0.0
      %1290 = vmatprep.subr.mxu0 0.0
      %1291 = vmatpush1.msra.mxu0 0.0
      %1292 = vmatprep.subr.mxu0 0.0
      %1293 = vmatpush1.msra.mxu0 0.0
      %1294 = vmatprep.subr.mxu0 0.0
      %1295 = vmatpush1.msra.mxu0 0.0
      %1296 = vmatprep.subr.mxu0 0.0
      %1297 = vmatpush1.msra.mxu0 0.0
      %1298 = vmatprep.subr.mxu0 0.0
      %1299 = vmatpush1.msra.mxu0 0.0
      %1300 = vmatprep.subr.mxu0 0.0
      %1301 = vmatpush1.msra.mxu0 0.0
      %1302 = vmatprep.subr.mxu0 0.0
      %1303 = vmatpush1.msra.mxu0 0.0
      %1304 = vmatprep.subr.mxu0 0.0
      %1305 = vmatpush1.msra.mxu0 0.0
      %1306 = vmatprep.subr.mxu0 0.0
      %1307 = vmatpush1.msra.mxu0 0.0
      %1308 = vmatprep.subr.mxu0 0.0
      %1309 = vmatpush1.msra.mxu0 0.0
      %1310 = vmatprep.subr.mxu0 0.0
      %1311 = vmatpush1.msra.mxu0 0.0
      %1312 = vmatprep.subr.mxu0 0.0
      %1313 = vmatpush1.msra.mxu0 0.0
      %1314 = vmatprep.subr.mxu0 0.0
      %1315 = vmatpush1.msra.mxu0 0.0
      %1316 = vmatprep.mubr.f32.mxu0 0.0
      %1317 = vmatmul.mubr.f32.gmra.mrb[0].mxu0 %v1225
      %v1318 = vpop.f32.mrb[0].mxu0
      %v1319 = vadd.f32 0.0, %v1318
      %v1320 = vpop.f32.mrb[0].mxu0
      %1321 = vmatprep.mubr.f32.mxu0 0.0
      %1322 = vmatmul.mubr.f32.gmra.mrb[0].mxu0 %v1226
      %v1323 = vpop.f32.mrb[0].mxu0
      %v1324 = vadd.f32 0.0, %v1323
      %v1325 = vpop.f32.mrb[0].mxu0
      %1326 = vmatprep.mubr.f32.mxu0 0.0
      %1327 = vmatmul.mubr.f32.gmra.mrb[0].mxu0 %v1227
      %v1328 = vpop.f32.mrb[0].mxu0
      %v1329 = vadd.f32 0.0, %v1328
      %v1330 = vpop.f32.mrb[0].mxu0
      %1331 = vmatprep.mubr.f32.mxu0 0.0
      %1332 = vmatmul.mubr.f32.gmra.mrb[0].mxu0 %v1228
      %v1333 = vpop.f32.mrb[0].mxu0
      %v1334 = vadd.f32 0.0, %v1333
      %v1335 = vpop.f32.mrb[0].mxu0
      %1336 = vmatprep.mubr.f32.mxu0 0.0
      %1337 = vmatmul.mubr.f32.gmra.mrb[0].mxu0 %v1229
      %v1338 = vpop.f32.mrb[0].mxu0
      %v1339 = vadd.f32 0.0, %v1338
      %v1340 = vpop.f32.mrb[0].mxu0
      %1341 = vmatprep.mubr.f32.mxu0 0.0
      %1342 = vmatmul.mubr.f32.gmra.mrb[0].mxu0 %v1230
      %v1343 = vpop.f32.mrb[0].mxu0
      %v1344 = vadd.f32 0.0, %v1343
      %v1345 = vpop.f32.mrb[0].mxu0
      %1346 = vmatprep.mubr.f32.mxu0 0.0
      %1347 = vmatmul.mubr.f32.gmra.mrb[0].mxu0 %v1231
      %v1348 = vpop.f32.mrb[0].mxu0
      %v1349 = vadd.f32 0.0, %v1348
      %v1350 = vpop.f32.mrb[0].mxu0
      %1351 = vmatprep.mubr.f32.mxu0 0.0
      %1352 = vmatmul.mubr.f32.gmra.mrb[0].mxu0 %v1232
      %v1353 = vpop.f32.mrb[0].mxu0
      %v1354 = vadd.f32 0.0, %v1353
      %v1355 = vpop.f32.mrb[0].mxu0
      %1356 = vmatprep.mubr.f32.mxu0 0.0
      %1357 = vmatmul.mubr.f32.gmra.mrb[0].mxu0 %v1233
      %v1358 = vpop.f32.mrb[0].mxu0
      %v1359 = vadd.f32 0.0, %v1358
      %v1360 = vpop.f32.mrb[0].mxu0
      %1361 = vmatprep.mubr.f32.mxu0 0.0
      %1362 = vmatmul.mubr.f32.gmra.mrb[0].mxu0 %v1234
      %v1363 = vpop.f32.mrb[0].mxu0
      %v1364 = vadd.f32 0.0, %v1363
      %v1365 = vpop.f32.mrb[0].mxu0
      %1366 = vdwg.mxu0
      %v1367 = vadd.f32 %v1215, %v1319
      %v1368 = vadd.f32 %v1216, %v1324
      %v1369 = vadd.f32 %v1217, %v1329
      %v1370 = vadd.f32 %v1218, %v1334
      %v1371 = vadd.f32 %v1219, %v1339
      %v1372 = vadd.f32 %v1220, %v1344
      %v1373 = vadd.f32 %v1221, %v1349
      %v1374 = vadd.f32 %v1222, %v1354
      %v1375 = vadd.f32 %v1223, %v1359
      %v1376 = vadd.f32 %v1224, %v1364
      %v1377 = vld [vmem:[%s172 + $0x16] sm:$0xff]
      %v1378 = vld [vmem:[%s172 + $0x1e] sm:$0xff]
      %v1379 = vld [vmem:[%s172 + $0x26] sm:$0xff]
      %v1380 = vld [vmem:[%s172 + $0x2e] sm:$0xff]
      %v1381 = vld [vmem:[%s172 + $0x36] sm:$0xff]
      %v1382 = vld [vmem:[%s172 + $0x3e] sm:$0xff]
      %v1383 = vld [vmem:[%s172 + $0x46] sm:$0xff]
      %v1384 = vld [vmem:[%s172 + $0x4e] sm:$0xff]
      %v1385 = vld [vmem:[%s172 + $0x56] sm:$0xff]
      %v1386 = vld [vmem:[%s172 + $0x5e] sm:$0xff]
      %s1387 = scalar_lea.vmem %s1, 1024
      %v1388 = vld [vmem:[%s1387] sm:$0xff]
      %v1389 = vld [vmem:[%s1387 + $0x8] sm:$0xff]
      %v1390 = vld [vmem:[%s1387 + $0x10] sm:$0xff]
      %v1391 = vld [vmem:[%s1387 + $0x18] sm:$0xff]
      %v1392 = vld [vmem:[%s1387 + $0x20] sm:$0xff]
      %v1393 = vld [vmem:[%s1387 + $0x28] sm:$0xff]
      %v1394 = vld [vmem:[%s1387 + $0x30] sm:$0xff]
      %v1395 = vld [vmem:[%s1387 + $0x38] sm:$0xff]
      %v1396 = vld [vmem:[%s1387 + $0x40] sm:$0xff]
      %v1397 = vld [vmem:[%s1387 + $0x48] sm:$0xff]
      %v1398 = vld [vmem:[%s1387 + $0x50] sm:$0xff]
      %v1399 = vld [vmem:[%s1387 + $0x58] sm:$0xff]
      %v1400 = vld [vmem:[%s1387 + $0x60] sm:$0xff]
      %v1401 = vld [vmem:[%s1387 + $0x68] sm:$0xff]
      %v1402 = vld [vmem:[%s1387 + $0x70] sm:$0xff]
      %v1403 = vld [vmem:[%s1387 + $0x78] sm:$0xff]
      %1404 = vmatprep.subr.mxu0 0.0
      %1405 = vmatpush1.msra.mxu0 %v1388
      %1406 = vmatprep.subr.mxu0 0.0
      %1407 = vmatpush1.msra.mxu0 %v1389
      %1408 = vmatprep.subr.mxu0 0.0
      %1409 = vmatpush1.msra.mxu0 %v1390
      %1410 = vmatprep.subr.mxu0 0.0
      %1411 = vmatpush1.msra.mxu0 %v1391
      %1412 = vmatprep.subr.mxu0 0.0
      %1413 = vmatpush1.msra.mxu0 %v1392
      %1414 = vmatprep.subr.mxu0 0.0
      %1415 = vmatpush1.msra.mxu0 %v1393
      %1416 = vmatprep.subr.mxu0 0.0
      %1417 = vmatpush1.msra.mxu0 %v1394
      %1418 = vmatprep.subr.mxu0 0.0
      %1419 = vmatpush1.msra.mxu0 %v1395
      %1420 = vmatprep.subr.mxu0 0.0
      %1421 = vmatpush1.msra.mxu0 %v1396
      %1422 = vmatprep.subr.mxu0 0.0
      %1423 = vmatpush1.msra.mxu0 %v1397
      %1424 = vmatprep.subr.mxu0 0.0
      %1425 = vmatpush1.msra.mxu0 %v1398
      %1426 = vmatprep.subr.mxu0 0.0
      %1427 = vmatpush1.msra.mxu0 %v1399
      %1428 = vmatprep.subr.mxu0 0.0
      %1429 = vmatpush1.msra.mxu0 %v1400
      %1430 = vmatprep.subr.mxu0 0.0
      %1431 = vmatpush1.msra.mxu0 %v1401
      %1432 = vmatprep.subr.mxu0 0.0
      %1433 = vmatpush1.msra.mxu0 %v1402
      %1434 = vmatprep.subr.mxu0 0.0
      %1435 = vmatpush1.msra.mxu0 %v1403
      %1436 = vmatprep.subr.mxu0 0.0
      %1437 = vmatpush1.msra.mxu0 0.0
      %1438 = vmatprep.subr.mxu0 0.0
      %1439 = vmatpush1.msra.mxu0 0.0
      %1440 = vmatprep.subr.mxu0 0.0
      %1441 = vmatpush1.msra.mxu0 0.0
      %1442 = vmatprep.subr.mxu0 0.0
      %1443 = vmatpush1.msra.mxu0 0.0
      %1444 = vmatprep.subr.mxu0 0.0
      %1445 = vmatpush1.msra.mxu0 0.0
      %1446 = vmatprep.subr.mxu0 0.0
      %1447 = vmatpush1.msra.mxu0 0.0
      %1448 = vmatprep.subr.mxu0 0.0
      %1449 = vmatpush1.msra.mxu0 0.0
      %1450 = vmatprep.subr.mxu0 0.0
      %1451 = vmatpush1.msra.mxu0 0.0
      %1452 = vmatprep.subr.mxu0 0.0
      %1453 = vmatpush1.msra.mxu0 0.0
      %1454 = vmatprep.subr.mxu0 0.0
      %1455 = vmatpush1.msra.mxu0 0.0
      %1456 = vmatprep.subr.mxu0 0.0
      %1457 = vmatpush1.msra.mxu0 0.0
      %1458 = vmatprep.subr.mxu0 0.0
      %1459 = vmatpush1.msra.mxu0 0.0
      %1460 = vmatprep.subr.mxu0 0.0
      %1461 = vmatpush1.msra.mxu0 0.0
      %1462 = vmatprep.subr.mxu0 0.0
      %1463 = vmatpush1.msra.mxu0 0.0
      %1464 = vmatprep.subr.mxu0 0.0
      %1465 = vmatpush1.msra.mxu0 0.0
      %1466 = vmatprep.subr.mxu0 0.0
      %1467 = vmatpush1.msra.mxu0 0.0
      %1468 = vmatprep.mubr.f32.mxu0 0.0
      %1469 = vmatmul.mubr.f32.gmra.mrb[0].mxu0 %v1377
      %v1470 = vpop.f32.mrb[0].mxu0
      %v1471 = vadd.f32 0.0, %v1470
      %v1472 = vpop.f32.mrb[0].mxu0
      %1473 = vmatprep.mubr.f32.mxu0 0.0
      %1474 = vmatmul.mubr.f32.gmra.mrb[0].mxu0 %v1378
      %v1475 = vpop.f32.mrb[0].mxu0
      %v1476 = vadd.f32 0.0, %v1475
      %v1477 = vpop.f32.mrb[0].mxu0
      %1478 = vmatprep.mubr.f32.mxu0 0.0
      %1479 = vmatmul.mubr.f32.gmra.mrb[0].mxu0 %v1379
      %v1480 = vpop.f32.mrb[0].mxu0
      %v1481 = vadd.f32 0.0, %v1480
      %v1482 = vpop.f32.mrb[0].mxu0
      %1483 = vmatprep.mubr.f32.mxu0 0.0
      %1484 = vmatmul.mubr.f32.gmra.mrb[0].mxu0 %v1380
      %v1485 = vpop.f32.mrb[0].mxu0
      %v1486 = vadd.f32 0.0, %v1485
      %v1487 = vpop.f32.mrb[0].mxu0
      %1488 = vmatprep.mubr.f32.mxu0 0.0
      %1489 = vmatmul.mubr.f32.gmra.mrb[0].mxu0 %v1381
      %v1490 = vpop.f32.mrb[0].mxu0
      %v1491 = vadd.f32 0.0, %v1490
      %v1492 = vpop.f32.mrb[0].mxu0
      %1493 = vmatprep.mubr.f32.mxu0 0.0
      %1494 = vmatmul.mubr.f32.gmra.mrb[0].mxu0 %v1382
      %v1495 = vpop.f32.mrb[0].mxu0
      %v1496 = vadd.f32 0.0, %v1495
      %v1497 = vpop.f32.mrb[0].mxu0
      %1498 = vmatprep.mubr.f32.mxu0 0.0
      %1499 = vmatmul.mubr.f32.gmra.mrb[0].mxu0 %v1383
      %v1500 = vpop.f32.mrb[0].mxu0
      %v1501 = vadd.f32 0.0, %v1500
      %v1502 = vpop.f32.mrb[0].mxu0
      %1503 = vmatprep.mubr.f32.mxu0 0.0
      %1504 = vmatmul.mubr.f32.gmra.mrb[0].mxu0 %v1384
      %v1505 = vpop.f32.mrb[0].mxu0
      %v1506 = vadd.f32 0.0, %v1505
      %v1507 = vpop.f32.mrb[0].mxu0
      %1508 = vmatprep.mubr.f32.mxu0 0.0
      %1509 = vmatmul.mubr.f32.gmra.mrb[0].mxu0 %v1385
      %v1510 = vpop.f32.mrb[0].mxu0
      %v1511 = vadd.f32 0.0, %v1510
      %v1512 = vpop.f32.mrb[0].mxu0
      %1513 = vmatprep.mubr.f32.mxu0 0.0
      %1514 = vmatmul.mubr.f32.gmra.mrb[0].mxu0 %v1386
      %v1515 = vpop.f32.mrb[0].mxu0
      %v1516 = vadd.f32 0.0, %v1515
      %v1517 = vpop.f32.mrb[0].mxu0
      %1518 = vdwg.mxu0
      %v1519 = vadd.f32 %v1367, %v1471
      %v1520 = vadd.f32 %v1368, %v1476
      %v1521 = vadd.f32 %v1369, %v1481
      %v1522 = vadd.f32 %v1370, %v1486
      %v1523 = vadd.f32 %v1371, %v1491
      %v1524 = vadd.f32 %v1372, %v1496
      %v1525 = vadd.f32 %v1373, %v1501
      %v1526 = vadd.f32 %v1374, %v1506
      %v1527 = vadd.f32 %v1375, %v1511
      %v1528 = vadd.f32 %v1376, %v1516
      %1529 = vst [vmem:[%s177] sm:$0xff] %v1519
      %1530 = vst [vmem:[%s177 + $0x8] sm:$0xff] %v1520
      %1531 = vst [vmem:[%s177 + $0x10] sm:$0xff] %v1521
      %1532 = vst [vmem:[%s177 + $0x18] sm:$0xff] %v1522
      %1533 = vst [vmem:[%s177 + $0x20] sm:$0xff] %v1523
      %1534 = vst [vmem:[%s177 + $0x28] sm:$0xff] %v1524
      %1535 = vst [vmem:[%s177 + $0x30] sm:$0xff] %v1525
      %1536 = vst [vmem:[%s177 + $0x38] sm:$0xff] %v1526
      %1537 = vst [vmem:[%s177 + $0x40] sm:$0xff] %v1527
      %1538 = vst [vmem:[%s177 + $0x48] sm:$0xff] %v1528
      %v1539 = vlaneseq
      %v1540 = vshrl.u32 %v1539, 7
      %v1541 = vadd.s32 %v1540, 8
      %v1542 = vadd.s32 %v1540, 16
      %v1543 = vadd.s32 %v1540, 24
      %v1544 = vadd.s32 %v1540, 32
      %v1545 = vadd.s32 %v1540, 40
      %v1546 = vadd.s32 %v1540, 48
      %v1547 = vadd.s32 %v1540, 56
      %v1548 = vadd.s32 %v1540, 64
      %v1549 = vadd.s32 %v1540, 72
      %vm1550 = vcmp.lt.s32.totalorder %v1540, 0
      %v1551 = vsub.s32 0, %v1540
      %v1552 = vsel %vm1550, %v1551, %v1540
      %v1553 = vmul.u32.u64.compose %v1552, 3435973837
      %v1554 = vextract.low.u32 %v1553
      %v1555 = vextract.high.u32 %v1553
      %v1556 = vshrl.u32 %v1555, 3
      %v1557 = vmul.u32 %v1556, 10
      %v1558 = vsub.s32 %v1552, %v1557
      %v1559 = vsub.s32 0, %v1558
      %v1560 = vsel %vm1550, %v1559, %v1558
      %vm1561 = vcmp.lt.s32.totalorder %v1541, 0
      %v1562 = vsub.s32 0, %v1541
      %v1563 = vsel %vm1561, %v1562, %v1541
      %v1564 = vmul.u32.u64.compose %v1563, 3435973837
      %v1565 = vextract.low.u32 %v1564
      %v1566 = vextract.high.u32 %v1564
      %v1567 = vshrl.u32 %v1566, 3
      %v1568 = vmul.u32 %v1567, 10
      %v1569 = vsub.s32 %v1563, %v1568
      %v1570 = vsub.s32 0, %v1569
      %v1571 = vsel %vm1561, %v1570, %v1569
      %vm1572 = vcmp.lt.s32.totalorder %v1542, 0
      %v1573 = vsub.s32 0, %v1542
      %v1574 = vsel %vm1572, %v1573, %v1542
      %v1575 = vmul.u32.u64.compose %v1574, 3435973837
      %v1576 = vextract.low.u32 %v1575
      %v1577 = vextract.high.u32 %v1575
      %v1578 = vshrl.u32 %v1577, 3
      %v1579 = vmul.u32 %v1578, 10
      %v1580 = vsub.s32 %v1574, %v1579
      %v1581 = vsub.s32 0, %v1580
      %v1582 = vsel %vm1572, %v1581, %v1580
      %vm1583 = vcmp.lt.s32.totalorder %v1543, 0
      %v1584 = vsub.s32 0, %v1543
      %v1585 = vsel %vm1583, %v1584, %v1543
      %v1586 = vmul.u32.u64.compose %v1585, 3435973837
      %v1587 = vextract.low.u32 %v1586
      %v1588 = vextract.high.u32 %v1586
      %v1589 = vshrl.u32 %v1588, 3
      %v1590 = vmul.u32 %v1589, 10
      %v1591 = vsub.s32 %v1585, %v1590
      %v1592 = vsub.s32 0, %v1591
      %v1593 = vsel %vm1583, %v1592, %v1591
      %vm1594 = vcmp.lt.s32.totalorder %v1544, 0
      %v1595 = vsub.s32 0, %v1544
      %v1596 = vsel %vm1594, %v1595, %v1544
      %v1597 = vmul.u32.u64.compose %v1596, 3435973837
      %v1598 = vextract.low.u32 %v1597
      %v1599 = vextract.high.u32 %v1597
      %v1600 = vshrl.u32 %v1599, 3
      %v1601 = vmul.u32 %v1600, 10
      %v1602 = vsub.s32 %v1596, %v1601
      %v1603 = vsub.s32 0, %v1602
      %v1604 = vsel %vm1594, %v1603, %v1602
      %vm1605 = vcmp.lt.s32.totalorder %v1545, 0
      %v1606 = vsub.s32 0, %v1545
      %v1607 = vsel %vm1605, %v1606, %v1545
      %v1608 = vmul.u32.u64.compose %v1607, 3435973837
      %v1609 = vextract.low.u32 %v1608
      %v1610 = vextract.high.u32 %v1608
      %v1611 = vshrl.u32 %v1610, 3
      %v1612 = vmul.u32 %v1611, 10
      %v1613 = vsub.s32 %v1607, %v1612
      %v1614 = vsub.s32 0, %v1613
      %v1615 = vsel %vm1605, %v1614, %v1613
      %vm1616 = vcmp.lt.s32.totalorder %v1546, 0
      %v1617 = vsub.s32 0, %v1546
      %v1618 = vsel %vm1616, %v1617, %v1546
      %v1619 = vmul.u32.u64.compose %v1618, 3435973837
      %v1620 = vextract.low.u32 %v1619
      %v1621 = vextract.high.u32 %v1619
      %v1622 = vshrl.u32 %v1621, 3
      %v1623 = vmul.u32 %v1622, 10
      %v1624 = vsub.s32 %v1618, %v1623
      %v1625 = vsub.s32 0, %v1624
      %v1626 = vsel %vm1616, %v1625, %v1624
      %vm1627 = vcmp.lt.s32.totalorder %v1547, 0
      %v1628 = vsub.s32 0, %v1547
      %v1629 = vsel %vm1627, %v1628, %v1547
      %v1630 = vmul.u32.u64.compose %v1629, 3435973837
      %v1631 = vextract.low.u32 %v1630
      %v1632 = vextract.high.u32 %v1630
      %v1633 = vshrl.u32 %v1632, 3
      %v1634 = vmul.u32 %v1633, 10
      %v1635 = vsub.s32 %v1629, %v1634
      %v1636 = vsub.s32 0, %v1635
      %v1637 = vsel %vm1627, %v1636, %v1635
      %vm1638 = vcmp.lt.s32.totalorder %v1548, 0
      %v1639 = vsub.s32 0, %v1548
      %v1640 = vsel %vm1638, %v1639, %v1548
      %v1641 = vmul.u32.u64.compose %v1640, 3435973837
      %v1642 = vextract.low.u32 %v1641
      %v1643 = vextract.high.u32 %v1641
      %v1644 = vshrl.u32 %v1643, 3
      %v1645 = vmul.u32 %v1644, 10
      %v1646 = vsub.s32 %v1640, %v1645
      %v1647 = vsub.s32 0, %v1646
      %v1648 = vsel %vm1638, %v1647, %v1646
      %vm1649 = vcmp.lt.s32.totalorder %v1549, 0
      %v1650 = vsub.s32 0, %v1549
      %v1651 = vsel %vm1649, %v1650, %v1549
      %v1652 = vmul.u32.u64.compose %v1651, 3435973837
      %v1653 = vextract.low.u32 %v1652
      %v1654 = vextract.high.u32 %v1652
      %v1655 = vshrl.u32 %v1654, 3
      %v1656 = vmul.u32 %v1655, 10
      %v1657 = vsub.s32 %v1651, %v1656
      %v1658 = vsub.s32 0, %v1657
      %v1659 = vsel %vm1649, %v1658, %v1657
      %vm1660 = vcmp.ne.s32.totalorder %v1560, 0
      %vm1661 = vcmp.ne.s32.totalorder %v1571, 0
      %vm1662 = vcmp.ne.s32.totalorder %v1582, 0
      %vm1663 = vcmp.ne.s32.totalorder %v1593, 0
      %vm1664 = vcmp.ne.s32.totalorder %v1604, 0
      %vm1665 = vcmp.ne.s32.totalorder %v1615, 0
      %vm1666 = vcmp.ne.s32.totalorder %v1626, 0
      %vm1667 = vcmp.ne.s32.totalorder %v1637, 0
      %vm1668 = vcmp.ne.s32.totalorder %v1648, 0
      %vm1669 = vcmp.ne.s32.totalorder %v1659, 0
      %vm1670 = vcmp.lt.s32.totalorder %v1560, 0
      %vm1671 = vcmp.lt.s32.totalorder %v1571, 0
      %vm1672 = vcmp.lt.s32.totalorder %v1582, 0
      %vm1673 = vcmp.lt.s32.totalorder %v1593, 0
      %vm1674 = vcmp.lt.s32.totalorder %v1604, 0
      %vm1675 = vcmp.lt.s32.totalorder %v1615, 0
      %vm1676 = vcmp.lt.s32.totalorder %v1626, 0
      %vm1677 = vcmp.lt.s32.totalorder %v1637, 0
      %vm1678 = vcmp.lt.s32.totalorder %v1648, 0
      %vm1679 = vcmp.lt.s32.totalorder %v1659, 0
      %vm1680 = vmand %vm1670, %vm1660
      %vm1681 = vmand %vm1671, %vm1661
      %vm1682 = vmand %vm1672, %vm1662
      %vm1683 = vmand %vm1673, %vm1663
      %vm1684 = vmand %vm1674, %vm1664
      %vm1685 = vmand %vm1675, %vm1665
      %vm1686 = vmand %vm1676, %vm1666
      %vm1687 = vmand %vm1677, %vm1667
      %vm1688 = vmand %vm1678, %vm1668
      %vm1689 = vmand %vm1679, %vm1669
      %v1690 = vadd.s32 %v1560, 10
      %v1691 = vadd.s32 %v1571, 10
      %v1692 = vadd.s32 %v1582, 10
      %v1693 = vadd.s32 %v1593, 10
      %v1694 = vadd.s32 %v1604, 10
      %v1695 = vadd.s32 %v1615, 10
      %v1696 = vadd.s32 %v1626, 10
      %v1697 = vadd.s32 %v1637, 10
      %v1698 = vadd.s32 %v1648, 10
      %v1699 = vadd.s32 %v1659, 10
      %v1700 = vsel %vm1680, %v1690, %v1560
      %v1701 = vsel %vm1681, %v1691, %v1571
      %v1702 = vsel %vm1682, %v1692, %v1582
      %v1703 = vsel %vm1683, %v1693, %v1593
      %v1704 = vsel %vm1684, %v1694, %v1604
      %v1705 = vsel %vm1685, %v1695, %v1615
      %v1706 = vsel %vm1686, %v1696, %v1626
      %v1707 = vsel %vm1687, %v1697, %v1637
      %v1708 = vsel %vm1688, %v1698, %v1648
      %v1709 = vsel %vm1689, %v1699, %v1659
      %vm1710 = vcmp.lt.s32.totalorder %v1700, 8
      %vm1711 = vcmp.lt.s32.totalorder %v1701, 8
      %vm1712 = vcmp.lt.s32.totalorder %v1702, 8
      %vm1713 = vcmp.lt.s32.totalorder %v1703, 8
      %vm1714 = vcmp.lt.s32.totalorder %v1704, 8
      %vm1715 = vcmp.lt.s32.totalorder %v1705, 8
      %vm1716 = vcmp.lt.s32.totalorder %v1706, 8
      %vm1717 = vcmp.lt.s32.totalorder %v1707, 8
      %vm1718 = vcmp.lt.s32.totalorder %v1708, 8
      %vm1719 = vcmp.lt.s32.totalorder %v1709, 8
      %v1720 = vsel %vm1710, 1, 0
      %v1721 = vsel %vm1711, 1, 0
      %v1722 = vsel %vm1712, 1, 0
      %v1723 = vsel %vm1713, 1, 0
      %v1724 = vsel %vm1714, 1, 0
      %v1725 = vsel %vm1715, 1, 0
      %v1726 = vsel %vm1716, 1, 0
      %v1727 = vsel %vm1717, 1, 0
      %v1728 = vsel %vm1718, 1, 0
      %v1729 = vsel %vm1719, 1, 0
      %vm1730 = vcmp.eq.s32.totalorder %v1720, 1
      %vm1731 = vcmp.eq.s32.totalorder %v1721, 1
      %vm1732 = vcmp.eq.s32.totalorder %v1722, 1
      %vm1733 = vcmp.eq.s32.totalorder %v1723, 1
      %vm1734 = vcmp.eq.s32.totalorder %v1724, 1
      %vm1735 = vcmp.eq.s32.totalorder %v1725, 1
      %vm1736 = vcmp.eq.s32.totalorder %v1726, 1
      %vm1737 = vcmp.eq.s32.totalorder %v1727, 1
      %vm1738 = vcmp.eq.s32.totalorder %v1728, 1
      %vm1739 = vcmp.eq.s32.totalorder %v1729, 1
      %v1740 = vsel %vm1730, %v1519, 0.0
      %v1741 = vsel %vm1731, %v1520, 0.0
      %v1742 = vsel %vm1732, %v1521, 0.0
      %v1743 = vsel %vm1733, %v1522, 0.0
      %v1744 = vsel %vm1734, %v1523, 0.0
      %v1745 = vsel %vm1735, %v1524, 0.0
      %v1746 = vsel %vm1736, %v1525, 0.0
      %v1747 = vsel %vm1737, %v1526, 0.0
      %v1748 = vsel %vm1738, %v1527, 0.0
      %v1749 = vsel %vm1739, %v1528, 0.0
      %v1750 = vadd.f32 %v1740, %v1741
      %v1751 = vadd.f32 %v1750, %v1742
      %v1752 = vadd.f32 %v1751, %v1743
      %v1753 = vadd.f32 %v1752, %v1744
      %v1754 = vadd.f32 %v1753, %v1745
      %v1755 = vadd.f32 %v1754, %v1746
      %v1756 = vadd.f32 %v1755, %v1747
      %v1757 = vadd.f32 %v1756, %v1748
      %v1758 = vadd.f32 %v1757, %v1749
      %v1759 = vrot.slane %v1758, 4
      %v1760 = vadd.f32 %v1758, %v1759
      %v1761 = vrot.slane %v1760, 2
      %v1762 = vadd.f32 %v1760, %v1761
      %v1763 = vrot.slane %v1762, 1
      %v1764 = vadd.f32 %v1762, %v1763
      %1765 = vst [vmem:[%s181] sm:$0x1] %v1764
      %v1766 = vmul.f32 %v1740, %v1740
      %v1767 = vmul.f32 %v1741, %v1741
      %v1768 = vmul.f32 %v1742, %v1742
      %v1769 = vmul.f32 %v1743, %v1743
      %v1770 = vmul.f32 %v1744, %v1744
      %v1771 = vmul.f32 %v1745, %v1745
      %v1772 = vmul.f32 %v1746, %v1746
      %v1773 = vmul.f32 %v1747, %v1747
      %v1774 = vmul.f32 %v1748, %v1748
      %v1775 = vmul.f32 %v1749, %v1749
      %v1776 = vadd.f32 %v1766, %v1767
      %v1777 = vadd.f32 %v1776, %v1768
      %v1778 = vadd.f32 %v1777, %v1769
      %v1779 = vadd.f32 %v1778, %v1770
      %v1780 = vadd.f32 %v1779, %v1771
      %v1781 = vadd.f32 %v1780, %v1772
      %v1782 = vadd.f32 %v1781, %v1773
      %v1783 = vadd.f32 %v1782, %v1774
      %v1784 = vadd.f32 %v1783, %v1775
      %v1785 = vrot.slane %v1784, 4
      %v1786 = vadd.f32 %v1784, %v1785
      %v1787 = vrot.slane %v1786, 2
      %v1788 = vadd.f32 %v1786, %v1787
      %v1789 = vrot.slane %v1788, 1
      %v1790 = vadd.f32 %v1788, %v1789
      %1791 = vst [vmem:[%s181 + $0x1] sm:$0x1] %v1790
      %p1792 = scmp.lt.s32.totalorder %s15, 1
      %s1793 = scalar_select %p1792, %s15, 1
      %s1794 = smul.addr %s1793, 10
      %s1795 = smul.addr %s1794, 8
      %s1796 = scalar_lea.vmem %s2, %s1795
      %p1797 = scmp.lt.s32.totalorder %s15, 1
      %s1798 = scalar_select %p1797, %s15, 1
      %s1799 = smul.addr %s1798, 2
      %s1800 = scalar_lea.vmem %s3, %s1799
      // Predicated region
      $region29: #{block_forward.5} parent=27 // pred_check
        %p1801 = pneg %p80
      $region30: #{block_forward.5} parent=27 // pred_check_branch
        %1803 = sbr.rel (%p1801) target = $region32
      $region31: #{block_forward.5} parent=27 // pred_region
        _
      $region32: #{block_forward.5} parent=27 // pred_fallthru
        _
      // Predicated region
      $region33: #{block_forward.5} parent=27 // pred_check
        %p1804 = pneg %p106
      $region34: #{block_forward.5} parent=27 // pred_check_branch
        %1806 = sbr.rel (%p1804) target = $region36
      $region35: #{block_forward.5} parent=27 // pred_region
        _
      $region36: #{block_forward.5} parent=27 // pred_fallthru
        _
    $region28: #{block_forward.5} parent=5 // pred_fallthru
      _
    %p1807 = scmp.le.s32.totalorder 2, %s10
    // Predicated region
    $region37: #{block_forward.5} parent=5 // pred_check
      %p1808 = pneg %p1807
    $region38: #{block_forward.5} parent=5 // pred_check_branch
      %1810 = sbr.rel (%p1808) target = $region40
    $region39: #{block_forward.5} parent=5 // pred_region
      %s1811 = ssub.s32 %s10, 2
      // Predicated region
      $region41: #{block_forward.5} parent=39 // pred_check
        %p1812 = pneg %p86
      $region42: #{block_forward.5} parent=39 // pred_check_branch
        %1814 = sbr.rel (%p1812) target = $region44
      $region43: #{block_forward.5} parent=39 // pred_region
        %p1815 = scmp.lt.s32.totalorder %s16, 1
        %s1816 = scalar_select %p1815, %s16, 1
        %s1817 = smul.addr %s1816, 10
        %s1818 = smul.addr %s1817, 8
        %s1819 = scalar_lea.vmem %s2, %s1818
      $region44: #{block_forward.5} parent=39 // pred_fallthru
        _
      // Predicated region
      $region45: #{block_forward.5} parent=39 // pred_check
        %p1820 = pneg %p112
      $region46: #{block_forward.5} parent=39 // pred_check_branch
        %1822 = sbr.rel (%p1820) target = $region48
      $region47: #{block_forward.5} parent=39 // pred_region
        %p1823 = scmp.lt.s32.totalorder %s16, 1
        %s1824 = scalar_select %p1823, %s16, 1
        %s1825 = smul.addr %s1824, 2
        %s1826 = scalar_lea.vmem %s3, %s1825
      $region48: #{block_forward.5} parent=39 // pred_fallthru
        _
    $region40: #{block_forward.5} parent=5 // pred_fallthru
      _
  $region6: #{block_forward.5} parent=0 // loop_footer
    %s14 = sadd.s32 1, %s10
  $region7: #{block_forward.5} parent=0 // loop_footer_branch
    %9 = sbr.rel target = $region3
  $region8: #{block_forward.5} parent=0 // loop_exit
    _

// kernel: block_forward.7
$region0: #{block_forward.7}
  #allocation0 [shape = 'u32[]', space=smem, size = 0x4, offset = 0x4, fixed_abs, tag = 'smem constant byte address 0x4 - core index']
  #allocation1 [shape = 'u32[144,128]{1,0:T(1,128)}', space=vmem, size = 0x12000, scoped, tag = 'internal scratch']
  %s0 = inlined_call_operand.vmem [shape: f32[2,8,10,128], index: 0, kind: input, shape index: {}]
  %s1 = inlined_call_operand.vmem [shape: f32[2,8,8,128], index: 1, kind: input, shape index: {}]
  %s2 = inlined_call_operand.vmem [shape: f32[3,1,1,128], index: 2, kind: input, shape index: {}]
  %s3 = inlined_call_operand.vmem [shape: f32[2,8,8,128], index: 3, kind: output, shape index: {}]
  %s4 = sld [smem:[#allocation0]]
  $region45: #{block_forward.7} parent=0
    _
  %s6 = ssub.s32 1, %s4
  %s7 = scalar_select 0, %s6, %s4
  loop: start=0, step=1, limit=4
  $region2: #{block_forward.7} parent=0 // loop_pre_header
    _
  $region3: #{block_forward.7} parent=0 // loop_header
    %s9 = sphi 0, %s13
    %p10 = scmp.ge.s32.totalorder %s9, 4
    %s16 = sphi 0, %s28
    %s17 = sphi 0, %s24
    %s18 = sphi 0, %s16
    %s19 = sphi 0, %s17
    %s20 = sphi 0, %s18
    %s21 = sphi 0, %s19
    %s33 = sphi 0, %s35
    %s36 = sphi 0, %s33
    %s37 = sphi 0, %s36
    %s53 = sphi 0, %s37
    %s61 = sphi 0, %s63
    %s64 = sphi 0, %s61
    %s65 = sphi 0, %s64
    %s81 = sphi 0, %s65
    %s85 = sphi 0, %s85
    %s87 = sphi 0, %s85
    %s88 = sphi 0, %s87
    %s102 = sphi 0, %s88
    %s110 = sphi 0, %s112
    %s113 = sphi 0, %s110
    %s114 = sphi 0, %s113
    %s130 = sphi 0, %s114
  $region4: #{block_forward.7} parent=0 // loop_header_branch
    %12 = sbr.rel (%p10) target = $region8
  $region5: #{block_forward.7} parent=0 // loop_body
    %s14 = ssub.s32 %s9, 1
    %s15 = ssub.s32 %s9, 2
    %s22 = sadd.s32 1, %s17
    %p23 = scmp.ge.s32.totalorder %s22, 1
    %s24 = scalar_select %p23, 0, %s22
    %s25 = sadd.s32 1, %s16
    %s26 = scalar_select %p23, %s25, %s16
    %p27 = scmp.ge.s32.totalorder %s26, 2
    %s28 = scalar_select %p27, 0, %s26
    %s29 = ssub.s32 %s16, %s28
    %s30 = ssub.s32 %s17, %s24
    %s31 = sor.u32 %s29, %s30
    %p32 = scmp.eq.s32.totalorder %s31, 0
    %s34 = sadd.s32 %s33, 1
    %s35 = scalar_select %p32, %s33, %s34
    %p38 = pneg %p32
    %p39 = scmp.eq.s32.totalorder %s9, 1
    %p40 = por %p38, %p39
    %p41 = scmp.ne.s32.totalorder %s33, %s36
    %p42 = scmp.eq.s32.totalorder %s9, 0
    %p43 = por %p41, %p42
    %p44 = scmp.ne.s32.totalorder %s33, %s36
    %p45 = scmp.eq.s32.totalorder %s14, 1
    %p46 = por %p44, %p45
    %p47 = scmp.ne.s32.totalorder %s36, %s37
    %p48 = scmp.eq.s32.totalorder %s14, 0
    %p49 = por %p47, %p48
    %p50 = scmp.ne.s32.totalorder %s36, %s37
    %p51 = scmp.eq.s32.totalorder %s15, 1
    %p52 = por %p50, %p51
    %p54 = scmp.ne.s32.totalorder %s37, %s53
    %p55 = scmp.eq.s32.totalorder %s15, 0
    %p56 = por %p54, %p55
    %s57 = ssub.s32 %s16, %s28
    %s58 = ssub.s32 %s17, %s24
    %s59 = sor.u32 %s57, %s58
    %p60 = scmp.eq.s32.totalorder %s59, 0
    %s62 = sadd.s32 %s61, 1
    %s63 = scalar_select %p60, %s61, %s62
    %p66 = pneg %p60
    %p67 = scmp.eq.s32.totalorder %s9, 1
    %p68 = por %p66, %p67
    %p69 = scmp.ne.s32.totalorder %s61, %s64
    %p70 = scmp.eq.s32.totalorder %s9, 0
    %p71 = por %p69, %p70
    %p72 = scmp.ne.s32.totalorder %s61, %s64
    %p73 = scmp.eq.s32.totalorder %s14, 1
    %p74 = por %p72, %p73
    %p75 = scmp.ne.s32.totalorder %s64, %s65
    %p76 = scmp.eq.s32.totalorder %s14, 0
    %p77 = por %p75, %p76
    %p78 = scmp.ne.s32.totalorder %s64, %s65
    %p79 = scmp.eq.s32.totalorder %s15, 1
    %p80 = por %p78, %p79
    %p82 = scmp.ne.s32.totalorder %s65, %s81
    %p83 = scmp.eq.s32.totalorder %s15, 0
    %p84 = por %p82, %p83
    %s86 = sadd.s32 %s85, 1
    %p89 = scmp.eq.s32.totalorder %s9, 1
    %p90 = scmp.ne.s32.totalorder %s85, %s87
    %p91 = scmp.eq.s32.totalorder %s9, 0
    %p92 = por %p90, %p91
    %p93 = scmp.ne.s32.totalorder %s85, %s87
    %p94 = scmp.eq.s32.totalorder %s14, 1
    %p95 = por %p93, %p94
    %p96 = scmp.ne.s32.totalorder %s87, %s88
    %p97 = scmp.eq.s32.totalorder %s14, 0
    %p98 = por %p96, %p97
    %p99 = scmp.ne.s32.totalorder %s87, %s88
    %p100 = scmp.eq.s32.totalorder %s15, 1
    %p101 = por %p99, %p100
    %p103 = scmp.ne.s32.totalorder %s88, %s102
    %p104 = scmp.eq.s32.totalorder %s15, 0
    %p105 = por %p103, %p104
    %s106 = ssub.s32 %s16, %s28
    %s107 = ssub.s32 %s17, %s24
    %s108 = sor.u32 %s106, %s107
    %p109 = scmp.eq.s32.totalorder %s108, 0
    %s111 = sadd.s32 %s110, 1
    %s112 = scalar_select %p109, %s110, %s111
    %p115 = pneg %p109
    %p116 = scmp.eq.s32.totalorder %s9, 1
    %p117 = por %p115, %p116
    %p118 = scmp.ne.s32.totalorder %s110, %s113
    %p119 = scmp.eq.s32.totalorder %s9, 0
    %p120 = por %p118, %p119
    %p121 = scmp.ne.s32.totalorder %s110, %s113
    %p122 = scmp.eq.s32.totalorder %s14, 1
    %p123 = por %p121, %p122
    %p124 = scmp.ne.s32.totalorder %s113, %s114
    %p125 = scmp.eq.s32.totalorder %s14, 0
    %p126 = por %p124, %p125
    %p127 = scmp.ne.s32.totalorder %s113, %s114
    %p128 = scmp.eq.s32.totalorder %s15, 1
    %p129 = por %p127, %p128
    %p131 = scmp.ne.s32.totalorder %s114, %s130
    %p132 = scmp.eq.s32.totalorder %s15, 0
    %p133 = por %p131, %p132
    %p134 = scmp.le.s32.totalorder 1, %s9
    %p135 = scmp.lt.s32.totalorder %s9, 3
    %p136 = pnand %p134, %p135
    %p137 = pneg %p136
    // Predicated region
    $region9: #{block_forward.7} parent=5 // pred_check
      _
    $region10: #{block_forward.7} parent=5 // pred_check_branch
      %139 = sbr.rel (%p136) target = $region12
    $region11: #{block_forward.7} parent=5 // pred_region
      %s140 = ssub.s32 %s9, 1
      // Predicated region
      $region13: #{block_forward.7} parent=11 // pred_check
        %p141 = pneg %p98
      $region14: #{block_forward.7} parent=11 // pred_check_branch
        %143 = sbr.rel (%p141) target = $region16
      $region15: #{block_forward.7} parent=11 // pred_region
        _
      $region16: #{block_forward.7} parent=11 // pred_fallthru
        _
    $region12: #{block_forward.7} parent=5 // pred_fallthru
      _
    %p144 = scmp.lt.s32.totalorder %s9, 2
    // Predicated region
    $region17: #{block_forward.7} parent=5 // pred_check
      %p145 = pneg %p144
    $region18: #{block_forward.7} parent=5 // pred_check_branch
      %147 = sbr.rel (%p145) target = $region20
    $region19: #{block_forward.7} parent=5 // pred_region
      // Predicated region
      $region21: #{block_forward.7} parent=19 // pred_check
        %p148 = pneg %p43
      $region22: #{block_forward.7} parent=19 // pred_check_branch
        %150 = sbr.rel (%p148) target = $region24
      $region23: #{block_forward.7} parent=19 // pred_region
        %s151 = smul.u32 8, %s17
        %p152 = scmp.lt.s32.totalorder %s16, 1
        %s153 = scalar_select %p152, %s16, 1
        %p154 = scmp.lt.s32.totalorder %s151, 7
        %s155 = scalar_select %p154, %s151, 7
        %s156 = smul.addr %s155, 2
        %s157 = smul.addr %s153, 16
        %s158 = sadd.s32 %s156, %s157
        %s159 = smul.addr %s158, 8
        %s160 = scalar_lea.vmem %s0, %s159
        %s161 = smul.u32 8, %s17
      $region24: #{block_forward.7} parent=19 // pred_fallthru
        _
      // Predicated region
      $region25: #{block_forward.7} parent=19 // pred_check
        %p162 = pneg %p71
      $region26: #{block_forward.7} parent=19 // pred_check_branch
        %164 = sbr.rel (%p162) target = $region28
      $region27: #{block_forward.7} parent=19 // pred_region
        %s165 = smul.u32 8, %s17
        %p166 = scmp.lt.s32.totalorder %s16, 1
        %s167 = scalar_select %p166, %s16, 1
        %p168 = scmp.lt.s32.totalorder %s165, 7
        %s169 = scalar_select %p168, %s165, 7
        %s170 = smul.addr %s167, 8
        %s171 = sadd.s32 %s169, %s170
        %s172 = smul.addr %s171, 8
        %s173 = scalar_lea.vmem %s1, %s172
        %s174 = smul.u32 8, %s17
      $region28: #{block_forward.7} parent=19 // pred_fallthru
        _
    $region20: #{block_forward.7} parent=5 // pred_fallthru
      _
    %p175 = scmp.le.s32.totalorder 1, %s9
    %p176 = scmp.lt.s32.totalorder %s9, 3
    %p177 = pnand %p175, %p176
    %p178 = pneg %p177
    // Predicated region
    $region29: #{block_forward.7} parent=5 // pred_check
      _
    $region30: #{block_forward.7} parent=5 // pred_check_branch
      %180 = sbr.rel (%p177) target = $region32
    $region31: #{block_forward.7} parent=5 // pred_region
      %s181 = ssub.s32 %s9, 1
      %s182 = smul.u32 8, %s19
      %p183 = scmp.lt.s32.totalorder %s18, 1
      %s184 = scalar_select %p183, %s18, 1
      %p185 = scmp.lt.s32.totalorder %s182, 7
      %s186 = scalar_select %p185, %s182, 7
      %s187 = smul.addr %s186, 2
      %s188 = smul.addr %s184, 16
      %s189 = sadd.s32 %s187, %s188
      %s190 = smul.addr %s189, 8
      %s191 = scalar_lea.vmem %s0, %s190
      %p192 = pneg %p49
      %p193 = pneg %p46
      %s194 = smul.u32 8, %s19
      %p195 = scmp.lt.s32.totalorder %s18, 1
      %s196 = scalar_select %p195, %s18, 1
      %p197 = scmp.lt.s32.totalorder %s194, 7
      %s198 = scalar_select %p197, %s194, 7
      %s199 = smul.addr %s196, 8
      %s200 = sadd.s32 %s198, %s199
      %s201 = smul.addr %s200, 8
      %s202 = scalar_lea.vmem %s1, %s201
      %p203 = pneg %p77
      %p204 = pneg %p74
      %p205 = pneg %p98
      %p206 = pneg %p95
      %p207 = pneg %p126
      %p208 = pneg %p123
      %s209 = smul.u32 8, %s19
      %p210 = scmp.lt.s32.totalorder %s18, 1
      %s211 = scalar_select %p210, %s18, 1
      %p212 = scmp.lt.s32.totalorder %s209, 7
      %s213 = scalar_select %p212, %s209, 7
      %s214 = smul.addr %s211, 8
      %s215 = sadd.s32 %s213, %s214
      %s216 = smul.addr %s215, 8
      %s217 = scalar_lea.vmem %s3, %s216
      %s218 = smul.u32 8, %s19
      %p219 = scmp.lt.s32.totalorder %s18, 1
      %s220 = scalar_select %p219, %s18, 1
      %p221 = scmp.lt.s32.totalorder %s218, 7
      %s222 = scalar_select %p221, %s218, 7
      %s223 = smul.addr %s222, 2
      %s224 = smul.addr %s220, 16
      %s225 = sadd.s32 %s223, %s224
      %s226 = smul.addr %s225, 8
      %s227 = scalar_lea.vmem %s0, %s226
      %s228 = smul.u32 8, %s19
      %s229 = smul.u32 8, %s19
      %p230 = scmp.lt.s32.totalorder %s18, 1
      %s231 = scalar_select %p230, %s18, 1
      %p232 = scmp.lt.s32.totalorder %s229, 7
      %s233 = scalar_select %p232, %s229, 7
      %s234 = smul.addr %s231, 8
      %s235 = sadd.s32 %s233, %s234
      %s236 = smul.addr %s235, 8
      %s237 = scalar_lea.vmem %s1, %s236
      %s238 = smul.u32 8, %s19
      %s239 = smul.u32 8, %s19
      %p240 = scmp.lt.s32.totalorder %s18, 1
      %s241 = scalar_select %p240, %s18, 1
      %p242 = scmp.lt.s32.totalorder %s239, 7
      %s243 = scalar_select %p242, %s239, 7
      %s244 = smul.addr %s241, 8
      %s245 = sadd.s32 %s243, %s244
      %s246 = smul.addr %s245, 8
      %s247 = scalar_lea.vmem %s3, %s246
      %s248 = smul.u32 8, %s19
      %v249 = vld [vmem:[%s227] sm:$0xff]
      %v250 = vld [vmem:[%s227 + $0x10] sm:$0xff]
      %v251 = vld [vmem:[%s227 + $0x20] sm:$0xff]
      %v252 = vld [vmem:[%s227 + $0x30] sm:$0xff]
      %v253 = vld [vmem:[%s227 + $0x40] sm:$0xff]
      %v254 = vld [vmem:[%s227 + $0x50] sm:$0xff]
      %v255 = vld [vmem:[%s227 + $0x60] sm:$0xff]
      %v256 = vld [vmem:[%s227 + $0x70] sm:$0xff]
      %v257 = vld [vmem:[%s237] sm:$0xff]
      %v258 = vld [vmem:[%s237 + $0x8] sm:$0xff]
      %v259 = vld [vmem:[%s237 + $0x10] sm:$0xff]
      %v260 = vld [vmem:[%s237 + $0x18] sm:$0xff]
      %v261 = vld [vmem:[%s237 + $0x20] sm:$0xff]
      %v262 = vld [vmem:[%s237 + $0x28] sm:$0xff]
      %v263 = vld [vmem:[%s237 + $0x30] sm:$0xff]
      %v264 = vld [vmem:[%s237 + $0x38] sm:$0xff]
      %v265 = vld [vmem:[%s2] sm:$0x1]
      %s266 = scalar_lea.vmem %s2, 1
      %v267 = vld [vmem:[%s266] sm:$0x1]
      %s268 = scalar_lea.vmem %s2, 2
      %v269 = vld [vmem:[%s268] sm:$0x1]
      %v271 = vlaneseq
      %v272 = vshrl.u32 %v271, 7
      %v273 = vsub.s32 0, %v272
      %v274 = vrot.slane %v265, %v273
      %v276 = vmul.f32 %v249, %v274
      %v277 = vmul.f32 %v250, %v274
      %v278 = vmul.f32 %v251, %v274
      %v279 = vmul.f32 %v252, %v274
      %v280 = vmul.f32 %v253, %v274
      %v281 = vmul.f32 %v254, %v274
      %v282 = vmul.f32 %v255, %v274
      %v283 = vmul.f32 %v256, %v274
      %v285 = vlaneseq
      %v286 = vshrl.u32 %v285, 7
      %v287 = vsub.s32 0, %v286
      %v288 = vrot.slane %v267, %v287
      %v290 = vmul.f32 %v257, %v288
      %v291 = vmul.f32 %v258, %v288
      %v292 = vmul.f32 %v259, %v288
      %v293 = vmul.f32 %v260, %v288
      %v294 = vmul.f32 %v261, %v288
      %v295 = vmul.f32 %v262, %v288
      %v296 = vmul.f32 %v263, %v288
      %v297 = vmul.f32 %v264, %v288
      %v298 = vadd.f32 %v276, %v290
      %v299 = vadd.f32 %v277, %v291
      %v300 = vadd.f32 %v278, %v292
      %v301 = vadd.f32 %v279, %v293
      %v302 = vadd.f32 %v280, %v294
      %v303 = vadd.f32 %v281, %v295
      %v304 = vadd.f32 %v282, %v296
      %v305 = vadd.f32 %v283, %v297
      %v307 = vlaneseq
      %v308 = vshrl.u32 %v307, 7
      %v309 = vsub.s32 0, %v308
      %v310 = vrot.slane %v269, %v309
      %v312 = vadd.f32 %v298, %v310
      %v313 = vadd.f32 %v299, %v310
      %v314 = vadd.f32 %v300, %v310
      %v315 = vadd.f32 %v301, %v310
      %v316 = vadd.f32 %v302, %v310
      %v317 = vadd.f32 %v303, %v310
      %v318 = vadd.f32 %v304, %v310
      %v319 = vadd.f32 %v305, %v310
      %v320 = vmax.f32 %v312, 0.0
      %v321 = vmax.f32 %v313, 0.0
      %v322 = vmax.f32 %v314, 0.0
      %v323 = vmax.f32 %v315, 0.0
      %v324 = vmax.f32 %v316, 0.0
      %v325 = vmax.f32 %v317, 0.0
      %v326 = vmax.f32 %v318, 0.0
      %v327 = vmax.f32 %v319, 0.0
      %328 = vst [vmem:[%s247] sm:$0xff] %v320
      %329 = vst [vmem:[%s247 + $0x8] sm:$0xff] %v321
      %330 = vst [vmem:[%s247 + $0x10] sm:$0xff] %v322
      %331 = vst [vmem:[%s247 + $0x18] sm:$0xff] %v323
      %332 = vst [vmem:[%s247 + $0x20] sm:$0xff] %v324
      %333 = vst [vmem:[%s247 + $0x28] sm:$0xff] %v325
      %334 = vst [vmem:[%s247 + $0x30] sm:$0xff] %v326
      %335 = vst [vmem:[%s247 + $0x38] sm:$0xff] %v327
      %s336 = smul.u32 8, %s19
      %p337 = scmp.lt.s32.totalorder %s18, 1
      %s338 = scalar_select %p337, %s18, 1
      %p339 = scmp.lt.s32.totalorder %s336, 7
      %s340 = scalar_select %p339, %s336, 7
      %s341 = smul.addr %s338, 8
      %s342 = sadd.s32 %s340, %s341
      %s343 = smul.addr %s342, 8
      %s344 = scalar_lea.vmem %s3, %s343
      // Predicated region
      $region33: #{block_forward.7} parent=31 // pred_check
        %p345 = pneg %p123
      $region34: #{block_forward.7} parent=31 // pred_check_branch
        %347 = sbr.rel (%p345) target = $region36
      $region35: #{block_forward.7} parent=31 // pred_region
        %s348 = smul.u32 8, %s19
      $region36: #{block_forward.7} parent=31 // pred_fallthru
        _
    $region32: #{block_forward.7} parent=5 // pred_fallthru
      _
    %p349 = scmp.le.s32.totalorder 2, %s9
    // Predicated region
    $region37: #{block_forward.7} parent=5 // pred_check
      %p350 = pneg %p349
    $region38: #{block_forward.7} parent=5 // pred_check_branch
      %352 = sbr.rel (%p350) target = $region40
    $region39: #{block_forward.7} parent=5 // pred_region
      %s353 = ssub.s32 %s9, 2
      // Predicated region
      $region41: #{block_forward.7} parent=39 // pred_check
        %p354 = pneg %p129
      $region42: #{block_forward.7} parent=39 // pred_check_branch
        %356 = sbr.rel (%p354) target = $region44
      $region43: #{block_forward.7} parent=39 // pred_region
        %s357 = smul.u32 8, %s21
        %p358 = scmp.lt.s32.totalorder %s20, 1
        %s359 = scalar_select %p358, %s20, 1
        %p360 = scmp.lt.s32.totalorder %s357, 7
        %s361 = scalar_select %p360, %s357, 7
        %s362 = smul.addr %s359, 8
        %s363 = sadd.s32 %s361, %s362
        %s364 = smul.addr %s363, 8
        %s365 = scalar_lea.vmem %s3, %s364
      $region44: #{block_forward.7} parent=39 // pred_fallthru
        _
    $region40: #{block_forward.7} parent=5 // pred_fallthru
      _
  $region6: #{block_forward.7} parent=0 // loop_footer
    %s13 = sadd.s32 1, %s9
  $region7: #{block_forward.7} parent=0 // loop_footer_branch
    %8 = sbr.rel target = $region3
  $region8: #{block_forward.7} parent=0 // loop_exit
    _

</llo_original>
